<compile_context>
chip_gen: v7x
topology: tpu7x:2x2x1
jax: 0.10.0
libtpu: 0.0.40
codegen_flags: <defaults>
</compile_context>

<pallas_src>
import functools

import jax
import jax.numpy as jnp
from jax.experimental import pallas as pl
from jax.experimental.pallas import tpu as pltpu

BN_EPS = 1e-5
H = 512           # hidden width of every head
PAD = 128         # lane-dense padded output width per head
NUM_HEADS = 3
VEC_W = 5 * H - 3 * PAD + PAD  # 512*4 + 128 = 2176 = 17*128 (lane aligned)


def _head_kernel(x_ref, w1_ref, vec_ref, w2_ref, w3_ref, out_ref):
    """One head per grid step (grid axis is parallel over heads).

    x_ref   : [B, 512]   f32   backbone feature (resident across the grid)
    w1_ref  : [512, 512] bf16  this head's first Linear weight
    vec_ref : [1, 2176]  f32   [b1 | gamma | beta | b2 | b3_padded]
    w2_ref  : [512, 512] bf16  this head's second Linear weight
    w3_ref  : [512, 128] bf16  this head's (zero-padded) embed Linear weight
    out_ref : [B, 128]   f32   lane-dense output slice for this head
    """
    x = x_ref[...]                                                  # [B, 512]

    b1 = vec_ref[0:1, 0:H]
    gamma = vec_ref[0:1, H:2 * H]
    beta = vec_ref[0:1, 2 * H:3 * H]
    b2 = vec_ref[0:1, 3 * H:4 * H]
    b3 = vec_ref[0:1, 4 * H:4 * H + PAD]

    # ---- Linear(512,512) -> ReLU (bf16 weights, f32 accumulation) ----------
    h = jnp.dot(x.astype(jnp.bfloat16), w1_ref[...],
                preferred_element_type=jnp.float32) + b1
    h = jnp.maximum(h, 0.0)

    # ---- BatchNorm1d (training mode, biased variance), one-pass stats ------
    inv_n = 1.0 / h.shape[0]
    mean = jnp.sum(h, axis=0, keepdims=True) * inv_n                # [1, 512]
    mean_sq = jnp.sum(h * h, axis=0, keepdims=True) * inv_n
    var = mean_sq - mean * mean
    h = (h - mean) * jax.lax.rsqrt(var + BN_EPS) * gamma + beta

    # ---- Linear(512,512) -> ReLU -------------------------------------------
    feat = jnp.dot(h.astype(jnp.bfloat16), w2_ref[...],
                   preferred_element_type=jnp.float32) + b2
    e = jnp.maximum(feat, 0.0)

    # ---- Embed Linear(512, d) zero-padded to 128 lanes ----------------------
    out_ref[...] = jnp.dot(e.astype(jnp.bfloat16), w3_ref[...],
                           preferred_element_type=jnp.float32) + b3


@functools.partial(jax.jit, static_argnames=("out_dims",))
def fan_encoder_feature_embed(feat, packed, out_dims):
    """Equivalent of FanEncoder.forward(x, _type='feature_embed') given the
    backbone feature `feat` = FAN_use(x) of shape [B, 512]."""
    b = feat.shape[0]

    flops = 2 * b * NUM_HEADS * (H * H + H * H + H * PAD)
    bytes_accessed = int(
        feat.size * feat.dtype.itemsize
        + packed["w1"].size * packed["w1"].dtype.itemsize
        + packed["vecs"].size * packed["vecs"].dtype.itemsize
        + packed["w2"].size * packed["w2"].dtype.itemsize
        + packed["w3"].size * packed["w3"].dtype.itemsize
        + b * NUM_HEADS * PAD * 4)

    out = pl.pallas_call(
        _head_kernel,
        out_shape=jax.ShapeDtypeStruct((b, NUM_HEADS * PAD), jnp.float32),
        grid_spec=pltpu.PrefetchScalarGridSpec(
            num_scalar_prefetch=0,
            grid=(NUM_HEADS,),
            in_specs=[
                pl.BlockSpec((b, H), lambda i: (0, 0)),              # feat
                pl.BlockSpec((H, H), lambda i: (0, i)),              # w1 slice
                pl.BlockSpec((None, 1, VEC_W), lambda i: (i, 0, 0)),  # vecs
                pl.BlockSpec((None, H, H), lambda i: (i, 0, 0)),      # w2
                pl.BlockSpec((None, H, PAD), lambda i: (i, 0, 0)),    # w3
            ],
            out_specs=pl.BlockSpec((b, PAD), lambda i: (0, i)),
        ),
        compiler_params=pltpu.CompilerParams(
            dimension_semantics=("parallel",)),
        cost_estimate=pl.CostEstimate(flops=flops, transcendentals=0,
                                      bytes_accessed=bytes_accessed),
    )(feat, packed["w1"], packed["vecs"], packed["w2"], packed["w3"])

    d0, d1, d2 = out_dims
    headpose_emb = out[:, 0:d0]
    eye_embed = out[:, PAD:PAD + d1]
    emo_embed = out[:, 2 * PAD:2 * PAD + d2]
    return headpose_emb, eye_embed, emo_embed


# ---------------------------------------------------------------------------
# Parameter packing (per-head dicts -> fused kernel layout).
# ---------------------------------------------------------------------------
def pack_params(params):
    heads = [params["headpose"], params["eye"], params["emo"]]

    # First-layer weights concatenated along lanes, streamed as bf16.
    w1 = jnp.concatenate([p["w1"] for p in heads], axis=1).astype(jnp.bfloat16)

    # All small per-head vectors packed into one lane-padded row per head:
    # [b1 | gamma | beta | b2 | b3 zero-padded to 128]  ->  [3, 1, 2176] f32.
    def vec_row(p):
        b3p = jnp.pad(p["b3"][0], (0, PAD - p["b3"].shape[1]))
        return jnp.concatenate(
            [p["b1"][0], p["gamma"][0], p["beta"][0], p["b2"][0], b3p], axis=0)

    vecs = jnp.stack([vec_row(p) for p in heads], axis=0)[:, None, :]

    w2 = jnp.stack([p["w2"] for p in heads], axis=0).astype(jnp.bfloat16)

    def pad_w3(w):                                    # [512, d] -> [512, 128]
        return jnp.pad(w, ((0, 0), (0, PAD - w.shape[1])))

    w3 = jnp.stack([pad_w3(p["w3"]) for p in heads],
                   axis=0).astype(jnp.bfloat16)

    out_dims = tuple(int(p["w3"].shape[1]) for p in heads)
    packed = {"w1": w1, "vecs": vecs, "w2": w2, "w3": w3}
    return packed, out_dims


# ---------------------------------------------------------------------------
# Deterministic synthetic parameter construction (shapes from __init__).
# ---------------------------------------------------------------------------
def _make_head_params(key, out_dim, hidden=H):
    ks = jax.random.split(key, 6)
    s1 = 1.0 / jnp.sqrt(hidden)
    return {
        "w1": jax.random.uniform(ks[0], (hidden, hidden), jnp.float32, -s1, s1),
        "b1": jax.random.uniform(ks[1], (1, hidden), jnp.float32, -s1, s1),
        "gamma": jnp.ones((1, hidden), jnp.float32),
        "beta": jnp.zeros((1, hidden), jnp.float32),
        "w2": jax.random.uniform(ks[2], (hidden, hidden), jnp.float32, -s1, s1),
        "b2": jax.random.uniform(ks[3], (1, hidden), jnp.float32, -s1, s1),
        "w3": jax.random.uniform(ks[4], (hidden, out_dim), jnp.float32, -s1, s1),
        "b3": jax.random.uniform(ks[5], (1, out_dim), jnp.float32, -s1, s1),
    }


def make_params(key, pose_dim=12, eye_dim=6, emo_dim=30):
    k1, k2, k3 = jax.random.split(key, 3)
    return {
        "headpose": _make_head_params(k1, pose_dim),
        "eye": _make_head_params(k2, eye_dim),
        "emo": _make_head_params(k3, emo_dim),
    }


# ---------------------------------------------------------------------------
# Pure-JAX reference (per-head, unfused) mirroring the bf16 weight streaming.
# ---------------------------------------------------------------------------
def _head_ref(x, p):
    def bdot(a, w):
        return jnp.dot(a.astype(jnp.bfloat16), w.astype(jnp.bfloat16),
                       preferred_element_type=jnp.float32)

    h = jnp.maximum(bdot(x, p["w1"]) + p["b1"], 0.0)
    mean = h.mean(axis=0, keepdims=True)
    var = (h * h).mean(axis=0, keepdims=True) - mean * mean
    h = (h - mean) * jax.lax.rsqrt(var + BN_EPS) * p["gamma"] + p["beta"]
    feat = bdot(h, p["w2"]) + p["b2"]
    e = jnp.maximum(feat, 0.0)
    return bdot(e, p["w3"]) + p["b3"]


if __name__ == "__main__":
    key = jax.random.PRNGKey(0)
    k_feat, k_params = jax.random.split(key)

    B = 128                       # batch sized to fill the MXU rows
    POSE_DIM, EYE_DIM = 12, 6     # opt.model.net_nonidentity.{pose_dim,eye_dim}

    # Backbone feature FAN_use(x) — stand-in for the (unprovided) FAN backbone.
    feat = jax.random.normal(k_feat, (B, H), jnp.float32)
    params = make_params(k_params, pose_dim=POSE_DIM, eye_dim=EYE_DIM)
    packed, out_dims = pack_params(params)

    outs = fan_encoder_feature_embed(feat, packed, out_dims)
    outs = jax.block_until_ready(outs)
    headpose_emb, eye_embed, emo_embed = outs

    assert headpose_emb.shape == (B, POSE_DIM)
    assert eye_embed.shape == (B, EYE_DIM)
    assert emo_embed.shape == (B, 30)

    # Verify against the pure-JAX (bf16-weight) reference.
    refs = (_head_ref(feat, params["headpose"]),
            _head_ref(feat, params["eye"]),
            _head_ref(feat, params["emo"]))
    for got, ref in zip(outs, refs):
        err = float(jnp.max(jnp.abs(got - ref)))
        assert jnp.allclose(got, ref, atol=2e-3, rtol=2e-3), err

    print("KERNEL_OK")
</pallas_src>

<mosaic_0001>
module attributes {stable_mosaic.version = 11 : i64} {
  func.func @_head_kernel(%arg0: i32, %arg1: memref<128x512xf32, #tpu.memory_space<vmem>>, %arg2: memref<512x512xbf16, #tpu.memory_space<vmem>>, %arg3: memref<1x1x2304xf32, #tpu.memory_space<vmem>>, %arg4: memref<1x512x512xbf16, #tpu.memory_space<vmem>>, %arg5: memref<1x512x128xbf16, #tpu.memory_space<vmem>>, %arg6: memref<128x128xf32, #tpu.memory_space<vmem>>) attributes {dimension_semantics = [#tpu.dimension_semantics<parallel>], iteration_bounds = array<i64: 3>, scalar_prefetch = 0 : i64, scratch_operands = 0 : i64, tpu.core_type = #tpu.core_type<tc>, window_params = [{pipeline_mode = #tpu.pipeline_mode<synchronous>, transform_indices = @transform_0, window_bounds = array<i64: 128, 512>}, {transform_indices = @transform_1, window_bounds = array<i64: 512, 512>}, {transform_indices = @transform_2, window_bounds = array<i64: 1, 1, 2304>}, {transform_indices = @transform_3, window_bounds = array<i64: 1, 512, 512>}, {transform_indices = @transform_4, window_bounds = array<i64: 1, 512, 128>}, {transform_indices = @transform_5, window_bounds = array<i64: 128, 128>}]} {
    %c0 = arith.constant 0 : index
    %c0_0 = arith.constant 0 : index
    %0 = vector.load %arg1[%c0, %c0_0] : memref<128x512xf32, #tpu.memory_space<vmem>>, vector<128x512xf32>
    %c0_1 = arith.constant 0 : index
    %c0_2 = arith.constant 0 : index
    %c0_3 = arith.constant 0 : index
    %1 = vector.load %arg3[%c0_1, %c0_2, %c0_3] : memref<1x1x2304xf32, #tpu.memory_space<vmem>>, vector<1x1x512xf32>
    %2 = vector.shape_cast %1 : vector<1x1x512xf32> to vector<1x512xf32>
    %c0_4 = arith.constant 0 : index
    %c0_5 = arith.constant 0 : index
    %c512 = arith.constant 512 : index
    %3 = vector.load %arg3[%c0_4, %c0_5, %c512] : memref<1x1x2304xf32, #tpu.memory_space<vmem>>, vector<1x1x512xf32>
    %4 = vector.shape_cast %3 : vector<1x1x512xf32> to vector<1x512xf32>
    %c0_6 = arith.constant 0 : index
    %c0_7 = arith.constant 0 : index
    %c1024 = arith.constant 1024 : index
    %5 = vector.load %arg3[%c0_6, %c0_7, %c1024] : memref<1x1x2304xf32, #tpu.memory_space<vmem>>, vector<1x1x512xf32>
    %6 = vector.shape_cast %5 : vector<1x1x512xf32> to vector<1x512xf32>
    %c0_8 = arith.constant 0 : index
    %c0_9 = arith.constant 0 : index
    %c1536 = arith.constant 1536 : index
    %7 = vector.load %arg3[%c0_8, %c0_9, %c1536] : memref<1x1x2304xf32, #tpu.memory_space<vmem>>, vector<1x1x512xf32>
    %8 = vector.shape_cast %7 : vector<1x1x512xf32> to vector<1x512xf32>
    %c0_10 = arith.constant 0 : index
    %c0_11 = arith.constant 0 : index
    %c2048 = arith.constant 2048 : index
    %9 = vector.load %arg3[%c0_10, %c0_11, %c2048] : memref<1x1x2304xf32, #tpu.memory_space<vmem>>, vector<1x1x128xf32>
    %10 = vector.shape_cast %9 : vector<1x1x128xf32> to vector<1x128xf32>
    %11 = arith.truncf %0 : vector<128x512xf32> to vector<128x512xbf16>
    %c0_12 = arith.constant 0 : index
    %c0_13 = arith.constant 0 : index
    %12 = vector.load %arg2[%c0_12, %c0_13] : memref<512x512xbf16, #tpu.memory_space<vmem>>, vector<512x512xbf16>
    %cst = arith.constant dense<0.000000e+00> : vector<128x512xf32>
    %13 = tpu.matmul %11, %12, %cst {dimension_numbers = #tpu.dot_dimension_numbers<[1], [0], [0], [1], [0, 0, 1, 1], [], []>} : vector<128x512xbf16>, vector<512x512xbf16>, vector<128x512xf32> -> vector<128x512xf32>
    %14 = vector.broadcast %2 : vector<1x512xf32> to vector<128x512xf32>
    %15 = arith.addf %13, %14 : vector<128x512xf32>
    %cst_14 = arith.constant 0.000000e+00 : f32
    %16 = vector.broadcast %cst_14 : f32 to vector<128x512xf32>
    %17 = arith.maximumf %15, %16 : vector<128x512xf32>
    %cst_15 = arith.constant dense<0.000000e+00> : vector<512xf32>
    %18 = vector.multi_reduction <add>, %17, %cst_15 [0] : vector<128x512xf32> to vector<512xf32>
    %19 = vector.shape_cast %18 : vector<512xf32> to vector<1x512xf32>
    %cst_16 = arith.constant 7.812500e-03 : f32
    %20 = vector.broadcast %cst_16 : f32 to vector<1x512xf32>
    %21 = arith.mulf %19, %20 : vector<1x512xf32>
    %22 = arith.mulf %17, %17 : vector<128x512xf32>
    %cst_17 = arith.constant dense<0.000000e+00> : vector<512xf32>
    %23 = vector.multi_reduction <add>, %22, %cst_17 [0] : vector<128x512xf32> to vector<512xf32>
    %24 = vector.shape_cast %23 : vector<512xf32> to vector<1x512xf32>
    %cst_18 = arith.constant 7.812500e-03 : f32
    %25 = vector.broadcast %cst_18 : f32 to vector<1x512xf32>
    %26 = arith.mulf %24, %25 : vector<1x512xf32>
    %27 = arith.mulf %21, %21 : vector<1x512xf32>
    %28 = arith.subf %26, %27 : vector<1x512xf32>
    %29 = vector.broadcast %21 : vector<1x512xf32> to vector<128x512xf32>
    %30 = arith.subf %17, %29 : vector<128x512xf32>
    %cst_19 = arith.constant 9.99999974E-6 : f32
    %31 = vector.broadcast %cst_19 : f32 to vector<1x512xf32>
    %32 = arith.addf %28, %31 : vector<1x512xf32>
    %33 = math.rsqrt %32 : vector<1x512xf32>
    %34 = vector.broadcast %33 : vector<1x512xf32> to vector<128x512xf32>
    %35 = arith.mulf %30, %34 : vector<128x512xf32>
    %36 = vector.broadcast %4 : vector<1x512xf32> to vector<128x512xf32>
    %37 = arith.mulf %35, %36 : vector<128x512xf32>
    %38 = vector.broadcast %6 : vector<1x512xf32> to vector<128x512xf32>
    %39 = arith.addf %37, %38 : vector<128x512xf32>
    %40 = arith.truncf %39 : vector<128x512xf32> to vector<128x512xbf16>
    %c0_20 = arith.constant 0 : index
    %c0_21 = arith.constant 0 : index
    %c0_22 = arith.constant 0 : index
    %41 = vector.load %arg4[%c0_20, %c0_21, %c0_22] : memref<1x512x512xbf16, #tpu.memory_space<vmem>>, vector<1x512x512xbf16>
    %42 = vector.shape_cast %41 : vector<1x512x512xbf16> to vector<512x512xbf16>
    %cst_23 = arith.constant dense<0.000000e+00> : vector<128x512xf32>
    %43 = tpu.matmul %40, %42, %cst_23 {dimension_numbers = #tpu.dot_dimension_numbers<[1], [0], [0], [1], [0, 0, 1, 1], [], []>} : vector<128x512xbf16>, vector<512x512xbf16>, vector<128x512xf32> -> vector<128x512xf32>
    %44 = vector.broadcast %8 : vector<1x512xf32> to vector<128x512xf32>
    %45 = arith.addf %43, %44 : vector<128x512xf32>
    %cst_24 = arith.constant 0.000000e+00 : f32
    %46 = vector.broadcast %cst_24 : f32 to vector<128x512xf32>
    %47 = arith.maximumf %45, %46 : vector<128x512xf32>
    %48 = arith.truncf %47 : vector<128x512xf32> to vector<128x512xbf16>
    %c0_25 = arith.constant 0 : index
    %c0_26 = arith.constant 0 : index
    %c0_27 = arith.constant 0 : index
    %49 = vector.load %arg5[%c0_25, %c0_26, %c0_27] : memref<1x512x128xbf16, #tpu.memory_space<vmem>>, vector<1x512x128xbf16>
    %50 = vector.shape_cast %49 : vector<1x512x128xbf16> to vector<512x128xbf16>
    %cst_28 = arith.constant dense<0.000000e+00> : vector<128x128xf32>
    %51 = tpu.matmul %48, %50, %cst_28 {dimension_numbers = #tpu.dot_dimension_numbers<[1], [0], [0], [1], [0, 0, 1, 1], [], []>} : vector<128x512xbf16>, vector<512x128xbf16>, vector<128x128xf32> -> vector<128x128xf32>
    %52 = vector.broadcast %10 : vector<1x128xf32> to vector<128x128xf32>
    %53 = arith.addf %51, %52 : vector<128x128xf32>
    %c0_29 = arith.constant 0 : index
    %c0_30 = arith.constant 0 : index
    %54 = vector.load %arg6[%c0_29, %c0_30] : memref<128x128xf32, #tpu.memory_space<vmem>>, vector<128x128xf32>
    tpu.vector_store %arg6[%c0_29, %c0_30], %53 {strides = array<i32>} : memref<128x128xf32, #tpu.memory_space<vmem>>, vector<128x128xf32>,
    return
  }
  func.func @transform_0(%arg0: i32) -> (i32, i32) {
    %c0_i32 = arith.constant 0 : i32
    %c0_i32_0 = arith.constant 0 : i32
    %c0_i32_1 = arith.constant 0 : i32
    return %c0_i32, %c0_i32_0 : i32, i32
  }
  func.func @transform_1(%arg0: i32) -> (i32, i32) {
    %c0_i32 = arith.constant 0 : i32
    %c0_i32_0 = arith.constant 0 : i32
    return %c0_i32, %arg0 : i32, i32
  }
  func.func @transform_2(%arg0: i32) -> (i32, i32, i32) {
    %c0_i32 = arith.constant 0 : i32
    %c0_i32_0 = arith.constant 0 : i32
    %c0_i32_1 = arith.constant 0 : i32
    return %arg0, %c0_i32, %c0_i32_0 : i32, i32, i32
  }
  func.func @transform_3(%arg0: i32) -> (i32, i32, i32) {
    %c0_i32 = arith.constant 0 : i32
    %c0_i32_0 = arith.constant 0 : i32
    %c0_i32_1 = arith.constant 0 : i32
    return %arg0, %c0_i32, %c0_i32_0 : i32, i32, i32
  }
  func.func @transform_4(%arg0: i32) -> (i32, i32, i32) {
    %c0_i32 = arith.constant 0 : i32
    %c0_i32_0 = arith.constant 0 : i32
    %c0_i32_1 = arith.constant 0 : i32
    return %arg0, %c0_i32, %c0_i32_0 : i32, i32, i32
  }
  func.func @transform_5(%arg0: i32) -> (i32, i32) {
    %c0_i32 = arith.constant 0 : i32
    %c0_i32_0 = arith.constant 0 : i32
    return %c0_i32, %arg0 : i32, i32
  }
}

</mosaic_0001>

<llo_original>
// kernel: fan_encoder_feature_embed.1
$region0: #{fan_encoder_feature_embed.1}
  #allocation0 [shape = 'u32[]', space=smem, size = 0x4, offset = 0x4, fixed_abs, tag = 'smem constant byte address 0x4 - core index']
  #allocation1 [shape = 'u32[144,128]{1,0:T(1,128)}', space=vmem, size = 0x12000, scoped, tag = 'internal scratch']
  %s0 = inlined_call_operand.hbm [shape: f32[128,512], index: 0, kind: input, shape index: {}]
  %s1 = inlined_call_operand.hbm [shape: bf16[512,1536], index: 1, kind: input, shape index: {}]
  %s2 = inlined_call_operand.hbm [shape: f32[3,1,2176], index: 2, kind: input, shape index: {}]
  %s3 = inlined_call_operand.hbm [shape: bf16[3,512,512], index: 3, kind: input, shape index: {}]
  %s4 = inlined_call_operand.hbm [shape: bf16[3,512,128], index: 4, kind: input, shape index: {}]
  %s5 = inlined_call_operand.vmem [shape: f32[128,384], index: 5, kind: output, shape index: {}]
  %s6 = sld [smem:[#allocation0]]
  $region107: #{fan_encoder_feature_embed.1} parent=0
    _
  %s8 = ssub.s32 1, %s6
  %s9 = scalar_select 0, %s8, %s6
  $region1: #{fan_encoder_feature_embed.1} parent=0
    #allocation2 [shape = 'u8[262144]{0}', space=vmem, size = 0x40000, scoped, tag = 'input window, operand 0, single buffered']
    #allocation3 [shape = 's32[2]{0}', space=sflag, size = 0x8, scoped, tag = 'scoped memory for fan_encoder_feature_embed.1']
    #allocation4 [shape = 'u8[1048576]{0}', space=vmem, size = 0x100000, scoped, tag = 'input window, operand 1']
    #allocation5 [shape = 's32[2]{0}', space=sflag, size = 0x8, scoped, tag = 'scoped memory for fan_encoder_feature_embed.1']
    #allocation6 [shape = 'u8[18432]{0}', space=vmem, size = 0x4800, scoped, tag = 'input window, operand 2']
    #allocation7 [shape = 'u8[1048576]{0}', space=vmem, size = 0x100000, scoped, tag = 'input window, operand 3']
    #allocation8 [shape = 's32[2]{0}', space=sflag, size = 0x8, scoped, tag = 'scoped memory for fan_encoder_feature_embed.1']
    #allocation9 [shape = 'u8[262144]{0}', space=vmem, size = 0x40000, scoped, tag = 'input window, operand 4']
    #allocation10 [shape = 'u8[131072]{0}', space=vmem, size = 0x20000, scoped, tag = 'output window, operand 0']
    %10 = vsyncpa [#allocation3], 0
    %11 = vsyncpa [#allocation5], 0
    %s12 = scalar_lea.sflag [#allocation5], 1
    %13 = vsyncpa %s12, 0
    %14 = vsyncpa [#allocation8], 0
    %s15 = scalar_lea.sflag [#allocation8], 1
    %16 = vsyncpa %s15, 0
    loop: start=0, step=1, limit=5
    $region2: #{fan_encoder_feature_embed.1} parent=1 // loop_pre_header
      _
    $region3: #{fan_encoder_feature_embed.1} parent=1 // loop_header
      %s18 = sphi 0, %s22
      %p19 = scmp.ge.s32.totalorder %s18, 5
      %s26 = sphi 0, %s26
      %s28 = sphi 0, %s26
      %s29 = sphi 0, %s28
      %s43 = sphi 0, %s29
      %s49 = sphi 0, %s51
      %s52 = sphi 0, %s49
      %s53 = sphi 0, %s52
      %s69 = sphi 0, %s53
      %s75 = sphi 0, %s77
      %s78 = sphi 0, %s75
      %s79 = sphi 0, %s78
      %s95 = sphi 0, %s79
      %s101 = sphi 0, %s103
      %s104 = sphi 0, %s101
      %s105 = sphi 0, %s104
      %s121 = sphi 0, %s105
      %s127 = sphi 0, %s129
      %s130 = sphi 0, %s127
      %s131 = sphi 0, %s130
      %s147 = sphi 0, %s131
      %s153 = sphi 0, %s155
      %s156 = sphi 0, %s153
      %s157 = sphi 0, %s156
      %s173 = sphi 0, %s157
    $region4: #{fan_encoder_feature_embed.1} parent=1 // loop_header_branch
      %21 = sbr.rel (%p19) target = $region8
    $region5: #{fan_encoder_feature_embed.1} parent=1 // loop_body
      %s23 = ssub.s32 %s18, 1
      %s24 = ssub.s32 %s18, 2
      %s25 = sadd.s32 %s18, 1
      %s27 = sadd.s32 %s26, 1
      %p30 = scmp.eq.s32.totalorder %s18, 2
      %p31 = scmp.ne.s32.totalorder %s26, %s28
      %p32 = scmp.eq.s32.totalorder %s18, 0
      %p33 = por %p31, %p32
      %p34 = scmp.ne.s32.totalorder %s26, %s28
      %p35 = scmp.eq.s32.totalorder %s23, 2
      %p36 = por %p34, %p35
      %p37 = scmp.ne.s32.totalorder %s28, %s29
      %p38 = scmp.eq.s32.totalorder %s23, 0
      %p39 = por %p37, %p38
      %p40 = scmp.ne.s32.totalorder %s28, %s29
      %p41 = scmp.eq.s32.totalorder %s24, 2
      %p42 = por %p40, %p41
      %p44 = scmp.ne.s32.totalorder %s29, %s43
      %p45 = scmp.eq.s32.totalorder %s24, 0
      %p46 = por %p44, %p45
      %s47 = ssub.s32 %s18, %s25
      %p48 = scmp.eq.s32.totalorder %s47, 0
      %s50 = sadd.s32 %s49, 1
      %s51 = scalar_select %p48, %s49, %s50
      %p54 = pneg %p48
      %p55 = scmp.eq.s32.totalorder %s18, 2
      %p56 = por %p54, %p55
      %p57 = scmp.ne.s32.totalorder %s49, %s52
      %p58 = scmp.eq.s32.totalorder %s18, 0
      %p59 = por %p57, %p58
      %p60 = scmp.ne.s32.totalorder %s49, %s52
      %p61 = scmp.eq.s32.totalorder %s23, 2
      %p62 = por %p60, %p61
      %p63 = scmp.ne.s32.totalorder %s52, %s53
      %p64 = scmp.eq.s32.totalorder %s23, 0
      %p65 = por %p63, %p64
      %p66 = scmp.ne.s32.totalorder %s52, %s53
      %p67 = scmp.eq.s32.totalorder %s24, 2
      %p68 = por %p66, %p67
      %p70 = scmp.ne.s32.totalorder %s53, %s69
      %p71 = scmp.eq.s32.totalorder %s24, 0
      %p72 = por %p70, %p71
      %s73 = ssub.s32 %s18, %s25
      %p74 = scmp.eq.s32.totalorder %s73, 0
      %s76 = sadd.s32 %s75, 1
      %s77 = scalar_select %p74, %s75, %s76
      %p80 = pneg %p74
      %p81 = scmp.eq.s32.totalorder %s18, 2
      %p82 = por %p80, %p81
      %p83 = scmp.ne.s32.totalorder %s75, %s78
      %p84 = scmp.eq.s32.totalorder %s18, 0
      %p85 = por %p83, %p84
      %p86 = scmp.ne.s32.totalorder %s75, %s78
      %p87 = scmp.eq.s32.totalorder %s23, 2
      %p88 = por %p86, %p87
      %p89 = scmp.ne.s32.totalorder %s78, %s79
      %p90 = scmp.eq.s32.totalorder %s23, 0
      %p91 = por %p89, %p90
      %p92 = scmp.ne.s32.totalorder %s78, %s79
      %p93 = scmp.eq.s32.totalorder %s24, 2
      %p94 = por %p92, %p93
      %p96 = scmp.ne.s32.totalorder %s79, %s95
      %p97 = scmp.eq.s32.totalorder %s24, 0
      %p98 = por %p96, %p97
      %s99 = ssub.s32 %s18, %s25
      %p100 = scmp.eq.s32.totalorder %s99, 0
      %s102 = sadd.s32 %s101, 1
      %s103 = scalar_select %p100, %s101, %s102
      %p106 = pneg %p100
      %p107 = scmp.eq.s32.totalorder %s18, 2
      %p108 = por %p106, %p107
      %p109 = scmp.ne.s32.totalorder %s101, %s104
      %p110 = scmp.eq.s32.totalorder %s18, 0
      %p111 = por %p109, %p110
      %p112 = scmp.ne.s32.totalorder %s101, %s104
      %p113 = scmp.eq.s32.totalorder %s23, 2
      %p114 = por %p112, %p113
      %p115 = scmp.ne.s32.totalorder %s104, %s105
      %p116 = scmp.eq.s32.totalorder %s23, 0
      %p117 = por %p115, %p116
      %p118 = scmp.ne.s32.totalorder %s104, %s105
      %p119 = scmp.eq.s32.totalorder %s24, 2
      %p120 = por %p118, %p119
      %p122 = scmp.ne.s32.totalorder %s105, %s121
      %p123 = scmp.eq.s32.totalorder %s24, 0
      %p124 = por %p122, %p123
      %s125 = ssub.s32 %s18, %s25
      %p126 = scmp.eq.s32.totalorder %s125, 0
      %s128 = sadd.s32 %s127, 1
      %s129 = scalar_select %p126, %s127, %s128
      %p132 = pneg %p126
      %p133 = scmp.eq.s32.totalorder %s18, 2
      %p134 = por %p132, %p133
      %p135 = scmp.ne.s32.totalorder %s127, %s130
      %p136 = scmp.eq.s32.totalorder %s18, 0
      %p137 = por %p135, %p136
      %p138 = scmp.ne.s32.totalorder %s127, %s130
      %p139 = scmp.eq.s32.totalorder %s23, 2
      %p140 = por %p138, %p139
      %p141 = scmp.ne.s32.totalorder %s130, %s131
      %p142 = scmp.eq.s32.totalorder %s23, 0
      %p143 = por %p141, %p142
      %p144 = scmp.ne.s32.totalorder %s130, %s131
      %p145 = scmp.eq.s32.totalorder %s24, 2
      %p146 = por %p144, %p145
      %p148 = scmp.ne.s32.totalorder %s131, %s147
      %p149 = scmp.eq.s32.totalorder %s24, 0
      %p150 = por %p148, %p149
      %s151 = ssub.s32 %s18, %s25
      %p152 = scmp.eq.s32.totalorder %s151, 0
      %s154 = sadd.s32 %s153, 1
      %s155 = scalar_select %p152, %s153, %s154
      %p158 = pneg %p152
      %p159 = scmp.eq.s32.totalorder %s18, 2
      %p160 = por %p158, %p159
      %p161 = scmp.ne.s32.totalorder %s153, %s156
      %p162 = scmp.eq.s32.totalorder %s18, 0
      %p163 = por %p161, %p162
      %p164 = scmp.ne.s32.totalorder %s153, %s156
      %p165 = scmp.eq.s32.totalorder %s23, 2
      %p166 = por %p164, %p165
      %p167 = scmp.ne.s32.totalorder %s156, %s157
      %p168 = scmp.eq.s32.totalorder %s23, 0
      %p169 = por %p167, %p168
      %p170 = scmp.ne.s32.totalorder %s156, %s157
      %p171 = scmp.eq.s32.totalorder %s24, 2
      %p172 = por %p170, %p171
      %p174 = scmp.ne.s32.totalorder %s157, %s173
      %p175 = scmp.eq.s32.totalorder %s24, 0
      %p176 = por %p174, %p175
      %p177 = scmp.le.s32.totalorder 1, %s18
      %p178 = scmp.lt.s32.totalorder %s18, 4
      %p179 = pnand %p177, %p178
      %p180 = pneg %p179
      // Predicated region
      $region9: #{fan_encoder_feature_embed.1} parent=5 // pred_check
        _
      $region10: #{fan_encoder_feature_embed.1} parent=5 // pred_check_branch
        %182 = sbr.rel (%p179) target = $region12
      $region11: #{fan_encoder_feature_embed.1} parent=5 // pred_region
        %s183 = ssub.s32 %s18, 1
        // Predicated region
        $region13: #{fan_encoder_feature_embed.1} parent=11 // pred_check
          %p184 = pneg %p39
        $region14: #{fan_encoder_feature_embed.1} parent=11 // pred_check_branch
          %186 = sbr.rel (%p184) target = $region16
        $region15: #{fan_encoder_feature_embed.1} parent=11 // pred_region
          %s188 = ssub.s32 8192, 8192
          %189 = vsyncadd [#allocation3], %s188
          %s190 = sshll.u32 [#allocation2], 4
          %s191 = int_to_ptr.vmem [resolvable:$true] %s190
          %196 = dma.hbm_to_vmem [thread:$0]  %s0, 8192, %s191, [#allocation3], 512, 512, 32
        $region16: #{fan_encoder_feature_embed.1} parent=11 // pred_fallthru
          _
      $region12: #{fan_encoder_feature_embed.1} parent=5 // pred_fallthru
        _
      %p197 = scmp.lt.s32.totalorder %s18, 3
      // Predicated region
      $region17: #{fan_encoder_feature_embed.1} parent=5 // pred_check
        %p198 = pneg %p197
      $region18: #{fan_encoder_feature_embed.1} parent=5 // pred_check_branch
        %200 = sbr.rel (%p198) target = $region20
      $region19: #{fan_encoder_feature_embed.1} parent=5 // pred_region
        // Predicated region
        $region21: #{fan_encoder_feature_embed.1} parent=19 // pred_check
          %p201 = pneg %p59
        $region22: #{fan_encoder_feature_embed.1} parent=19 // pred_check_branch
          %203 = sbr.rel (%p201) target = $region24
        $region23: #{fan_encoder_feature_embed.1} parent=19 // pred_region
          %s204 = sand.u32 %s18, 1
          %s205 = scalar_lea.sflag [#allocation5], %s204
          %s206 = sand.u32 %s49, 1
          %s207 = smul.addr %s206, 1024
          %s208 = scalar_lea.vmem [#allocation4], %s207
          %s209 = smul.u32 4, %s18
          %s211 = ssub.s32 16384, 16384
          %212 = vsyncadd %s205, %s211
          %s213 = smul.addr %s209, 64
          %s214 = scalar_lea.hbm %s1, %s213
          %s215 = sshll.u32 %s208, 4
          %s216 = int_to_ptr.vmem [resolvable:$true] %s215
          %221 = dma.hbm_to_vmem [thread:$0]  %s214, 16384, %s216, %s205, 768, 256, 16
        $region24: #{fan_encoder_feature_embed.1} parent=19 // pred_fallthru
          _
        // Predicated region
        $region25: #{fan_encoder_feature_embed.1} parent=19 // pred_check
          %p222 = pneg %p85
        $region26: #{fan_encoder_feature_embed.1} parent=19 // pred_check_branch
          %224 = sbr.rel (%p222) target = $region28
        $region27: #{fan_encoder_feature_embed.1} parent=19 // pred_region
          %s225 = sand.u32 %s18, 1
          %s226 = scalar_lea.sflag [#allocation5], %s225
          %s227 = sand.u32 %s75, 1
          %s228 = smul.addr %s227, 18
          %s229 = scalar_lea.vmem [#allocation6], %s228
          %s231 = ssub.s32 288, 272
          %232 = vsyncadd %s226, %s231
          %s233 = smul.addr %s18, 17
          %s234 = smul.addr %s233, 16
          %s235 = scalar_lea.hbm %s2, %s234
          %s237 = sshll.u32 %s229, 4
          %s238 = int_to_ptr.vmem [resolvable:$true] %s237
          %240 = dma.hbm_to_vmem [thread:$0]  %s235, 272, %s238, %s226
        $region28: #{fan_encoder_feature_embed.1} parent=19 // pred_fallthru
          _
        // Predicated region
        $region29: #{fan_encoder_feature_embed.1} parent=19 // pred_check
          %p241 = pneg %p111
        $region30: #{fan_encoder_feature_embed.1} parent=19 // pred_check_branch
          %243 = sbr.rel (%p241) target = $region32
        $region31: #{fan_encoder_feature_embed.1} parent=19 // pred_region
          %s244 = sand.u32 %s18, 1
          %s245 = scalar_lea.sflag [#allocation8], %s244
          %s246 = sand.u32 %s101, 1
          %s247 = smul.addr %s246, 1024
          %s248 = scalar_lea.vmem [#allocation7], %s247
          %s250 = ssub.s32 16384, 16384
          %251 = vsyncadd %s245, %s250
          %s252 = smul.addr %s18, 256
          %s253 = smul.addr %s252, 64
          %s254 = scalar_lea.hbm %s3, %s253
          %s255 = sshll.u32 %s248, 4
          %s256 = int_to_ptr.vmem [resolvable:$true] %s255
          %261 = dma.hbm_to_vmem [thread:$0]  %s254, 16384, %s256, %s245, 256, 256, 16
        $region32: #{fan_encoder_feature_embed.1} parent=19 // pred_fallthru
          _
        // Predicated region
        $region33: #{fan_encoder_feature_embed.1} parent=19 // pred_check
          %p262 = pneg %p137
        $region34: #{fan_encoder_feature_embed.1} parent=19 // pred_check_branch
          %264 = sbr.rel (%p262) target = $region36
        $region35: #{fan_encoder_feature_embed.1} parent=19 // pred_region
          %s265 = sand.u32 %s18, 1
          %s266 = scalar_lea.sflag [#allocation8], %s265
          %s267 = sand.u32 %s127, 1
          %s268 = smul.addr %s267, 256
          %s269 = scalar_lea.vmem [#allocation9], %s268
          %s271 = ssub.s32 4096, 4096
          %272 = vsyncadd %s266, %s271
          %s273 = smul.addr %s18, 64
          %s274 = smul.addr %s273, 64
          %s275 = scalar_lea.hbm %s4, %s274
          %s276 = sshll.u32 %s269, 4
          %s277 = int_to_ptr.vmem [resolvable:$true] %s276
          %282 = dma.hbm_to_vmem [thread:$0]  %s275, 4096, %s277, %s266, 64, 64, 4
        $region36: #{fan_encoder_feature_embed.1} parent=19 // pred_fallthru
          _
      $region20: #{fan_encoder_feature_embed.1} parent=5 // pred_fallthru
        _
      %p283 = scmp.le.s32.totalorder 1, %s18
      %p284 = scmp.lt.s32.totalorder %s18, 4
      %p285 = pnand %p283, %p284
      %p286 = pneg %p285
      // Predicated region
      $region37: #{fan_encoder_feature_embed.1} parent=5 // pred_check
        _
      $region38: #{fan_encoder_feature_embed.1} parent=5 // pred_check_branch
        %288 = sbr.rel (%p285) target = $region40
      $region39: #{fan_encoder_feature_embed.1} parent=5 // pred_region
        %s289 = ssub.s32 %s18, 1
        // Predicated region
        $region41: #{fan_encoder_feature_embed.1} parent=39 // pred_check
          %p290 = pneg %p39
        $region42: #{fan_encoder_feature_embed.1} parent=39 // pred_check_branch
          %292 = sbr.rel (%p290) target = $region44
        $region43: #{fan_encoder_feature_embed.1} parent=39 // pred_region
          %293 = dma.done [#allocation3], 8192
        $region44: #{fan_encoder_feature_embed.1} parent=39 // pred_fallthru
          _
        %s294 = sand.u32 %s23, 1
        %s295 = scalar_lea.sflag [#allocation5], %s294
        %s296 = sand.u32 %s52, 1
        %s297 = smul.addr %s296, 1024
        %s298 = scalar_lea.vmem [#allocation4], %s297
        // Predicated region
        $region45: #{fan_encoder_feature_embed.1} parent=39 // pred_check
          %p299 = pneg %p65
        $region46: #{fan_encoder_feature_embed.1} parent=39 // pred_check_branch
          %301 = sbr.rel (%p299) target = $region48
        $region47: #{fan_encoder_feature_embed.1} parent=39 // pred_region
          %302 = dma.done %s295, 16384
        $region48: #{fan_encoder_feature_embed.1} parent=39 // pred_fallthru
          _
        %s303 = sand.u32 %s23, 1
        %s304 = scalar_lea.sflag [#allocation5], %s303
        %s305 = sand.u32 %s78, 1
        %s306 = smul.addr %s305, 18
        %s307 = scalar_lea.vmem [#allocation6], %s306
        // Predicated region
        $region49: #{fan_encoder_feature_embed.1} parent=39 // pred_check
          %p308 = pneg %p91
        $region50: #{fan_encoder_feature_embed.1} parent=39 // pred_check_branch
          %310 = sbr.rel (%p308) target = $region52
        $region51: #{fan_encoder_feature_embed.1} parent=39 // pred_region
          %311 = dma.done %s304, 288
        $region52: #{fan_encoder_feature_embed.1} parent=39 // pred_fallthru
          _
        %s312 = sand.u32 %s23, 1
        %s313 = scalar_lea.sflag [#allocation8], %s312
        %s314 = sand.u32 %s104, 1
        %s315 = smul.addr %s314, 1024
        %s316 = scalar_lea.vmem [#allocation7], %s315
        // Predicated region
        $region53: #{fan_encoder_feature_embed.1} parent=39 // pred_check
          %p317 = pneg %p117
        $region54: #{fan_encoder_feature_embed.1} parent=39 // pred_check_branch
          %319 = sbr.rel (%p317) target = $region56
        $region55: #{fan_encoder_feature_embed.1} parent=39 // pred_region
          %320 = dma.done %s313, 16384
        $region56: #{fan_encoder_feature_embed.1} parent=39 // pred_fallthru
          _
        %s321 = sand.u32 %s23, 1
        %s322 = scalar_lea.sflag [#allocation8], %s321
        %s323 = sand.u32 %s130, 1
        %s324 = smul.addr %s323, 256
        %s325 = scalar_lea.vmem [#allocation9], %s324
        // Predicated region
        $region57: #{fan_encoder_feature_embed.1} parent=39 // pred_check
          %p326 = pneg %p143
        $region58: #{fan_encoder_feature_embed.1} parent=39 // pred_check_branch
          %328 = sbr.rel (%p326) target = $region60
        $region59: #{fan_encoder_feature_embed.1} parent=39 // pred_region
          %329 = dma.done %s322, 4096
        $region60: #{fan_encoder_feature_embed.1} parent=39 // pred_fallthru
          _
        %p330 = pneg %p39
        %p331 = pneg %p36
        %s332 = sand.u32 %s23, 1
        %s333 = scalar_lea.sflag [#allocation5], %s332
        %s334 = sand.u32 %s52, 1
        %s335 = smul.addr %s334, 1024
        %s336 = scalar_lea.vmem [#allocation4], %s335
        %p337 = pneg %p65
        %p338 = pneg %p62
        %s339 = sand.u32 %s23, 1
        %s340 = scalar_lea.sflag [#allocation5], %s339
        %s341 = sand.u32 %s78, 1
        %s342 = smul.addr %s341, 18
        %s343 = scalar_lea.vmem [#allocation6], %s342
        %p344 = pneg %p91
        %p345 = pneg %p88
        %s346 = sand.u32 %s23, 1
        %s347 = scalar_lea.sflag [#allocation8], %s346
        %s348 = sand.u32 %s104, 1
        %s349 = smul.addr %s348, 1024
        %s350 = scalar_lea.vmem [#allocation7], %s349
        %p351 = pneg %p117
        %p352 = pneg %p114
        %s353 = sand.u32 %s23, 1
        %s354 = scalar_lea.sflag [#allocation8], %s353
        %s355 = sand.u32 %s130, 1
        %s356 = smul.addr %s355, 256
        %s357 = scalar_lea.vmem [#allocation9], %s356
        %p358 = pneg %p143
        %p359 = pneg %p140
        %p360 = pneg %p169
        %p361 = pneg %p166
        %s362 = sand.u32 %s156, 1
        %s363 = sand.u32 %s156, 1
        %s364 = smul.addr %s363, 128
        %s365 = scalar_lea.vmem [#allocation10], %s364
        %s366 = smul.u32 4, %s23
        %v368 = vld [vmem:[#allocation2] sm:$0xff]
        %v369 = vld [vmem:[#allocation2 + $0x8] sm:$0xff]
        %v370 = vld [vmem:[#allocation2 + $0x10] sm:$0xff]
        %v371 = vld [vmem:[#allocation2 + $0x18] sm:$0xff]
        %v372 = vld [vmem:[#allocation2 + $0x20] sm:$0xff]
        %v373 = vld [vmem:[#allocation2 + $0x28] sm:$0xff]
        %v374 = vld [vmem:[#allocation2 + $0x30] sm:$0xff]
        %v375 = vld [vmem:[#allocation2 + $0x38] sm:$0xff]
        %v376 = vld [vmem:[#allocation2 + $0x40] sm:$0xff]
        %v377 = vld [vmem:[#allocation2 + $0x48] sm:$0xff]
        %v378 = vld [vmem:[#allocation2 + $0x50] sm:$0xff]
        %v379 = vld [vmem:[#allocation2 + $0x58] sm:$0xff]
        %v380 = vld [vmem:[#allocation2 + $0x60] sm:$0xff]
        %v381 = vld [vmem:[#allocation2 + $0x68] sm:$0xff]
        %v382 = vld [vmem:[#allocation2 + $0x70] sm:$0xff]
        %v383 = vld [vmem:[#allocation2 + $0x78] sm:$0xff]
        %v384 = vld [vmem:[#allocation2 + $0x80] sm:$0xff]
        %v385 = vld [vmem:[#allocation2 + $0x88] sm:$0xff]
        %v386 = vld [vmem:[#allocation2 + $0x90] sm:$0xff]
        %v387 = vld [vmem:[#allocation2 + $0x98] sm:$0xff]
        %v388 = vld [vmem:[#allocation2 + $0xa0] sm:$0xff]
        %v389 = vld [vmem:[#allocation2 + $0xa8] sm:$0xff]
        %v390 = vld [vmem:[#allocation2 + $0xb0] sm:$0xff]
        %v391 = vld [vmem:[#allocation2 + $0xb8] sm:$0xff]
        %v392 = vld [vmem:[#allocation2 + $0xc0] sm:$0xff]
        %v393 = vld [vmem:[#allocation2 + $0xc8] sm:$0xff]
        %v394 = vld [vmem:[#allocation2 + $0xd0] sm:$0xff]
        %v395 = vld [vmem:[#allocation2 + $0xd8] sm:$0xff]
        %v396 = vld [vmem:[#allocation2 + $0xe0] sm:$0xff]
        %v397 = vld [vmem:[#allocation2 + $0xe8] sm:$0xff]
        %v398 = vld [vmem:[#allocation2 + $0xf0] sm:$0xff]
        %v399 = vld [vmem:[#allocation2 + $0xf8] sm:$0xff]
        %v400 = vld [vmem:[#allocation2 + $0x100] sm:$0xff]
        %v401 = vld [vmem:[#allocation2 + $0x108] sm:$0xff]
        %v402 = vld [vmem:[#allocation2 + $0x110] sm:$0xff]
        %v403 = vld [vmem:[#allocation2 + $0x118] sm:$0xff]
        %v404 = vld [vmem:[#allocation2 + $0x120] sm:$0xff]
        %v405 = vld [vmem:[#allocation2 + $0x128] sm:$0xff]
        %v406 = vld [vmem:[#allocation2 + $0x130] sm:$0xff]
        %v407 = vld [vmem:[#allocation2 + $0x138] sm:$0xff]
        %v408 = vld [vmem:[#allocation2 + $0x140] sm:$0xff]
        %v409 = vld [vmem:[#allocation2 + $0x148] sm:$0xff]
        %v410 = vld [vmem:[#allocation2 + $0x150] sm:$0xff]
        %v411 = vld [vmem:[#allocation2 + $0x158] sm:$0xff]
        %v412 = vld [vmem:[#allocation2 + $0x160] sm:$0xff]
        %v413 = vld [vmem:[#allocation2 + $0x168] sm:$0xff]
        %v414 = vld [vmem:[#allocation2 + $0x170] sm:$0xff]
        %v415 = vld [vmem:[#allocation2 + $0x178] sm:$0xff]
        %v416 = vld [vmem:[#allocation2 + $0x180] sm:$0xff]
        %v417 = vld [vmem:[#allocation2 + $0x188] sm:$0xff]
        %v418 = vld [vmem:[#allocation2 + $0x190] sm:$0xff]
        %v419 = vld [vmem:[#allocation2 + $0x198] sm:$0xff]
        %v420 = vld [vmem:[#allocation2 + $0x1a0] sm:$0xff]
        %v421 = vld [vmem:[#allocation2 + $0x1a8] sm:$0xff]
        %v422 = vld [vmem:[#allocation2 + $0x1b0] sm:$0xff]
        %v423 = vld [vmem:[#allocation2 + $0x1b8] sm:$0xff]
        %v424 = vld [vmem:[#allocation2 + $0x1c0] sm:$0xff]
        %v425 = vld [vmem:[#allocation2 + $0x1c8] sm:$0xff]
        %v426 = vld [vmem:[#allocation2 + $0x1d0] sm:$0xff]
        %v427 = vld [vmem:[#allocation2 + $0x1d8] sm:$0xff]
        %v428 = vld [vmem:[#allocation2 + $0x1e0] sm:$0xff]
        %v429 = vld [vmem:[#allocation2 + $0x1e8] sm:$0xff]
        %v430 = vld [vmem:[#allocation2 + $0x1f0] sm:$0xff]
        %v431 = vld [vmem:[#allocation2 + $0x1f8] sm:$0xff]
        %v432 = vld [vmem:[%s307] sm:$0xf]
        %v433 = vld [vmem:[%s307 + $0x4] sm:$0xf]
        %v434 = vld [vmem:[%s307 + $0x8] sm:$0xf]
        %v435 = vld [vmem:[%s307 + $0xc] sm:$0xf]
        %v436 = vld [vmem:[%s307 + $0x10] sm:$0x1]
        %v437 = vpack.c.bf16 %v372, %v368
        %v438 = vpack.c.bf16 %v373, %v369
        %v439 = vpack.c.bf16 %v374, %v370
        %v440 = vpack.c.bf16 %v375, %v371
        %v441 = vpack.c.bf16 %v380, %v376
        %v442 = vpack.c.bf16 %v381, %v377
        %v443 = vpack.c.bf16 %v382, %v378
        %v444 = vpack.c.bf16 %v383, %v379
        %v445 = vpack.c.bf16 %v388, %v384
        %v446 = vpack.c.bf16 %v389, %v385
        %v447 = vpack.c.bf16 %v390, %v386
        %v448 = vpack.c.bf16 %v391, %v387
        %v449 = vpack.c.bf16 %v396, %v392
        %v450 = vpack.c.bf16 %v397, %v393
        %v451 = vpack.c.bf16 %v398, %v394
        %v452 = vpack.c.bf16 %v399, %v395
        %v453 = vpack.c.bf16 %v404, %v400
        %v454 = vpack.c.bf16 %v405, %v401
        %v455 = vpack.c.bf16 %v406, %v402
        %v456 = vpack.c.bf16 %v407, %v403
        %v457 = vpack.c.bf16 %v412, %v408
        %v458 = vpack.c.bf16 %v413, %v409
        %v459 = vpack.c.bf16 %v414, %v410
        %v460 = vpack.c.bf16 %v415, %v411
        %v461 = vpack.c.bf16 %v420, %v416
        %v462 = vpack.c.bf16 %v421, %v417
        %v463 = vpack.c.bf16 %v422, %v418
        %v464 = vpack.c.bf16 %v423, %v419
        %v465 = vpack.c.bf16 %v428, %v424
        %v466 = vpack.c.bf16 %v429, %v425
        %v467 = vpack.c.bf16 %v430, %v426
        %v468 = vpack.c.bf16 %v431, %v427
        %v469 = vld [vmem:[%s298] sm:$0xff]
        %v470 = vld [vmem:[%s298 + $0x8] sm:$0xff]
        %v471 = vld [vmem:[%s298 + $0x10] sm:$0xff]
        %v472 = vld [vmem:[%s298 + $0x18] sm:$0xff]
        %v473 = vld [vmem:[%s298 + $0x20] sm:$0xff]
        %v474 = vld [vmem:[%s298 + $0x28] sm:$0xff]
        %v475 = vld [vmem:[%s298 + $0x30] sm:$0xff]
        %v476 = vld [vmem:[%s298 + $0x38] sm:$0xff]
        %v477 = vld [vmem:[%s298 + $0x40] sm:$0xff]
        %v478 = vld [vmem:[%s298 + $0x48] sm:$0xff]
        %v479 = vld [vmem:[%s298 + $0x50] sm:$0xff]
        %v480 = vld [vmem:[%s298 + $0x58] sm:$0xff]
        %v481 = vld [vmem:[%s298 + $0x60] sm:$0xff]
        %v482 = vld [vmem:[%s298 + $0x68] sm:$0xff]
        %v483 = vld [vmem:[%s298 + $0x70] sm:$0xff]
        %v484 = vld [vmem:[%s298 + $0x78] sm:$0xff]
        %v485 = vld [vmem:[%s298 + $0x80] sm:$0xff]
        %v486 = vld [vmem:[%s298 + $0x88] sm:$0xff]
        %v487 = vld [vmem:[%s298 + $0x90] sm:$0xff]
        %v488 = vld [vmem:[%s298 + $0x98] sm:$0xff]
        %v489 = vld [vmem:[%s298 + $0xa0] sm:$0xff]
        %v490 = vld [vmem:[%s298 + $0xa8] sm:$0xff]
        %v491 = vld [vmem:[%s298 + $0xb0] sm:$0xff]
        %v492 = vld [vmem:[%s298 + $0xb8] sm:$0xff]
        %v493 = vld [vmem:[%s298 + $0xc0] sm:$0xff]
        %v494 = vld [vmem:[%s298 + $0xc8] sm:$0xff]
        %v495 = vld [vmem:[%s298 + $0xd0] sm:$0xff]
        %v496 = vld [vmem:[%s298 + $0xd8] sm:$0xff]
        %v497 = vld [vmem:[%s298 + $0xe0] sm:$0xff]
        %v498 = vld [vmem:[%s298 + $0xe8] sm:$0xff]
        %v499 = vld [vmem:[%s298 + $0xf0] sm:$0xff]
        %v500 = vld [vmem:[%s298 + $0xf8] sm:$0xff]
        %v501 = vld [vmem:[%s298 + $0x100] sm:$0xff]
        %v502 = vld [vmem:[%s298 + $0x108] sm:$0xff]
        %v503 = vld [vmem:[%s298 + $0x110] sm:$0xff]
        %v504 = vld [vmem:[%s298 + $0x118] sm:$0xff]
        %v505 = vld [vmem:[%s298 + $0x120] sm:$0xff]
        %v506 = vld [vmem:[%s298 + $0x128] sm:$0xff]
        %v507 = vld [vmem:[%s298 + $0x130] sm:$0xff]
        %v508 = vld [vmem:[%s298 + $0x138] sm:$0xff]
        %v509 = vld [vmem:[%s298 + $0x140] sm:$0xff]
        %v510 = vld [vmem:[%s298 + $0x148] sm:$0xff]
        %v511 = vld [vmem:[%s298 + $0x150] sm:$0xff]
        %v512 = vld [vmem:[%s298 + $0x158] sm:$0xff]
        %v513 = vld [vmem:[%s298 + $0x160] sm:$0xff]
        %v514 = vld [vmem:[%s298 + $0x168] sm:$0xff]
        %v515 = vld [vmem:[%s298 + $0x170] sm:$0xff]
        %v516 = vld [vmem:[%s298 + $0x178] sm:$0xff]
        %v517 = vld [vmem:[%s298 + $0x180] sm:$0xff]
        %v518 = vld [vmem:[%s298 + $0x188] sm:$0xff]
        %v519 = vld [vmem:[%s298 + $0x190] sm:$0xff]
        %v520 = vld [vmem:[%s298 + $0x198] sm:$0xff]
        %v521 = vld [vmem:[%s298 + $0x1a0] sm:$0xff]
        %v522 = vld [vmem:[%s298 + $0x1a8] sm:$0xff]
        %v523 = vld [vmem:[%s298 + $0x1b0] sm:$0xff]
        %v524 = vld [vmem:[%s298 + $0x1b8] sm:$0xff]
        %v525 = vld [vmem:[%s298 + $0x1c0] sm:$0xff]
        %v526 = vld [vmem:[%s298 + $0x1c8] sm:$0xff]
        %v527 = vld [vmem:[%s298 + $0x1d0] sm:$0xff]
        %v528 = vld [vmem:[%s298 + $0x1d8] sm:$0xff]
        %v529 = vld [vmem:[%s298 + $0x1e0] sm:$0xff]
        %v530 = vld [vmem:[%s298 + $0x1e8] sm:$0xff]
        %v531 = vld [vmem:[%s298 + $0x1f0] sm:$0xff]
        %v532 = vld [vmem:[%s298 + $0x1f8] sm:$0xff]
        %v533 = vld [vmem:[%s298 + $0x200] sm:$0xff]
        %v534 = vld [vmem:[%s298 + $0x208] sm:$0xff]
        %v535 = vld [vmem:[%s298 + $0x210] sm:$0xff]
        %v536 = vld [vmem:[%s298 + $0x218] sm:$0xff]
        %v537 = vld [vmem:[%s298 + $0x220] sm:$0xff]
        %v538 = vld [vmem:[%s298 + $0x228] sm:$0xff]
        %v539 = vld [vmem:[%s298 + $0x230] sm:$0xff]
        %v540 = vld [vmem:[%s298 + $0x238] sm:$0xff]
        %v541 = vld [vmem:[%s298 + $0x240] sm:$0xff]
        %v542 = vld [vmem:[%s298 + $0x248] sm:$0xff]
        %v543 = vld [vmem:[%s298 + $0x250] sm:$0xff]
        %v544 = vld [vmem:[%s298 + $0x258] sm:$0xff]
        %v545 = vld [vmem:[%s298 + $0x260] sm:$0xff]
        %v546 = vld [vmem:[%s298 + $0x268] sm:$0xff]
        %v547 = vld [vmem:[%s298 + $0x270] sm:$0xff]
        %v548 = vld [vmem:[%s298 + $0x278] sm:$0xff]
        %v549 = vld [vmem:[%s298 + $0x280] sm:$0xff]
        %v550 = vld [vmem:[%s298 + $0x288] sm:$0xff]
        %v551 = vld [vmem:[%s298 + $0x290] sm:$0xff]
        %v552 = vld [vmem:[%s298 + $0x298] sm:$0xff]
        %v553 = vld [vmem:[%s298 + $0x2a0] sm:$0xff]
        %v554 = vld [vmem:[%s298 + $0x2a8] sm:$0xff]
        %v555 = vld [vmem:[%s298 + $0x2b0] sm:$0xff]
        %v556 = vld [vmem:[%s298 + $0x2b8] sm:$0xff]
        %v557 = vld [vmem:[%s298 + $0x2c0] sm:$0xff]
        %v558 = vld [vmem:[%s298 + $0x2c8] sm:$0xff]
        %v559 = vld [vmem:[%s298 + $0x2d0] sm:$0xff]
        %v560 = vld [vmem:[%s298 + $0x2d8] sm:$0xff]
        %v561 = vld [vmem:[%s298 + $0x2e0] sm:$0xff]
        %v562 = vld [vmem:[%s298 + $0x2e8] sm:$0xff]
        %v563 = vld [vmem:[%s298 + $0x2f0] sm:$0xff]
        %v564 = vld [vmem:[%s298 + $0x2f8] sm:$0xff]
        %v565 = vld [vmem:[%s298 + $0x300] sm:$0xff]
        %v566 = vld [vmem:[%s298 + $0x308] sm:$0xff]
        %v567 = vld [vmem:[%s298 + $0x310] sm:$0xff]
        %v568 = vld [vmem:[%s298 + $0x318] sm:$0xff]
        %v569 = vld [vmem:[%s298 + $0x320] sm:$0xff]
        %v570 = vld [vmem:[%s298 + $0x328] sm:$0xff]
        %v571 = vld [vmem:[%s298 + $0x330] sm:$0xff]
        %v572 = vld [vmem:[%s298 + $0x338] sm:$0xff]
        %v573 = vld [vmem:[%s298 + $0x340] sm:$0xff]
        %v574 = vld [vmem:[%s298 + $0x348] sm:$0xff]
        %v575 = vld [vmem:[%s298 + $0x350] sm:$0xff]
        %v576 = vld [vmem:[%s298 + $0x358] sm:$0xff]
        %v577 = vld [vmem:[%s298 + $0x360] sm:$0xff]
        %v578 = vld [vmem:[%s298 + $0x368] sm:$0xff]
        %v579 = vld [vmem:[%s298 + $0x370] sm:$0xff]
        %v580 = vld [vmem:[%s298 + $0x378] sm:$0xff]
        %v581 = vld [vmem:[%s298 + $0x380] sm:$0xff]
        %v582 = vld [vmem:[%s298 + $0x388] sm:$0xff]
        %v583 = vld [vmem:[%s298 + $0x390] sm:$0xff]
        %v584 = vld [vmem:[%s298 + $0x398] sm:$0xff]
        %v585 = vld [vmem:[%s298 + $0x3a0] sm:$0xff]
        %v586 = vld [vmem:[%s298 + $0x3a8] sm:$0xff]
        %v587 = vld [vmem:[%s298 + $0x3b0] sm:$0xff]
        %v588 = vld [vmem:[%s298 + $0x3b8] sm:$0xff]
        %v589 = vld [vmem:[%s298 + $0x3c0] sm:$0xff]
        %v590 = vld [vmem:[%s298 + $0x3c8] sm:$0xff]
        %v591 = vld [vmem:[%s298 + $0x3d0] sm:$0xff]
        %v592 = vld [vmem:[%s298 + $0x3d8] sm:$0xff]
        %v593 = vld [vmem:[%s298 + $0x3e0] sm:$0xff]
        %v594 = vld [vmem:[%s298 + $0x3e8] sm:$0xff]
        %v595 = vld [vmem:[%s298 + $0x3f0] sm:$0xff]
        %v596 = vld [vmem:[%s298 + $0x3f8] sm:$0xff]
        %v598 = vlaneseq
        %v599 = vshrl.u32 %v598, 7
        %v600 = vsub.s32 0, %v599
        %v601 = vrot.slane %v432, %v600
        %v602 = vlaneseq
        %v603 = vshrl.u32 %v602, 7
        %v604 = vsub.s32 1, %v603
        %v605 = vrot.slane %v432, %v604
        %v606 = vlaneseq
        %v607 = vshrl.u32 %v606, 7
        %v608 = vsub.s32 2, %v607
        %v609 = vrot.slane %v432, %v608
        %v610 = vlaneseq
        %v611 = vshrl.u32 %v610, 7
        %v612 = vsub.s32 3, %v611
        %v613 = vrot.slane %v432, %v612
        %v746 = vunpack.c.l.b16 %v469
        %v747 = vunpack.c.h.b16 %v469
        %v748 = vunpack.c.l.b16 %v470
        %v749 = vunpack.c.h.b16 %v470
        %v750 = vunpack.c.l.b16 %v471
        %v751 = vunpack.c.h.b16 %v471
        %v752 = vunpack.c.l.b16 %v472
        %v753 = vunpack.c.h.b16 %v472
        %v754 = vunpack.c.l.b16 %v473
        %v755 = vunpack.c.h.b16 %v473
        %v756 = vunpack.c.l.b16 %v474
        %v757 = vunpack.c.h.b16 %v474
        %v758 = vunpack.c.l.b16 %v475
        %v759 = vunpack.c.h.b16 %v475
        %v760 = vunpack.c.l.b16 %v476
        %v761 = vunpack.c.h.b16 %v476
        %v762 = vunpack.c.l.b16 %v477
        %v763 = vunpack.c.h.b16 %v477
        %v764 = vunpack.c.l.b16 %v478
        %v765 = vunpack.c.h.b16 %v478
        %v766 = vunpack.c.l.b16 %v479
        %v767 = vunpack.c.h.b16 %v479
        %v768 = vunpack.c.l.b16 %v480
        %v769 = vunpack.c.h.b16 %v480
        %v770 = vunpack.c.l.b16 %v481
        %v771 = vunpack.c.h.b16 %v481
        %v772 = vunpack.c.l.b16 %v482
        %v773 = vunpack.c.h.b16 %v482
        %v774 = vunpack.c.l.b16 %v483
        %v775 = vunpack.c.h.b16 %v483
        %v776 = vunpack.c.l.b16 %v484
        %v777 = vunpack.c.h.b16 %v484
        %v778 = vunpack.c.l.b16 %v485
        %v779 = vunpack.c.h.b16 %v485
        %v780 = vunpack.c.l.b16 %v486
        %v781 = vunpack.c.h.b16 %v486
        %v782 = vunpack.c.l.b16 %v487
        %v783 = vunpack.c.h.b16 %v487
        %v784 = vunpack.c.l.b16 %v488
        %v785 = vunpack.c.h.b16 %v488
        %v786 = vunpack.c.l.b16 %v489
        %v787 = vunpack.c.h.b16 %v489
        %v788 = vunpack.c.l.b16 %v490
        %v789 = vunpack.c.h.b16 %v490
        %v790 = vunpack.c.l.b16 %v491
        %v791 = vunpack.c.h.b16 %v491
        %v792 = vunpack.c.l.b16 %v492
        %v793 = vunpack.c.h.b16 %v492
        %v794 = vunpack.c.l.b16 %v493
        %v795 = vunpack.c.h.b16 %v493
        %v796 = vunpack.c.l.b16 %v494
        %v797 = vunpack.c.h.b16 %v494
        %v798 = vunpack.c.l.b16 %v495
        %v799 = vunpack.c.h.b16 %v495
        %v800 = vunpack.c.l.b16 %v496
        %v801 = vunpack.c.h.b16 %v496
        %v802 = vunpack.c.l.b16 %v497
        %v803 = vunpack.c.h.b16 %v497
        %v804 = vunpack.c.l.b16 %v498
        %v805 = vunpack.c.h.b16 %v498
        %v806 = vunpack.c.l.b16 %v499
        %v807 = vunpack.c.h.b16 %v499
        %v808 = vunpack.c.l.b16 %v500
        %v809 = vunpack.c.h.b16 %v500
        %v810 = vunpack.c.l.b16 %v501
        %v811 = vunpack.c.h.b16 %v501
        %v812 = vunpack.c.l.b16 %v502
        %v813 = vunpack.c.h.b16 %v502
        %v814 = vunpack.c.l.b16 %v503
        %v815 = vunpack.c.h.b16 %v503
        %v816 = vunpack.c.l.b16 %v504
        %v817 = vunpack.c.h.b16 %v504
        %v818 = vunpack.c.l.b16 %v505
        %v819 = vunpack.c.h.b16 %v505
        %v820 = vunpack.c.l.b16 %v506
        %v821 = vunpack.c.h.b16 %v506
        %v822 = vunpack.c.l.b16 %v507
        %v823 = vunpack.c.h.b16 %v507
        %v824 = vunpack.c.l.b16 %v508
        %v825 = vunpack.c.h.b16 %v508
        %v826 = vunpack.c.l.b16 %v509
        %v827 = vunpack.c.h.b16 %v509
        %v828 = vunpack.c.l.b16 %v510
        %v829 = vunpack.c.h.b16 %v510
        %v830 = vunpack.c.l.b16 %v511
        %v831 = vunpack.c.h.b16 %v511
        %v832 = vunpack.c.l.b16 %v512
        %v833 = vunpack.c.h.b16 %v512
        %v834 = vunpack.c.l.b16 %v513
        %v835 = vunpack.c.h.b16 %v513
        %v836 = vunpack.c.l.b16 %v514
        %v837 = vunpack.c.h.b16 %v514
        %v838 = vunpack.c.l.b16 %v515
        %v839 = vunpack.c.h.b16 %v515
        %v840 = vunpack.c.l.b16 %v516
        %v841 = vunpack.c.h.b16 %v516
        %v842 = vunpack.c.l.b16 %v517
        %v843 = vunpack.c.h.b16 %v517
        %v844 = vunpack.c.l.b16 %v518
        %v845 = vunpack.c.h.b16 %v518
        %v846 = vunpack.c.l.b16 %v519
        %v847 = vunpack.c.h.b16 %v519
        %v848 = vunpack.c.l.b16 %v520
        %v849 = vunpack.c.h.b16 %v520
        %v850 = vunpack.c.l.b16 %v521
        %v851 = vunpack.c.h.b16 %v521
        %v852 = vunpack.c.l.b16 %v522
        %v853 = vunpack.c.h.b16 %v522
        %v854 = vunpack.c.l.b16 %v523
        %v855 = vunpack.c.h.b16 %v523
        %v856 = vunpack.c.l.b16 %v524
        %v857 = vunpack.c.h.b16 %v524
        %v858 = vunpack.c.l.b16 %v525
        %v859 = vunpack.c.h.b16 %v525
        %v860 = vunpack.c.l.b16 %v526
        %v861 = vunpack.c.h.b16 %v526
        %v862 = vunpack.c.l.b16 %v527
        %v863 = vunpack.c.h.b16 %v527
        %v864 = vunpack.c.l.b16 %v528
        %v865 = vunpack.c.h.b16 %v528
        %v866 = vunpack.c.l.b16 %v529
        %v867 = vunpack.c.h.b16 %v529
        %v868 = vunpack.c.l.b16 %v530
        %v869 = vunpack.c.h.b16 %v530
        %v870 = vunpack.c.l.b16 %v531
        %v871 = vunpack.c.h.b16 %v531
        %v872 = vunpack.c.l.b16 %v532
        %v873 = vunpack.c.h.b16 %v532
        %v874 = vunpack.c.l.b16 %v533
        %v875 = vunpack.c.h.b16 %v533
        %v876 = vunpack.c.l.b16 %v534
        %v877 = vunpack.c.h.b16 %v534
        %v878 = vunpack.c.l.b16 %v535
        %v879 = vunpack.c.h.b16 %v535
        %v880 = vunpack.c.l.b16 %v536
        %v881 = vunpack.c.h.b16 %v536
        %v882 = vunpack.c.l.b16 %v537
        %v883 = vunpack.c.h.b16 %v537
        %v884 = vunpack.c.l.b16 %v538
        %v885 = vunpack.c.h.b16 %v538
        %v886 = vunpack.c.l.b16 %v539
        %v887 = vunpack.c.h.b16 %v539
        %v888 = vunpack.c.l.b16 %v540
        %v889 = vunpack.c.h.b16 %v540
        %v890 = vunpack.c.l.b16 %v541
        %v891 = vunpack.c.h.b16 %v541
        %v892 = vunpack.c.l.b16 %v542
        %v893 = vunpack.c.h.b16 %v542
        %v894 = vunpack.c.l.b16 %v543
        %v895 = vunpack.c.h.b16 %v543
        %v896 = vunpack.c.l.b16 %v544
        %v897 = vunpack.c.h.b16 %v544
        %v898 = vunpack.c.l.b16 %v545
        %v899 = vunpack.c.h.b16 %v545
        %v900 = vunpack.c.l.b16 %v546
        %v901 = vunpack.c.h.b16 %v546
        %v902 = vunpack.c.l.b16 %v547
        %v903 = vunpack.c.h.b16 %v547
        %v904 = vunpack.c.l.b16 %v548
        %v905 = vunpack.c.h.b16 %v548
        %v906 = vunpack.c.l.b16 %v549
        %v907 = vunpack.c.h.b16 %v549
        %v908 = vunpack.c.l.b16 %v550
        %v909 = vunpack.c.h.b16 %v550
        %v910 = vunpack.c.l.b16 %v551
        %v911 = vunpack.c.h.b16 %v551
        %v912 = vunpack.c.l.b16 %v552
        %v913 = vunpack.c.h.b16 %v552
        %v914 = vunpack.c.l.b16 %v553
        %v915 = vunpack.c.h.b16 %v553
        %v916 = vunpack.c.l.b16 %v554
        %v917 = vunpack.c.h.b16 %v554
        %v918 = vunpack.c.l.b16 %v555
        %v919 = vunpack.c.h.b16 %v555
        %v920 = vunpack.c.l.b16 %v556
        %v921 = vunpack.c.h.b16 %v556
        %v922 = vunpack.c.l.b16 %v557
        %v923 = vunpack.c.h.b16 %v557
        %v924 = vunpack.c.l.b16 %v558
        %v925 = vunpack.c.h.b16 %v558
        %v926 = vunpack.c.l.b16 %v559
        %v927 = vunpack.c.h.b16 %v559
        %v928 = vunpack.c.l.b16 %v560
        %v929 = vunpack.c.h.b16 %v560
        %v930 = vunpack.c.l.b16 %v561
        %v931 = vunpack.c.h.b16 %v561
        %v932 = vunpack.c.l.b16 %v562
        %v933 = vunpack.c.h.b16 %v562
        %v934 = vunpack.c.l.b16 %v563
        %v935 = vunpack.c.h.b16 %v563
        %v936 = vunpack.c.l.b16 %v564
        %v937 = vunpack.c.h.b16 %v564
        %v938 = vunpack.c.l.b16 %v565
        %v939 = vunpack.c.h.b16 %v565
        %v940 = vunpack.c.l.b16 %v566
        %v941 = vunpack.c.h.b16 %v566
        %v942 = vunpack.c.l.b16 %v567
        %v943 = vunpack.c.h.b16 %v567
        %v944 = vunpack.c.l.b16 %v568
        %v945 = vunpack.c.h.b16 %v568
        %v946 = vunpack.c.l.b16 %v569
        %v947 = vunpack.c.h.b16 %v569
        %v948 = vunpack.c.l.b16 %v570
        %v949 = vunpack.c.h.b16 %v570
        %v950 = vunpack.c.l.b16 %v571
        %v951 = vunpack.c.h.b16 %v571
        %v952 = vunpack.c.l.b16 %v572
        %v953 = vunpack.c.h.b16 %v572
        %v954 = vunpack.c.l.b16 %v573
        %v955 = vunpack.c.h.b16 %v573
        %v956 = vunpack.c.l.b16 %v574
        %v957 = vunpack.c.h.b16 %v574
        %v958 = vunpack.c.l.b16 %v575
        %v959 = vunpack.c.h.b16 %v575
        %v960 = vunpack.c.l.b16 %v576
        %v961 = vunpack.c.h.b16 %v576
        %v962 = vunpack.c.l.b16 %v577
        %v963 = vunpack.c.h.b16 %v577
        %v964 = vunpack.c.l.b16 %v578
        %v965 = vunpack.c.h.b16 %v578
        %v966 = vunpack.c.l.b16 %v579
        %v967 = vunpack.c.h.b16 %v579
        %v968 = vunpack.c.l.b16 %v580
        %v969 = vunpack.c.h.b16 %v580
        %v970 = vunpack.c.l.b16 %v581
        %v971 = vunpack.c.h.b16 %v581
        %v972 = vunpack.c.l.b16 %v582
        %v973 = vunpack.c.h.b16 %v582
        %v974 = vunpack.c.l.b16 %v583
        %v975 = vunpack.c.h.b16 %v583
        %v976 = vunpack.c.l.b16 %v584
        %v977 = vunpack.c.h.b16 %v584
        %v978 = vunpack.c.l.b16 %v585
        %v979 = vunpack.c.h.b16 %v585
        %v980 = vunpack.c.l.b16 %v586
        %v981 = vunpack.c.h.b16 %v586
        %v982 = vunpack.c.l.b16 %v587
        %v983 = vunpack.c.h.b16 %v587
        %v984 = vunpack.c.l.b16 %v588
        %v985 = vunpack.c.h.b16 %v588
        %v986 = vunpack.c.l.b16 %v589
        %v987 = vunpack.c.h.b16 %v589
        %v988 = vunpack.c.l.b16 %v590
        %v989 = vunpack.c.h.b16 %v590
        %v990 = vunpack.c.l.b16 %v591
        %v991 = vunpack.c.h.b16 %v591
        %v992 = vunpack.c.l.b16 %v592
        %v993 = vunpack.c.h.b16 %v592
        %v994 = vunpack.c.l.b16 %v593
        %v995 = vunpack.c.h.b16 %v593
        %v996 = vunpack.c.l.b16 %v594
        %v997 = vunpack.c.h.b16 %v594
        %v998 = vunpack.c.l.b16 %v595
        %v999 = vunpack.c.h.b16 %v595
        %v1000 = vunpack.c.l.b16 %v596
        %v1001 = vunpack.c.h.b16 %v596
        %v1002 = vpack.c.b16 %v750, %v746
        %v1003 = vpack.c.b16 %v751, %v747
        %v1004 = vpack.c.b16 %v752, %v748
        %v1005 = vpack.c.b16 %v753, %v749
        %v1006 = vpack.c.b16 %v758, %v754
        %v1007 = vpack.c.b16 %v759, %v755
        %v1008 = vpack.c.b16 %v760, %v756
        %v1009 = vpack.c.b16 %v761, %v757
        %v1010 = vpack.c.b16 %v766, %v762
        %v1011 = vpack.c.b16 %v767, %v763
        %v1012 = vpack.c.b16 %v768, %v764
        %v1013 = vpack.c.b16 %v769, %v765
        %v1014 = vpack.c.b16 %v774, %v770
        %v1015 = vpack.c.b16 %v775, %v771
        %v1016 = vpack.c.b16 %v776, %v772
        %v1017 = vpack.c.b16 %v777, %v773
        %v1018 = vpack.c.b16 %v782, %v778
        %v1019 = vpack.c.b16 %v783, %v779
        %v1020 = vpack.c.b16 %v784, %v780
        %v1021 = vpack.c.b16 %v785, %v781
        %v1022 = vpack.c.b16 %v790, %v786
        %v1023 = vpack.c.b16 %v791, %v787
        %v1024 = vpack.c.b16 %v792, %v788
        %v1025 = vpack.c.b16 %v793, %v789
        %v1026 = vpack.c.b16 %v798, %v794
        %v1027 = vpack.c.b16 %v799, %v795
        %v1028 = vpack.c.b16 %v800, %v796
        %v1029 = vpack.c.b16 %v801, %v797
        %v1030 = vpack.c.b16 %v806, %v802
        %v1031 = vpack.c.b16 %v807, %v803
        %v1032 = vpack.c.b16 %v808, %v804
        %v1033 = vpack.c.b16 %v809, %v805
        %v1034 = vpack.c.b16 %v814, %v810
        %v1035 = vpack.c.b16 %v815, %v811
        %v1036 = vpack.c.b16 %v816, %v812
        %v1037 = vpack.c.b16 %v817, %v813
        %v1038 = vpack.c.b16 %v822, %v818
        %v1039 = vpack.c.b16 %v823, %v819
        %v1040 = vpack.c.b16 %v824, %v820
        %v1041 = vpack.c.b16 %v825, %v821
        %v1042 = vpack.c.b16 %v830, %v826
        %v1043 = vpack.c.b16 %v831, %v827
        %v1044 = vpack.c.b16 %v832, %v828
        %v1045 = vpack.c.b16 %v833, %v829
        %v1046 = vpack.c.b16 %v838, %v834
        %v1047 = vpack.c.b16 %v839, %v835
        %v1048 = vpack.c.b16 %v840, %v836
        %v1049 = vpack.c.b16 %v841, %v837
        %v1050 = vpack.c.b16 %v846, %v842
        %v1051 = vpack.c.b16 %v847, %v843
        %v1052 = vpack.c.b16 %v848, %v844
        %v1053 = vpack.c.b16 %v849, %v845
        %v1054 = vpack.c.b16 %v854, %v850
        %v1055 = vpack.c.b16 %v855, %v851
        %v1056 = vpack.c.b16 %v856, %v852
        %v1057 = vpack.c.b16 %v857, %v853
        %v1058 = vpack.c.b16 %v862, %v858
        %v1059 = vpack.c.b16 %v863, %v859
        %v1060 = vpack.c.b16 %v864, %v860
        %v1061 = vpack.c.b16 %v865, %v861
        %v1062 = vpack.c.b16 %v870, %v866
        %v1063 = vpack.c.b16 %v871, %v867
        %v1064 = vpack.c.b16 %v872, %v868
        %v1065 = vpack.c.b16 %v873, %v869
        %v1066 = vpack.c.b16 %v878, %v874
        %v1067 = vpack.c.b16 %v879, %v875
        %v1068 = vpack.c.b16 %v880, %v876
        %v1069 = vpack.c.b16 %v881, %v877
        %v1070 = vpack.c.b16 %v886, %v882
        %v1071 = vpack.c.b16 %v887, %v883
        %v1072 = vpack.c.b16 %v888, %v884
        %v1073 = vpack.c.b16 %v889, %v885
        %v1074 = vpack.c.b16 %v894, %v890
        %v1075 = vpack.c.b16 %v895, %v891
        %v1076 = vpack.c.b16 %v896, %v892
        %v1077 = vpack.c.b16 %v897, %v893
        %v1078 = vpack.c.b16 %v902, %v898
        %v1079 = vpack.c.b16 %v903, %v899
        %v1080 = vpack.c.b16 %v904, %v900
        %v1081 = vpack.c.b16 %v905, %v901
        %v1082 = vpack.c.b16 %v910, %v906
        %v1083 = vpack.c.b16 %v911, %v907
        %v1084 = vpack.c.b16 %v912, %v908
        %v1085 = vpack.c.b16 %v913, %v909
        %v1086 = vpack.c.b16 %v918, %v914
        %v1087 = vpack.c.b16 %v919, %v915
        %v1088 = vpack.c.b16 %v920, %v916
        %v1089 = vpack.c.b16 %v921, %v917
        %v1090 = vpack.c.b16 %v926, %v922
        %v1091 = vpack.c.b16 %v927, %v923
        %v1092 = vpack.c.b16 %v928, %v924
        %v1093 = vpack.c.b16 %v929, %v925
        %v1094 = vpack.c.b16 %v934, %v930
        %v1095 = vpack.c.b16 %v935, %v931
        %v1096 = vpack.c.b16 %v936, %v932
        %v1097 = vpack.c.b16 %v937, %v933
        %v1098 = vpack.c.b16 %v942, %v938
        %v1099 = vpack.c.b16 %v943, %v939
        %v1100 = vpack.c.b16 %v944, %v940
        %v1101 = vpack.c.b16 %v945, %v941
        %v1102 = vpack.c.b16 %v950, %v946
        %v1103 = vpack.c.b16 %v951, %v947
        %v1104 = vpack.c.b16 %v952, %v948
        %v1105 = vpack.c.b16 %v953, %v949
        %v1106 = vpack.c.b16 %v958, %v954
        %v1107 = vpack.c.b16 %v959, %v955
        %v1108 = vpack.c.b16 %v960, %v956
        %v1109 = vpack.c.b16 %v961, %v957
        %v1110 = vpack.c.b16 %v966, %v962
        %v1111 = vpack.c.b16 %v967, %v963
        %v1112 = vpack.c.b16 %v968, %v964
        %v1113 = vpack.c.b16 %v969, %v965
        %v1114 = vpack.c.b16 %v974, %v970
        %v1115 = vpack.c.b16 %v975, %v971
        %v1116 = vpack.c.b16 %v976, %v972
        %v1117 = vpack.c.b16 %v977, %v973
        %v1118 = vpack.c.b16 %v982, %v978
        %v1119 = vpack.c.b16 %v983, %v979
        %v1120 = vpack.c.b16 %v984, %v980
        %v1121 = vpack.c.b16 %v985, %v981
        %v1122 = vpack.c.b16 %v990, %v986
        %v1123 = vpack.c.b16 %v991, %v987
        %v1124 = vpack.c.b16 %v992, %v988
        %v1125 = vpack.c.b16 %v993, %v989
        %v1126 = vpack.c.b16 %v998, %v994
        %v1127 = vpack.c.b16 %v999, %v995
        %v1128 = vpack.c.b16 %v1000, %v996
        %v1129 = vpack.c.b16 %v1001, %v997
        %1258 = vmatprep.subr.bf16.mxu0 %v1003
        %1259 = vmatpush1.bf16.msra.mxu0 %v1002
        %1260 = vmatprep.subr.bf16.mxu0 %v1007
        %1261 = vmatpush1.bf16.msra.mxu0 %v1006
        %1262 = vmatprep.subr.bf16.mxu0 %v1011
        %1263 = vmatpush1.bf16.msra.mxu0 %v1010
        %1264 = vmatprep.subr.bf16.mxu0 %v1015
        %1265 = vmatpush1.bf16.msra.mxu0 %v1014
        %1266 = vmatprep.subr.bf16.mxu0 %v1019
        %1267 = vmatpush1.bf16.msra.mxu0 %v1018
        %1268 = vmatprep.subr.bf16.mxu0 %v1023
        %1269 = vmatpush1.bf16.msra.mxu0 %v1022
        %1270 = vmatprep.subr.bf16.mxu0 %v1027
        %1271 = vmatpush1.bf16.msra.mxu0 %v1026
        %1272 = vmatprep.subr.bf16.mxu0 %v1031
        %1273 = vmatpush1.bf16.msra.mxu0 %v1030
        %1274 = vmatprep.subr.bf16.mxu0 %v1035
        %1275 = vmatpush1.bf16.msra.mxu0 %v1034
        %1276 = vmatprep.subr.bf16.mxu0 %v1039
        %1277 = vmatpush1.bf16.msra.mxu0 %v1038
        %1278 = vmatprep.subr.bf16.mxu0 %v1043
        %1279 = vmatpush1.bf16.msra.mxu0 %v1042
        %1280 = vmatprep.subr.bf16.mxu0 %v1047
        %1281 = vmatpush1.bf16.msra.mxu0 %v1046
        %1282 = vmatprep.subr.bf16.mxu0 %v1051
        %1283 = vmatpush1.bf16.msra.mxu0 %v1050
        %1284 = vmatprep.subr.bf16.mxu0 %v1055
        %1285 = vmatpush1.bf16.msra.mxu0 %v1054
        %1286 = vmatprep.subr.bf16.mxu0 %v1059
        %1287 = vmatpush1.bf16.msra.mxu0 %v1058
        %1288 = vmatprep.subr.bf16.mxu0 %v1063
        %1289 = vmatpush1.bf16.msra.mxu0 %v1062
        %1290 = vmatprep.mubr.bf16.mxu0 %v438
        %1291 = vmatmul.mubr.bf16.gmra.mrb[0].mxu0 %v437
        %v1292 = vpop.f32.mrb[0].mxu0
        %v1293 = vadd.f32 %v601, %v1292
        %v1294 = vpop.f32.mrb[0].mxu0
        %v1295 = vadd.f32 %v605, %v1294
        %v1296 = vpop.f32.mrb[0].mxu0
        %v1297 = vadd.f32 %v601, %v1296
        %v1298 = vpop.f32.mrb[0].mxu0
        %v1299 = vadd.f32 %v605, %v1298
        %1300 = vmatprep.mubr.bf16.mxu0 %v442
        %1301 = vmatmul.mubr.bf16.gmra.mrb[0].mxu0 %v441
        %v1302 = vpop.f32.mrb[0].mxu0
        %v1303 = vadd.f32 %v601, %v1302
        %v1304 = vpop.f32.mrb[0].mxu0
        %v1305 = vadd.f32 %v605, %v1304
        %v1306 = vpop.f32.mrb[0].mxu0
        %v1307 = vadd.f32 %v601, %v1306
        %v1308 = vpop.f32.mrb[0].mxu0
        %v1309 = vadd.f32 %v605, %v1308
        %1310 = vmatprep.mubr.bf16.mxu0 %v446
        %1311 = vmatmul.mubr.bf16.gmra.mrb[0].mxu0 %v445
        %v1312 = vpop.f32.mrb[0].mxu0
        %v1313 = vadd.f32 %v601, %v1312
        %v1314 = vpop.f32.mrb[0].mxu0
        %v1315 = vadd.f32 %v605, %v1314
        %v1316 = vpop.f32.mrb[0].mxu0
        %v1317 = vadd.f32 %v601, %v1316
        %v1318 = vpop.f32.mrb[0].mxu0
        %v1319 = vadd.f32 %v605, %v1318
        %1320 = vmatprep.mubr.bf16.mxu0 %v450
        %1321 = vmatmul.mubr.bf16.gmra.mrb[0].mxu0 %v449
        %v1322 = vpop.f32.mrb[0].mxu0
        %v1323 = vadd.f32 %v601, %v1322
        %v1324 = vpop.f32.mrb[0].mxu0
        %v1325 = vadd.f32 %v605, %v1324
        %v1326 = vpop.f32.mrb[0].mxu0
        %v1327 = vadd.f32 %v601, %v1326
        %v1328 = vpop.f32.mrb[0].mxu0
        %v1329 = vadd.f32 %v605, %v1328
        %1330 = vmatprep.mubr.bf16.mxu0 %v454
        %1331 = vmatmul.mubr.bf16.gmra.mrb[0].mxu0 %v453
        %v1332 = vpop.f32.mrb[0].mxu0
        %v1333 = vadd.f32 %v601, %v1332
        %v1334 = vpop.f32.mrb[0].mxu0
        %v1335 = vadd.f32 %v605, %v1334
        %v1336 = vpop.f32.mrb[0].mxu0
        %v1337 = vadd.f32 %v601, %v1336
        %v1338 = vpop.f32.mrb[0].mxu0
        %v1339 = vadd.f32 %v605, %v1338
        %1340 = vmatprep.mubr.bf16.mxu0 %v458
        %1341 = vmatmul.mubr.bf16.gmra.mrb[0].mxu0 %v457
        %v1342 = vpop.f32.mrb[0].mxu0
        %v1343 = vadd.f32 %v601, %v1342
        %v1344 = vpop.f32.mrb[0].mxu0
        %v1345 = vadd.f32 %v605, %v1344
        %v1346 = vpop.f32.mrb[0].mxu0
        %v1347 = vadd.f32 %v601, %v1346
        %v1348 = vpop.f32.mrb[0].mxu0
        %v1349 = vadd.f32 %v605, %v1348
        %1350 = vmatprep.mubr.bf16.mxu0 %v462
        %1351 = vmatmul.mubr.bf16.gmra.mrb[0].mxu0 %v461
        %v1352 = vpop.f32.mrb[0].mxu0
        %v1353 = vadd.f32 %v601, %v1352
        %v1354 = vpop.f32.mrb[0].mxu0
        %v1355 = vadd.f32 %v605, %v1354
        %v1356 = vpop.f32.mrb[0].mxu0
        %v1357 = vadd.f32 %v601, %v1356
        %v1358 = vpop.f32.mrb[0].mxu0
        %v1359 = vadd.f32 %v605, %v1358
        %1360 = vmatprep.mubr.bf16.mxu0 %v466
        %1361 = vmatmul.mubr.bf16.gmra.mrb[0].mxu0 %v465
        %v1362 = vpop.f32.mrb[0].mxu0
        %v1363 = vadd.f32 %v601, %v1362
        %v1364 = vpop.f32.mrb[0].mxu0
        %v1365 = vadd.f32 %v605, %v1364
        %v1366 = vpop.f32.mrb[0].mxu0
        %v1367 = vadd.f32 %v601, %v1366
        %v1368 = vpop.f32.mrb[0].mxu0
        %v1369 = vadd.f32 %v605, %v1368
        %1370 = vdwg.mxu0
        %1371 = vmatprep.subr.bf16.mxu0 %v1067
        %1372 = vmatpush1.bf16.msra.mxu0 %v1066
        %1373 = vmatprep.subr.bf16.mxu0 %v1071
        %1374 = vmatpush1.bf16.msra.mxu0 %v1070
        %1375 = vmatprep.subr.bf16.mxu0 %v1075
        %1376 = vmatpush1.bf16.msra.mxu0 %v1074
        %1377 = vmatprep.subr.bf16.mxu0 %v1079
        %1378 = vmatpush1.bf16.msra.mxu0 %v1078
        %1379 = vmatprep.subr.bf16.mxu0 %v1083
        %1380 = vmatpush1.bf16.msra.mxu0 %v1082
        %1381 = vmatprep.subr.bf16.mxu0 %v1087
        %1382 = vmatpush1.bf16.msra.mxu0 %v1086
        %1383 = vmatprep.subr.bf16.mxu0 %v1091
        %1384 = vmatpush1.bf16.msra.mxu0 %v1090
        %1385 = vmatprep.subr.bf16.mxu0 %v1095
        %1386 = vmatpush1.bf16.msra.mxu0 %v1094
        %1387 = vmatprep.subr.bf16.mxu0 %v1099
        %1388 = vmatpush1.bf16.msra.mxu0 %v1098
        %1389 = vmatprep.subr.bf16.mxu0 %v1103
        %1390 = vmatpush1.bf16.msra.mxu0 %v1102
        %1391 = vmatprep.subr.bf16.mxu0 %v1107
        %1392 = vmatpush1.bf16.msra.mxu0 %v1106
        %1393 = vmatprep.subr.bf16.mxu0 %v1111
        %1394 = vmatpush1.bf16.msra.mxu0 %v1110
        %1395 = vmatprep.subr.bf16.mxu0 %v1115
        %1396 = vmatpush1.bf16.msra.mxu0 %v1114
        %1397 = vmatprep.subr.bf16.mxu0 %v1119
        %1398 = vmatpush1.bf16.msra.mxu0 %v1118
        %1399 = vmatprep.subr.bf16.mxu0 %v1123
        %1400 = vmatpush1.bf16.msra.mxu0 %v1122
        %1401 = vmatprep.subr.bf16.mxu0 %v1127
        %1402 = vmatpush1.bf16.msra.mxu0 %v1126
        %1403 = vmatprep.mubr.bf16.mxu0 %v440
        %1404 = vmatmul.mubr.bf16.gmra.mrb[0].mxu0 %v439
        %v1405 = vpop.f32.mrb[0].mxu0
        %v1406 = vadd.f32 %v1293, %v1405
        %v1407 = vpop.f32.mrb[0].mxu0
        %v1408 = vadd.f32 %v1295, %v1407
        %v1409 = vpop.f32.mrb[0].mxu0
        %v1410 = vadd.f32 %v1297, %v1409
        %v1411 = vpop.f32.mrb[0].mxu0
        %v1412 = vadd.f32 %v1299, %v1411
        %1413 = vmatprep.mubr.bf16.mxu0 %v444
        %1414 = vmatmul.mubr.bf16.gmra.mrb[0].mxu0 %v443
        %v1415 = vpop.f32.mrb[0].mxu0
        %v1416 = vadd.f32 %v1303, %v1415
        %v1417 = vpop.f32.mrb[0].mxu0
        %v1418 = vadd.f32 %v1305, %v1417
        %v1419 = vpop.f32.mrb[0].mxu0
        %v1420 = vadd.f32 %v1307, %v1419
        %v1421 = vpop.f32.mrb[0].mxu0
        %v1422 = vadd.f32 %v1309, %v1421
        %1423 = vmatprep.mubr.bf16.mxu0 %v448
        %1424 = vmatmul.mubr.bf16.gmra.mrb[0].mxu0 %v447
        %v1425 = vpop.f32.mrb[0].mxu0
        %v1426 = vadd.f32 %v1313, %v1425
        %v1427 = vpop.f32.mrb[0].mxu0
        %v1428 = vadd.f32 %v1315, %v1427
        %v1429 = vpop.f32.mrb[0].mxu0
        %v1430 = vadd.f32 %v1317, %v1429
        %v1431 = vpop.f32.mrb[0].mxu0
        %v1432 = vadd.f32 %v1319, %v1431
        %1433 = vmatprep.mubr.bf16.mxu0 %v452
        %1434 = vmatmul.mubr.bf16.gmra.mrb[0].mxu0 %v451
        %v1435 = vpop.f32.mrb[0].mxu0
        %v1436 = vadd.f32 %v1323, %v1435
        %v1437 = vpop.f32.mrb[0].mxu0
        %v1438 = vadd.f32 %v1325, %v1437
        %v1439 = vpop.f32.mrb[0].mxu0
        %v1440 = vadd.f32 %v1327, %v1439
        %v1441 = vpop.f32.mrb[0].mxu0
        %v1442 = vadd.f32 %v1329, %v1441
        %1443 = vmatprep.mubr.bf16.mxu0 %v456
        %1444 = vmatmul.mubr.bf16.gmra.mrb[0].mxu0 %v455
        %v1445 = vpop.f32.mrb[0].mxu0
        %v1446 = vadd.f32 %v1333, %v1445
        %v1447 = vpop.f32.mrb[0].mxu0
        %v1448 = vadd.f32 %v1335, %v1447
        %v1449 = vpop.f32.mrb[0].mxu0
        %v1450 = vadd.f32 %v1337, %v1449
        %v1451 = vpop.f32.mrb[0].mxu0
        %v1452 = vadd.f32 %v1339, %v1451
        %1453 = vmatprep.mubr.bf16.mxu0 %v460
        %1454 = vmatmul.mubr.bf16.gmra.mrb[0].mxu0 %v459
        %v1455 = vpop.f32.mrb[0].mxu0
        %v1456 = vadd.f32 %v1343, %v1455
        %v1457 = vpop.f32.mrb[0].mxu0
        %v1458 = vadd.f32 %v1345, %v1457
        %v1459 = vpop.f32.mrb[0].mxu0
        %v1460 = vadd.f32 %v1347, %v1459
        %v1461 = vpop.f32.mrb[0].mxu0
        %v1462 = vadd.f32 %v1349, %v1461
        %1463 = vmatprep.mubr.bf16.mxu0 %v464
        %1464 = vmatmul.mubr.bf16.gmra.mrb[0].mxu0 %v463
        %v1465 = vpop.f32.mrb[0].mxu0
        %v1466 = vadd.f32 %v1353, %v1465
        %v1467 = vpop.f32.mrb[0].mxu0
        %v1468 = vadd.f32 %v1355, %v1467
        %v1469 = vpop.f32.mrb[0].mxu0
        %v1470 = vadd.f32 %v1357, %v1469
        %v1471 = vpop.f32.mrb[0].mxu0
        %v1472 = vadd.f32 %v1359, %v1471
        %1473 = vmatprep.mubr.bf16.mxu0 %v468
        %1474 = vmatmul.mubr.bf16.gmra.mrb[0].mxu0 %v467
        %v1475 = vpop.f32.mrb[0].mxu0
        %v1476 = vadd.f32 %v1363, %v1475
        %v1477 = vpop.f32.mrb[0].mxu0
        %v1478 = vadd.f32 %v1365, %v1477
        %v1479 = vpop.f32.mrb[0].mxu0
        %v1480 = vadd.f32 %v1367, %v1479
        %v1481 = vpop.f32.mrb[0].mxu0
        %v1482 = vadd.f32 %v1369, %v1481
        %1483 = vdwg.mxu0
        %1484 = vmatprep.subr.bf16.mxu0 %v1005
        %1485 = vmatpush1.bf16.msra.mxu0 %v1004
        %1486 = vmatprep.subr.bf16.mxu0 %v1009
        %1487 = vmatpush1.bf16.msra.mxu0 %v1008
        %1488 = vmatprep.subr.bf16.mxu0 %v1013
        %1489 = vmatpush1.bf16.msra.mxu0 %v1012
        %1490 = vmatprep.subr.bf16.mxu0 %v1017
        %1491 = vmatpush1.bf16.msra.mxu0 %v1016
        %1492 = vmatprep.subr.bf16.mxu0 %v1021
        %1493 = vmatpush1.bf16.msra.mxu0 %v1020
        %1494 = vmatprep.subr.bf16.mxu0 %v1025
        %1495 = vmatpush1.bf16.msra.mxu0 %v1024
        %1496 = vmatprep.subr.bf16.mxu0 %v1029
        %1497 = vmatpush1.bf16.msra.mxu0 %v1028
        %1498 = vmatprep.subr.bf16.mxu0 %v1033
        %1499 = vmatpush1.bf16.msra.mxu0 %v1032
        %1500 = vmatprep.subr.bf16.mxu0 %v1037
        %1501 = vmatpush1.bf16.msra.mxu0 %v1036
        %1502 = vmatprep.subr.bf16.mxu0 %v1041
        %1503 = vmatpush1.bf16.msra.mxu0 %v1040
        %1504 = vmatprep.subr.bf16.mxu0 %v1045
        %1505 = vmatpush1.bf16.msra.mxu0 %v1044
        %1506 = vmatprep.subr.bf16.mxu0 %v1049
        %1507 = vmatpush1.bf16.msra.mxu0 %v1048
        %1508 = vmatprep.subr.bf16.mxu0 %v1053
        %1509 = vmatpush1.bf16.msra.mxu0 %v1052
        %1510 = vmatprep.subr.bf16.mxu0 %v1057
        %1511 = vmatpush1.bf16.msra.mxu0 %v1056
        %1512 = vmatprep.subr.bf16.mxu0 %v1061
        %1513 = vmatpush1.bf16.msra.mxu0 %v1060
        %1514 = vmatprep.subr.bf16.mxu0 %v1065
        %1515 = vmatpush1.bf16.msra.mxu0 %v1064
        %1516 = vmatprep.mubr.bf16.mxu0 %v438
        %1517 = vmatmul.mubr.bf16.gmra.mrb[0].mxu0 %v437
        %v1518 = vpop.f32.mrb[0].mxu0
        %v1519 = vadd.f32 %v609, %v1518
        %v1520 = vpop.f32.mrb[0].mxu0
        %v1521 = vadd.f32 %v613, %v1520
        %v1522 = vpop.f32.mrb[0].mxu0
        %v1523 = vadd.f32 %v609, %v1522
        %v1524 = vpop.f32.mrb[0].mxu0
        %v1525 = vadd.f32 %v613, %v1524
        %1526 = vmatprep.mubr.bf16.mxu0 %v442
        %1527 = vmatmul.mubr.bf16.gmra.mrb[0].mxu0 %v441
        %v1528 = vpop.f32.mrb[0].mxu0
        %v1529 = vadd.f32 %v609, %v1528
        %v1530 = vpop.f32.mrb[0].mxu0
        %v1531 = vadd.f32 %v613, %v1530
        %v1532 = vpop.f32.mrb[0].mxu0
        %v1533 = vadd.f32 %v609, %v1532
        %v1534 = vpop.f32.mrb[0].mxu0
        %v1535 = vadd.f32 %v613, %v1534
        %1536 = vmatprep.mubr.bf16.mxu0 %v446
        %1537 = vmatmul.mubr.bf16.gmra.mrb[0].mxu0 %v445
        %v1538 = vpop.f32.mrb[0].mxu0
        %v1539 = vadd.f32 %v609, %v1538
        %v1540 = vpop.f32.mrb[0].mxu0
        %v1541 = vadd.f32 %v613, %v1540
        %v1542 = vpop.f32.mrb[0].mxu0
        %v1543 = vadd.f32 %v609, %v1542
        %v1544 = vpop.f32.mrb[0].mxu0
        %v1545 = vadd.f32 %v613, %v1544
        %1546 = vmatprep.mubr.bf16.mxu0 %v450
        %1547 = vmatmul.mubr.bf16.gmra.mrb[0].mxu0 %v449
        %v1548 = vpop.f32.mrb[0].mxu0
        %v1549 = vadd.f32 %v609, %v1548
        %v1550 = vpop.f32.mrb[0].mxu0
        %v1551 = vadd.f32 %v613, %v1550
        %v1552 = vpop.f32.mrb[0].mxu0
        %v1553 = vadd.f32 %v609, %v1552
        %v1554 = vpop.f32.mrb[0].mxu0
        %v1555 = vadd.f32 %v613, %v1554
        %1556 = vmatprep.mubr.bf16.mxu0 %v454
        %1557 = vmatmul.mubr.bf16.gmra.mrb[0].mxu0 %v453
        %v1558 = vpop.f32.mrb[0].mxu0
        %v1559 = vadd.f32 %v609, %v1558
        %v1560 = vpop.f32.mrb[0].mxu0
        %v1561 = vadd.f32 %v613, %v1560
        %v1562 = vpop.f32.mrb[0].mxu0
        %v1563 = vadd.f32 %v609, %v1562
        %v1564 = vpop.f32.mrb[0].mxu0
        %v1565 = vadd.f32 %v613, %v1564
        %1566 = vmatprep.mubr.bf16.mxu0 %v458
        %1567 = vmatmul.mubr.bf16.gmra.mrb[0].mxu0 %v457
        %v1568 = vpop.f32.mrb[0].mxu0
        %v1569 = vadd.f32 %v609, %v1568
        %v1570 = vpop.f32.mrb[0].mxu0
        %v1571 = vadd.f32 %v613, %v1570
        %v1572 = vpop.f32.mrb[0].mxu0
        %v1573 = vadd.f32 %v609, %v1572
        %v1574 = vpop.f32.mrb[0].mxu0
        %v1575 = vadd.f32 %v613, %v1574
        %1576 = vmatprep.mubr.bf16.mxu0 %v462
        %1577 = vmatmul.mubr.bf16.gmra.mrb[0].mxu0 %v461
        %v1578 = vpop.f32.mrb[0].mxu0
        %v1579 = vadd.f32 %v609, %v1578
        %v1580 = vpop.f32.mrb[0].mxu0
        %v1581 = vadd.f32 %v613, %v1580
        %v1582 = vpop.f32.mrb[0].mxu0
        %v1583 = vadd.f32 %v609, %v1582
        %v1584 = vpop.f32.mrb[0].mxu0
        %v1585 = vadd.f32 %v613, %v1584
        %1586 = vmatprep.mubr.bf16.mxu0 %v466
        %1587 = vmatmul.mubr.bf16.gmra.mrb[0].mxu0 %v465
        %v1588 = vpop.f32.mrb[0].mxu0
        %v1589 = vadd.f32 %v609, %v1588
        %v1590 = vpop.f32.mrb[0].mxu0
        %v1591 = vadd.f32 %v613, %v1590
        %v1592 = vpop.f32.mrb[0].mxu0
        %v1593 = vadd.f32 %v609, %v1592
        %v1594 = vpop.f32.mrb[0].mxu0
        %v1595 = vadd.f32 %v613, %v1594
        %1596 = vdwg.mxu0
        %1597 = vmatprep.subr.bf16.mxu0 %v1069
        %1598 = vmatpush1.bf16.msra.mxu0 %v1068
        %1599 = vmatprep.subr.bf16.mxu0 %v1073
        %1600 = vmatpush1.bf16.msra.mxu0 %v1072
        %1601 = vmatprep.subr.bf16.mxu0 %v1077
        %1602 = vmatpush1.bf16.msra.mxu0 %v1076
        %1603 = vmatprep.subr.bf16.mxu0 %v1081
        %1604 = vmatpush1.bf16.msra.mxu0 %v1080
        %1605 = vmatprep.subr.bf16.mxu0 %v1085
        %1606 = vmatpush1.bf16.msra.mxu0 %v1084
        %1607 = vmatprep.subr.bf16.mxu0 %v1089
        %1608 = vmatpush1.bf16.msra.mxu0 %v1088
        %1609 = vmatprep.subr.bf16.mxu0 %v1093
        %1610 = vmatpush1.bf16.msra.mxu0 %v1092
        %1611 = vmatprep.subr.bf16.mxu0 %v1097
        %1612 = vmatpush1.bf16.msra.mxu0 %v1096
        %1613 = vmatprep.subr.bf16.mxu0 %v1101
        %1614 = vmatpush1.bf16.msra.mxu0 %v1100
        %1615 = vmatprep.subr.bf16.mxu0 %v1105
        %1616 = vmatpush1.bf16.msra.mxu0 %v1104
        %1617 = vmatprep.subr.bf16.mxu0 %v1109
        %1618 = vmatpush1.bf16.msra.mxu0 %v1108
        %1619 = vmatprep.subr.bf16.mxu0 %v1113
        %1620 = vmatpush1.bf16.msra.mxu0 %v1112
        %1621 = vmatprep.subr.bf16.mxu0 %v1117
        %1622 = vmatpush1.bf16.msra.mxu0 %v1116
        %1623 = vmatprep.subr.bf16.mxu0 %v1121
        %1624 = vmatpush1.bf16.msra.mxu0 %v1120
        %1625 = vmatprep.subr.bf16.mxu0 %v1125
        %1626 = vmatpush1.bf16.msra.mxu0 %v1124
        %1627 = vmatprep.subr.bf16.mxu0 %v1129
        %1628 = vmatpush1.bf16.msra.mxu0 %v1128
        %1629 = vmatprep.mubr.bf16.mxu0 %v440
        %1630 = vmatmul.mubr.bf16.gmra.mrb[0].mxu0 %v439
        %v1631 = vpop.f32.mrb[0].mxu0
        %v1632 = vadd.f32 %v1519, %v1631
        %v1633 = vpop.f32.mrb[0].mxu0
        %v1634 = vadd.f32 %v1521, %v1633
        %v1635 = vpop.f32.mrb[0].mxu0
        %v1636 = vadd.f32 %v1523, %v1635
        %v1637 = vpop.f32.mrb[0].mxu0
        %v1638 = vadd.f32 %v1525, %v1637
        %1639 = vmatprep.mubr.bf16.mxu0 %v444
        %1640 = vmatmul.mubr.bf16.gmra.mrb[0].mxu0 %v443
        %v1641 = vpop.f32.mrb[0].mxu0
        %v1642 = vadd.f32 %v1529, %v1641
        %v1643 = vpop.f32.mrb[0].mxu0
        %v1644 = vadd.f32 %v1531, %v1643
        %v1645 = vpop.f32.mrb[0].mxu0
        %v1646 = vadd.f32 %v1533, %v1645
        %v1647 = vpop.f32.mrb[0].mxu0
        %v1648 = vadd.f32 %v1535, %v1647
        %1649 = vmatprep.mubr.bf16.mxu0 %v448
        %1650 = vmatmul.mubr.bf16.gmra.mrb[0].mxu0 %v447
        %v1651 = vpop.f32.mrb[0].mxu0
        %v1652 = vadd.f32 %v1539, %v1651
        %v1653 = vpop.f32.mrb[0].mxu0
        %v1654 = vadd.f32 %v1541, %v1653
        %v1655 = vpop.f32.mrb[0].mxu0
        %v1656 = vadd.f32 %v1543, %v1655
        %v1657 = vpop.f32.mrb[0].mxu0
        %v1658 = vadd.f32 %v1545, %v1657
        %1659 = vmatprep.mubr.bf16.mxu0 %v452
        %1660 = vmatmul.mubr.bf16.gmra.mrb[0].mxu0 %v451
        %v1661 = vpop.f32.mrb[0].mxu0
        %v1662 = vadd.f32 %v1549, %v1661
        %v1663 = vpop.f32.mrb[0].mxu0
        %v1664 = vadd.f32 %v1551, %v1663
        %v1665 = vpop.f32.mrb[0].mxu0
        %v1666 = vadd.f32 %v1553, %v1665
        %v1667 = vpop.f32.mrb[0].mxu0
        %v1668 = vadd.f32 %v1555, %v1667
        %1669 = vmatprep.mubr.bf16.mxu0 %v456
        %1670 = vmatmul.mubr.bf16.gmra.mrb[0].mxu0 %v455
        %v1671 = vpop.f32.mrb[0].mxu0
        %v1672 = vadd.f32 %v1559, %v1671
        %v1673 = vpop.f32.mrb[0].mxu0
        %v1674 = vadd.f32 %v1561, %v1673
        %v1675 = vpop.f32.mrb[0].mxu0
        %v1676 = vadd.f32 %v1563, %v1675
        %v1677 = vpop.f32.mrb[0].mxu0
        %v1678 = vadd.f32 %v1565, %v1677
        %1679 = vmatprep.mubr.bf16.mxu0 %v460
        %1680 = vmatmul.mubr.bf16.gmra.mrb[0].mxu0 %v459
        %v1681 = vpop.f32.mrb[0].mxu0
        %v1682 = vadd.f32 %v1569, %v1681
        %v1683 = vpop.f32.mrb[0].mxu0
        %v1684 = vadd.f32 %v1571, %v1683
        %v1685 = vpop.f32.mrb[0].mxu0
        %v1686 = vadd.f32 %v1573, %v1685
        %v1687 = vpop.f32.mrb[0].mxu0
        %v1688 = vadd.f32 %v1575, %v1687
        %1689 = vmatprep.mubr.bf16.mxu0 %v464
        %1690 = vmatmul.mubr.bf16.gmra.mrb[0].mxu0 %v463
        %v1691 = vpop.f32.mrb[0].mxu0
        %v1692 = vadd.f32 %v1579, %v1691
        %v1693 = vpop.f32.mrb[0].mxu0
        %v1694 = vadd.f32 %v1581, %v1693
        %v1695 = vpop.f32.mrb[0].mxu0
        %v1696 = vadd.f32 %v1583, %v1695
        %v1697 = vpop.f32.mrb[0].mxu0
        %v1698 = vadd.f32 %v1585, %v1697
        %1699 = vmatprep.mubr.bf16.mxu0 %v468
        %1700 = vmatmul.mubr.bf16.gmra.mrb[0].mxu0 %v467
        %v1701 = vpop.f32.mrb[0].mxu0
        %v1702 = vadd.f32 %v1589, %v1701
        %v1703 = vpop.f32.mrb[0].mxu0
        %v1704 = vadd.f32 %v1591, %v1703
        %v1705 = vpop.f32.mrb[0].mxu0
        %v1706 = vadd.f32 %v1593, %v1705
        %v1707 = vpop.f32.mrb[0].mxu0
        %v1708 = vadd.f32 %v1595, %v1707
        %1709 = vdwg.mxu0
        %v1710 = vmax.f32 %v1406, 0.0
        %v1711 = vmax.f32 %v1408, 0.0
        %v1712 = vmax.f32 %v1632, 0.0
        %v1713 = vmax.f32 %v1634, 0.0
        %v1714 = vmax.f32 %v1410, 0.0
        %v1715 = vmax.f32 %v1412, 0.0
        %v1716 = vmax.f32 %v1636, 0.0
        %v1717 = vmax.f32 %v1638, 0.0
        %v1718 = vmax.f32 %v1416, 0.0
        %v1719 = vmax.f32 %v1418, 0.0
        %v1720 = vmax.f32 %v1642, 0.0
        %v1721 = vmax.f32 %v1644, 0.0
        %v1722 = vmax.f32 %v1420, 0.0
        %v1723 = vmax.f32 %v1422, 0.0
        %v1724 = vmax.f32 %v1646, 0.0
        %v1725 = vmax.f32 %v1648, 0.0
        %v1726 = vmax.f32 %v1426, 0.0
        %v1727 = vmax.f32 %v1428, 0.0
        %v1728 = vmax.f32 %v1652, 0.0
        %v1729 = vmax.f32 %v1654, 0.0
        %v1730 = vmax.f32 %v1430, 0.0
        %v1731 = vmax.f32 %v1432, 0.0
        %v1732 = vmax.f32 %v1656, 0.0
        %v1733 = vmax.f32 %v1658, 0.0
        %v1734 = vmax.f32 %v1436, 0.0
        %v1735 = vmax.f32 %v1438, 0.0
        %v1736 = vmax.f32 %v1662, 0.0
        %v1737 = vmax.f32 %v1664, 0.0
        %v1738 = vmax.f32 %v1440, 0.0
        %v1739 = vmax.f32 %v1442, 0.0
        %v1740 = vmax.f32 %v1666, 0.0
        %v1741 = vmax.f32 %v1668, 0.0
        %v1742 = vmax.f32 %v1446, 0.0
        %v1743 = vmax.f32 %v1448, 0.0
        %v1744 = vmax.f32 %v1672, 0.0
        %v1745 = vmax.f32 %v1674, 0.0
        %v1746 = vmax.f32 %v1450, 0.0
        %v1747 = vmax.f32 %v1452, 0.0
        %v1748 = vmax.f32 %v1676, 0.0
        %v1749 = vmax.f32 %v1678, 0.0
        %v1750 = vmax.f32 %v1456, 0.0
        %v1751 = vmax.f32 %v1458, 0.0
        %v1752 = vmax.f32 %v1682, 0.0
        %v1753 = vmax.f32 %v1684, 0.0
        %v1754 = vmax.f32 %v1460, 0.0
        %v1755 = vmax.f32 %v1462, 0.0
        %v1756 = vmax.f32 %v1686, 0.0
        %v1757 = vmax.f32 %v1688, 0.0
        %v1758 = vmax.f32 %v1466, 0.0
        %v1759 = vmax.f32 %v1468, 0.0
        %v1760 = vmax.f32 %v1692, 0.0
        %v1761 = vmax.f32 %v1694, 0.0
        %v1762 = vmax.f32 %v1470, 0.0
        %v1763 = vmax.f32 %v1472, 0.0
        %v1764 = vmax.f32 %v1696, 0.0
        %v1765 = vmax.f32 %v1698, 0.0
        %v1766 = vmax.f32 %v1476, 0.0
        %v1767 = vmax.f32 %v1478, 0.0
        %v1768 = vmax.f32 %v1702, 0.0
        %v1769 = vmax.f32 %v1704, 0.0
        %v1770 = vmax.f32 %v1480, 0.0
        %v1771 = vmax.f32 %v1482, 0.0
        %v1772 = vmax.f32 %v1706, 0.0
        %v1773 = vmax.f32 %v1708, 0.0
        %v1774 = vadd.f32 %v1710, %v1714
        %v1775 = vadd.f32 %v1774, %v1718
        %v1776 = vadd.f32 %v1775, %v1722
        %v1777 = vadd.f32 %v1776, %v1726
        %v1778 = vadd.f32 %v1777, %v1730
        %v1779 = vadd.f32 %v1778, %v1734
        %v1780 = vadd.f32 %v1779, %v1738
        %v1781 = vadd.f32 %v1780, %v1742
        %v1782 = vadd.f32 %v1781, %v1746
        %v1783 = vadd.f32 %v1782, %v1750
        %v1784 = vadd.f32 %v1783, %v1754
        %v1785 = vadd.f32 %v1784, %v1758
        %v1786 = vadd.f32 %v1785, %v1762
        %v1787 = vadd.f32 %v1786, %v1766
        %v1788 = vadd.f32 %v1787, %v1770
        %v1789 = vrot.slane %v1788, 4
        %v1790 = vadd.f32 %v1788, %v1789
        %v1791 = vrot.slane %v1790, 2
        %v1792 = vadd.f32 %v1790, %v1791
        %v1793 = vrot.slane %v1792, 1
        %v1794 = vadd.f32 %v1792, %v1793
        %v1795 = vadd.f32 %v1711, %v1715
        %v1796 = vadd.f32 %v1795, %v1719
        %v1797 = vadd.f32 %v1796, %v1723
        %v1798 = vadd.f32 %v1797, %v1727
        %v1799 = vadd.f32 %v1798, %v1731
        %v1800 = vadd.f32 %v1799, %v1735
        %v1801 = vadd.f32 %v1800, %v1739
        %v1802 = vadd.f32 %v1801, %v1743
        %v1803 = vadd.f32 %v1802, %v1747
        %v1804 = vadd.f32 %v1803, %v1751
        %v1805 = vadd.f32 %v1804, %v1755
        %v1806 = vadd.f32 %v1805, %v1759
        %v1807 = vadd.f32 %v1806, %v1763
        %v1808 = vadd.f32 %v1807, %v1767
        %v1809 = vadd.f32 %v1808, %v1771
        %v1810 = vrot.slane %v1809, 4
        %v1811 = vadd.f32 %v1809, %v1810
        %v1812 = vrot.slane %v1811, 2
        %v1813 = vadd.f32 %v1811, %v1812
        %v1814 = vrot.slane %v1813, 1
        %v1815 = vadd.f32 %v1813, %v1814
        %v1816 = vadd.f32 %v1712, %v1716
        %v1817 = vadd.f32 %v1816, %v1720
        %v1818 = vadd.f32 %v1817, %v1724
        %v1819 = vadd.f32 %v1818, %v1728
        %v1820 = vadd.f32 %v1819, %v1732
        %v1821 = vadd.f32 %v1820, %v1736
        %v1822 = vadd.f32 %v1821, %v1740
        %v1823 = vadd.f32 %v1822, %v1744
        %v1824 = vadd.f32 %v1823, %v1748
        %v1825 = vadd.f32 %v1824, %v1752
        %v1826 = vadd.f32 %v1825, %v1756
        %v1827 = vadd.f32 %v1826, %v1760
        %v1828 = vadd.f32 %v1827, %v1764
        %v1829 = vadd.f32 %v1828, %v1768
        %v1830 = vadd.f32 %v1829, %v1772
        %v1831 = vrot.slane %v1830, 4
        %v1832 = vadd.f32 %v1830, %v1831
        %v1833 = vrot.slane %v1832, 2
        %v1834 = vadd.f32 %v1832, %v1833
        %v1835 = vrot.slane %v1834, 1
        %v1836 = vadd.f32 %v1834, %v1835
        %v1837 = vadd.f32 %v1713, %v1717
        %v1838 = vadd.f32 %v1837, %v1721
        %v1839 = vadd.f32 %v1838, %v1725
        %v1840 = vadd.f32 %v1839, %v1729
        %v1841 = vadd.f32 %v1840, %v1733
        %v1842 = vadd.f32 %v1841, %v1737
        %v1843 = vadd.f32 %v1842, %v1741
        %v1844 = vadd.f32 %v1843, %v1745
        %v1845 = vadd.f32 %v1844, %v1749
        %v1846 = vadd.f32 %v1845, %v1753
        %v1847 = vadd.f32 %v1846, %v1757
        %v1848 = vadd.f32 %v1847, %v1761
        %v1849 = vadd.f32 %v1848, %v1765
        %v1850 = vadd.f32 %v1849, %v1769
        %v1851 = vadd.f32 %v1850, %v1773
        %v1852 = vrot.slane %v1851, 4
        %v1853 = vadd.f32 %v1851, %v1852
        %v1854 = vrot.slane %v1853, 2
        %v1855 = vadd.f32 %v1853, %v1854
        %v1856 = vrot.slane %v1855, 1
        %v1857 = vadd.f32 %v1855, %v1856
        %v1858 = vmul.f32 %v1794, 0.0078125
        %v1859 = vmul.f32 %v1815, 0.0078125
        %v1860 = vmul.f32 %v1836, 0.0078125
        %v1861 = vmul.f32 %v1857, 0.0078125
        %v1862 = vmul.f32 %v1710, %v1710
        %v1863 = vmul.f32 %v1711, %v1711
        %v1864 = vmul.f32 %v1712, %v1712
        %v1865 = vmul.f32 %v1713, %v1713
        %v1866 = vmul.f32 %v1714, %v1714
        %v1867 = vmul.f32 %v1715, %v1715
        %v1868 = vmul.f32 %v1716, %v1716
        %v1869 = vmul.f32 %v1717, %v1717
        %v1870 = vmul.f32 %v1718, %v1718
        %v1871 = vmul.f32 %v1719, %v1719
        %v1872 = vmul.f32 %v1720, %v1720
        %v1873 = vmul.f32 %v1721, %v1721
        %v1874 = vmul.f32 %v1722, %v1722
        %v1875 = vmul.f32 %v1723, %v1723
        %v1876 = vmul.f32 %v1724, %v1724
        %v1877 = vmul.f32 %v1725, %v1725
        %v1878 = vmul.f32 %v1726, %v1726
        %v1879 = vmul.f32 %v1727, %v1727
        %v1880 = vmul.f32 %v1728, %v1728
        %v1881 = vmul.f32 %v1729, %v1729
        %v1882 = vmul.f32 %v1730, %v1730
        %v1883 = vmul.f32 %v1731, %v1731
        %v1884 = vmul.f32 %v1732, %v1732
        %v1885 = vmul.f32 %v1733, %v1733
        %v1886 = vmul.f32 %v1734, %v1734
        %v1887 = vmul.f32 %v1735, %v1735
        %v1888 = vmul.f32 %v1736, %v1736
        %v1889 = vmul.f32 %v1737, %v1737
        %v1890 = vmul.f32 %v1738, %v1738
        %v1891 = vmul.f32 %v1739, %v1739
        %v1892 = vmul.f32 %v1740, %v1740
        %v1893 = vmul.f32 %v1741, %v1741
        %v1894 = vmul.f32 %v1742, %v1742
        %v1895 = vmul.f32 %v1743, %v1743
        %v1896 = vmul.f32 %v1744, %v1744
        %v1897 = vmul.f32 %v1745, %v1745
        %v1898 = vmul.f32 %v1746, %v1746
        %v1899 = vmul.f32 %v1747, %v1747
        %v1900 = vmul.f32 %v1748, %v1748
        %v1901 = vmul.f32 %v1749, %v1749
        %v1902 = vmul.f32 %v1750, %v1750
        %v1903 = vmul.f32 %v1751, %v1751
        %v1904 = vmul.f32 %v1752, %v1752
        %v1905 = vmul.f32 %v1753, %v1753
        %v1906 = vmul.f32 %v1754, %v1754
        %v1907 = vmul.f32 %v1755, %v1755
        %v1908 = vmul.f32 %v1756, %v1756
        %v1909 = vmul.f32 %v1757, %v1757
        %v1910 = vmul.f32 %v1758, %v1758
        %v1911 = vmul.f32 %v1759, %v1759
        %v1912 = vmul.f32 %v1760, %v1760
        %v1913 = vmul.f32 %v1761, %v1761
        %v1914 = vmul.f32 %v1762, %v1762
        %v1915 = vmul.f32 %v1763, %v1763
        %v1916 = vmul.f32 %v1764, %v1764
        %v1917 = vmul.f32 %v1765, %v1765
        %v1918 = vmul.f32 %v1766, %v1766
        %v1919 = vmul.f32 %v1767, %v1767
        %v1920 = vmul.f32 %v1768, %v1768
        %v1921 = vmul.f32 %v1769, %v1769
        %v1922 = vmul.f32 %v1770, %v1770
        %v1923 = vmul.f32 %v1771, %v1771
        %v1924 = vmul.f32 %v1772, %v1772
        %v1925 = vmul.f32 %v1773, %v1773
        %v1926 = vadd.f32 %v1862, %v1866
        %v1927 = vadd.f32 %v1926, %v1870
        %v1928 = vadd.f32 %v1927, %v1874
        %v1929 = vadd.f32 %v1928, %v1878
        %v1930 = vadd.f32 %v1929, %v1882
        %v1931 = vadd.f32 %v1930, %v1886
        %v1932 = vadd.f32 %v1931, %v1890
        %v1933 = vadd.f32 %v1932, %v1894
        %v1934 = vadd.f32 %v1933, %v1898
        %v1935 = vadd.f32 %v1934, %v1902
        %v1936 = vadd.f32 %v1935, %v1906
        %v1937 = vadd.f32 %v1936, %v1910
        %v1938 = vadd.f32 %v1937, %v1914
        %v1939 = vadd.f32 %v1938, %v1918
        %v1940 = vadd.f32 %v1939, %v1922
        %v1941 = vrot.slane %v1940, 4
        %v1942 = vadd.f32 %v1940, %v1941
        %v1943 = vrot.slane %v1942, 2
        %v1944 = vadd.f32 %v1942, %v1943
        %v1945 = vrot.slane %v1944, 1
        %v1946 = vadd.f32 %v1944, %v1945
        %v1947 = vadd.f32 %v1863, %v1867
        %v1948 = vadd.f32 %v1947, %v1871
        %v1949 = vadd.f32 %v1948, %v1875
        %v1950 = vadd.f32 %v1949, %v1879
        %v1951 = vadd.f32 %v1950, %v1883
        %v1952 = vadd.f32 %v1951, %v1887
        %v1953 = vadd.f32 %v1952, %v1891
        %v1954 = vadd.f32 %v1953, %v1895
        %v1955 = vadd.f32 %v1954, %v1899
        %v1956 = vadd.f32 %v1955, %v1903
        %v1957 = vadd.f32 %v1956, %v1907
        %v1958 = vadd.f32 %v1957, %v1911
        %v1959 = vadd.f32 %v1958, %v1915
        %v1960 = vadd.f32 %v1959, %v1919
        %v1961 = vadd.f32 %v1960, %v1923
        %v1962 = vrot.slane %v1961, 4
        %v1963 = vadd.f32 %v1961, %v1962
        %v1964 = vrot.slane %v1963, 2
        %v1965 = vadd.f32 %v1963, %v1964
        %v1966 = vrot.slane %v1965, 1
        %v1967 = vadd.f32 %v1965, %v1966
        %v1968 = vadd.f32 %v1864, %v1868
        %v1969 = vadd.f32 %v1968, %v1872
        %v1970 = vadd.f32 %v1969, %v1876
        %v1971 = vadd.f32 %v1970, %v1880
        %v1972 = vadd.f32 %v1971, %v1884
        %v1973 = vadd.f32 %v1972, %v1888
        %v1974 = vadd.f32 %v1973, %v1892
        %v1975 = vadd.f32 %v1974, %v1896
        %v1976 = vadd.f32 %v1975, %v1900
        %v1977 = vadd.f32 %v1976, %v1904
        %v1978 = vadd.f32 %v1977, %v1908
        %v1979 = vadd.f32 %v1978, %v1912
        %v1980 = vadd.f32 %v1979, %v1916
        %v1981 = vadd.f32 %v1980, %v1920
        %v1982 = vadd.f32 %v1981, %v1924
        %v1983 = vrot.slane %v1982, 4
        %v1984 = vadd.f32 %v1982, %v1983
        %v1985 = vrot.slane %v1984, 2
        %v1986 = vadd.f32 %v1984, %v1985
        %v1987 = vrot.slane %v1986, 1
        %v1988 = vadd.f32 %v1986, %v1987
        %v1989 = vadd.f32 %v1865, %v1869
        %v1990 = vadd.f32 %v1989, %v1873
        %v1991 = vadd.f32 %v1990, %v1877
        %v1992 = vadd.f32 %v1991, %v1881
        %v1993 = vadd.f32 %v1992, %v1885
        %v1994 = vadd.f32 %v1993, %v1889
        %v1995 = vadd.f32 %v1994, %v1893
        %v1996 = vadd.f32 %v1995, %v1897
        %v1997 = vadd.f32 %v1996, %v1901
        %v1998 = vadd.f32 %v1997, %v1905
        %v1999 = vadd.f32 %v1998, %v1909
        %v2000 = vadd.f32 %v1999, %v1913
        %v2001 = vadd.f32 %v2000, %v1917
        %v2002 = vadd.f32 %v2001, %v1921
        %v2003 = vadd.f32 %v2002, %v1925
        %v2004 = vrot.slane %v2003, 4
        %v2005 = vadd.f32 %v2003, %v2004
        %v2006 = vrot.slane %v2005, 2
        %v2007 = vadd.f32 %v2005, %v2006
        %v2008 = vrot.slane %v2007, 1
        %v2009 = vadd.f32 %v2007, %v2008
        %v2010 = vmul.f32 %v1946, 0.0078125
        %v2011 = vmul.f32 %v1967, 0.0078125
        %v2012 = vmul.f32 %v1988, 0.0078125
        %v2013 = vmul.f32 %v2009, 0.0078125
        %v2014 = vmul.f32 %v1858, %v1858
        %v2015 = vmul.f32 %v1859, %v1859
        %v2016 = vmul.f32 %v1860, %v1860
        %v2017 = vmul.f32 %v1861, %v1861
        %v2018 = vsub.f32 %v2010, %v2014
        %v2019 = vsub.f32 %v2011, %v2015
        %v2020 = vsub.f32 %v2012, %v2016
        %v2021 = vsub.f32 %v2013, %v2017
        %v2022 = vsub.f32 %v1710, %v1858
        %v2023 = vsub.f32 %v1711, %v1859
        %v2024 = vsub.f32 %v1712, %v1860
        %v2025 = vsub.f32 %v1713, %v1861
        %v2026 = vsub.f32 %v1714, %v1858
        %v2027 = vsub.f32 %v1715, %v1859
        %v2028 = vsub.f32 %v1716, %v1860
        %v2029 = vsub.f32 %v1717, %v1861
        %v2030 = vsub.f32 %v1718, %v1858
        %v2031 = vsub.f32 %v1719, %v1859
        %v2032 = vsub.f32 %v1720, %v1860
        %v2033 = vsub.f32 %v1721, %v1861
        %v2034 = vsub.f32 %v1722, %v1858
        %v2035 = vsub.f32 %v1723, %v1859
        %v2036 = vsub.f32 %v1724, %v1860
        %v2037 = vsub.f32 %v1725, %v1861
        %v2038 = vsub.f32 %v1726, %v1858
        %v2039 = vsub.f32 %v1727, %v1859
        %v2040 = vsub.f32 %v1728, %v1860
        %v2041 = vsub.f32 %v1729, %v1861
        %v2042 = vsub.f32 %v1730, %v1858
        %v2043 = vsub.f32 %v1731, %v1859
        %v2044 = vsub.f32 %v1732, %v1860
        %v2045 = vsub.f32 %v1733, %v1861
        %v2046 = vsub.f32 %v1734, %v1858
        %v2047 = vsub.f32 %v1735, %v1859
        %v2048 = vsub.f32 %v1736, %v1860
        %v2049 = vsub.f32 %v1737, %v1861
        %v2050 = vsub.f32 %v1738, %v1858
        %v2051 = vsub.f32 %v1739, %v1859
        %v2052 = vsub.f32 %v1740, %v1860
        %v2053 = vsub.f32 %v1741, %v1861
        %v2054 = vsub.f32 %v1742, %v1858
        %v2055 = vsub.f32 %v1743, %v1859
        %v2056 = vsub.f32 %v1744, %v1860
        %v2057 = vsub.f32 %v1745, %v1861
        %v2058 = vsub.f32 %v1746, %v1858
        %v2059 = vsub.f32 %v1747, %v1859
        %v2060 = vsub.f32 %v1748, %v1860
        %v2061 = vsub.f32 %v1749, %v1861
        %v2062 = vsub.f32 %v1750, %v1858
        %v2063 = vsub.f32 %v1751, %v1859
        %v2064 = vsub.f32 %v1752, %v1860
        %v2065 = vsub.f32 %v1753, %v1861
        %v2066 = vsub.f32 %v1754, %v1858
        %v2067 = vsub.f32 %v1755, %v1859
        %v2068 = vsub.f32 %v1756, %v1860
        %v2069 = vsub.f32 %v1757, %v1861
        %v2070 = vsub.f32 %v1758, %v1858
        %v2071 = vsub.f32 %v1759, %v1859
        %v2072 = vsub.f32 %v1760, %v1860
        %v2073 = vsub.f32 %v1761, %v1861
        %v2074 = vsub.f32 %v1762, %v1858
        %v2075 = vsub.f32 %v1763, %v1859
        %v2076 = vsub.f32 %v1764, %v1860
        %v2077 = vsub.f32 %v1765, %v1861
        %v2078 = vsub.f32 %v1766, %v1858
        %v2079 = vsub.f32 %v1767, %v1859
        %v2080 = vsub.f32 %v1768, %v1860
        %v2081 = vsub.f32 %v1769, %v1861
        %v2082 = vsub.f32 %v1770, %v1858
        %v2083 = vsub.f32 %v1771, %v1859
        %v2084 = vsub.f32 %v1772, %v1860
        %v2085 = vsub.f32 %v1773, %v1861
        %v2086 = vadd.f32 %v2018, 1e-05
        %v2087 = vadd.f32 %v2019, 1e-05
        %v2088 = vadd.f32 %v2020, 1e-05
        %v2089 = vadd.f32 %v2021, 1e-05
        %v2090 = vrsqrt.pop %v2086
        %v2091 = vrsqrt.pop %v2087
        %v2092 = vrsqrt.pop %v2088
        %v2093 = vrsqrt.pop %v2089
        %v2094 = vmul.f32 %v2022, %v2090
        %v2095 = vmul.f32 %v2023, %v2091
        %v2096 = vmul.f32 %v2024, %v2092
        %v2097 = vmul.f32 %v2025, %v2093
        %v2098 = vmul.f32 %v2026, %v2090
        %v2099 = vmul.f32 %v2027, %v2091
        %v2100 = vmul.f32 %v2028, %v2092
        %v2101 = vmul.f32 %v2029, %v2093
        %v2102 = vmul.f32 %v2030, %v2090
        %v2103 = vmul.f32 %v2031, %v2091
        %v2104 = vmul.f32 %v2032, %v2092
        %v2105 = vmul.f32 %v2033, %v2093
        %v2106 = vmul.f32 %v2034, %v2090
        %v2107 = vmul.f32 %v2035, %v2091
        %v2108 = vmul.f32 %v2036, %v2092
        %v2109 = vmul.f32 %v2037, %v2093
        %v2110 = vmul.f32 %v2038, %v2090
        %v2111 = vmul.f32 %v2039, %v2091
        %v2112 = vmul.f32 %v2040, %v2092
        %v2113 = vmul.f32 %v2041, %v2093
        %v2114 = vmul.f32 %v2042, %v2090
        %v2115 = vmul.f32 %v2043, %v2091
        %v2116 = vmul.f32 %v2044, %v2092
        %v2117 = vmul.f32 %v2045, %v2093
        %v2118 = vmul.f32 %v2046, %v2090
        %v2119 = vmul.f32 %v2047, %v2091
        %v2120 = vmul.f32 %v2048, %v2092
        %v2121 = vmul.f32 %v2049, %v2093
        %v2122 = vmul.f32 %v2050, %v2090
        %v2123 = vmul.f32 %v2051, %v2091
        %v2124 = vmul.f32 %v2052, %v2092
        %v2125 = vmul.f32 %v2053, %v2093
        %v2126 = vmul.f32 %v2054, %v2090
        %v2127 = vmul.f32 %v2055, %v2091
        %v2128 = vmul.f32 %v2056, %v2092
        %v2129 = vmul.f32 %v2057, %v2093
        %v2130 = vmul.f32 %v2058, %v2090
        %v2131 = vmul.f32 %v2059, %v2091
        %v2132 = vmul.f32 %v2060, %v2092
        %v2133 = vmul.f32 %v2061, %v2093
        %v2134 = vmul.f32 %v2062, %v2090
        %v2135 = vmul.f32 %v2063, %v2091
        %v2136 = vmul.f32 %v2064, %v2092
        %v2137 = vmul.f32 %v2065, %v2093
        %v2138 = vmul.f32 %v2066, %v2090
        %v2139 = vmul.f32 %v2067, %v2091
        %v2140 = vmul.f32 %v2068, %v2092
        %v2141 = vmul.f32 %v2069, %v2093
        %v2142 = vmul.f32 %v2070, %v2090
        %v2143 = vmul.f32 %v2071, %v2091
        %v2144 = vmul.f32 %v2072, %v2092
        %v2145 = vmul.f32 %v2073, %v2093
        %v2146 = vmul.f32 %v2074, %v2090
        %v2147 = vmul.f32 %v2075, %v2091
        %v2148 = vmul.f32 %v2076, %v2092
        %v2149 = vmul.f32 %v2077, %v2093
        %v2150 = vmul.f32 %v2078, %v2090
        %v2151 = vmul.f32 %v2079, %v2091
        %v2152 = vmul.f32 %v2080, %v2092
        %v2153 = vmul.f32 %v2081, %v2093
        %v2154 = vmul.f32 %v2082, %v2090
        %v2155 = vmul.f32 %v2083, %v2091
        %v2156 = vmul.f32 %v2084, %v2092
        %v2157 = vmul.f32 %v2085, %v2093
        %v2159 = vlaneseq
        %v2160 = vshrl.u32 %v2159, 7
        %v2161 = vsub.s32 0, %v2160
        %v2162 = vrot.slane %v433, %v2161
        %v2163 = vlaneseq
        %v2164 = vshrl.u32 %v2163, 7
        %v2165 = vsub.s32 1, %v2164
        %v2166 = vrot.slane %v433, %v2165
        %v2167 = vlaneseq
        %v2168 = vshrl.u32 %v2167, 7
        %v2169 = vsub.s32 2, %v2168
        %v2170 = vrot.slane %v433, %v2169
        %v2171 = vlaneseq
        %v2172 = vshrl.u32 %v2171, 7
        %v2173 = vsub.s32 3, %v2172
        %v2174 = vrot.slane %v433, %v2173
        %v2179 = vmul.f32 %v2094, %v2162
        %v2180 = vmul.f32 %v2095, %v2166
        %v2181 = vmul.f32 %v2096, %v2170
        %v2182 = vmul.f32 %v2097, %v2174
        %v2183 = vmul.f32 %v2098, %v2162
        %v2184 = vmul.f32 %v2099, %v2166
        %v2185 = vmul.f32 %v2100, %v2170
        %v2186 = vmul.f32 %v2101, %v2174
        %v2187 = vmul.f32 %v2102, %v2162
        %v2188 = vmul.f32 %v2103, %v2166
        %v2189 = vmul.f32 %v2104, %v2170
        %v2190 = vmul.f32 %v2105, %v2174
        %v2191 = vmul.f32 %v2106, %v2162
        %v2192 = vmul.f32 %v2107, %v2166
        %v2193 = vmul.f32 %v2108, %v2170
        %v2194 = vmul.f32 %v2109, %v2174
        %v2195 = vmul.f32 %v2110, %v2162
        %v2196 = vmul.f32 %v2111, %v2166
        %v2197 = vmul.f32 %v2112, %v2170
        %v2198 = vmul.f32 %v2113, %v2174
        %v2199 = vmul.f32 %v2114, %v2162
        %v2200 = vmul.f32 %v2115, %v2166
        %v2201 = vmul.f32 %v2116, %v2170
        %v2202 = vmul.f32 %v2117, %v2174
        %v2203 = vmul.f32 %v2118, %v2162
        %v2204 = vmul.f32 %v2119, %v2166
        %v2205 = vmul.f32 %v2120, %v2170
        %v2206 = vmul.f32 %v2121, %v2174
        %v2207 = vmul.f32 %v2122, %v2162
        %v2208 = vmul.f32 %v2123, %v2166
        %v2209 = vmul.f32 %v2124, %v2170
        %v2210 = vmul.f32 %v2125, %v2174
        %v2211 = vmul.f32 %v2126, %v2162
        %v2212 = vmul.f32 %v2127, %v2166
        %v2213 = vmul.f32 %v2128, %v2170
        %v2214 = vmul.f32 %v2129, %v2174
        %v2215 = vmul.f32 %v2130, %v2162
        %v2216 = vmul.f32 %v2131, %v2166
        %v2217 = vmul.f32 %v2132, %v2170
        %v2218 = vmul.f32 %v2133, %v2174
        %v2219 = vmul.f32 %v2134, %v2162
        %v2220 = vmul.f32 %v2135, %v2166
        %v2221 = vmul.f32 %v2136, %v2170
        %v2222 = vmul.f32 %v2137, %v2174
        %v2223 = vmul.f32 %v2138, %v2162
        %v2224 = vmul.f32 %v2139, %v2166
        %v2225 = vmul.f32 %v2140, %v2170
        %v2226 = vmul.f32 %v2141, %v2174
        %v2227 = vmul.f32 %v2142, %v2162
        %v2228 = vmul.f32 %v2143, %v2166
        %v2229 = vmul.f32 %v2144, %v2170
        %v2230 = vmul.f32 %v2145, %v2174
        %v2231 = vmul.f32 %v2146, %v2162
        %v2232 = vmul.f32 %v2147, %v2166
        %v2233 = vmul.f32 %v2148, %v2170
        %v2234 = vmul.f32 %v2149, %v2174
        %v2235 = vmul.f32 %v2150, %v2162
        %v2236 = vmul.f32 %v2151, %v2166
        %v2237 = vmul.f32 %v2152, %v2170
        %v2238 = vmul.f32 %v2153, %v2174
        %v2239 = vmul.f32 %v2154, %v2162
        %v2240 = vmul.f32 %v2155, %v2166
        %v2241 = vmul.f32 %v2156, %v2170
        %v2242 = vmul.f32 %v2157, %v2174
        %v2244 = vlaneseq
        %v2245 = vshrl.u32 %v2244, 7
        %v2246 = vsub.s32 0, %v2245
        %v2247 = vrot.slane %v434, %v2246
        %v2248 = vlaneseq
        %v2249 = vshrl.u32 %v2248, 7
        %v2250 = vsub.s32 1, %v2249
        %v2251 = vrot.slane %v434, %v2250
        %v2252 = vlaneseq
        %v2253 = vshrl.u32 %v2252, 7
        %v2254 = vsub.s32 2, %v2253
        %v2255 = vrot.slane %v434, %v2254
        %v2256 = vlaneseq
        %v2257 = vshrl.u32 %v2256, 7
        %v2258 = vsub.s32 3, %v2257
        %v2259 = vrot.slane %v434, %v2258
        %v2264 = vadd.f32 %v2179, %v2247
        %v2265 = vadd.f32 %v2180, %v2251
        %v2266 = vadd.f32 %v2181, %v2255
        %v2267 = vadd.f32 %v2182, %v2259
        %v2268 = vadd.f32 %v2183, %v2247
        %v2269 = vadd.f32 %v2184, %v2251
        %v2270 = vadd.f32 %v2185, %v2255
        %v2271 = vadd.f32 %v2186, %v2259
        %v2272 = vadd.f32 %v2187, %v2247
        %v2273 = vadd.f32 %v2188, %v2251
        %v2274 = vadd.f32 %v2189, %v2255
        %v2275 = vadd.f32 %v2190, %v2259
        %v2276 = vadd.f32 %v2191, %v2247
        %v2277 = vadd.f32 %v2192, %v2251
        %v2278 = vadd.f32 %v2193, %v2255
        %v2279 = vadd.f32 %v2194, %v2259
        %v2280 = vadd.f32 %v2195, %v2247
        %v2281 = vadd.f32 %v2196, %v2251
        %v2282 = vadd.f32 %v2197, %v2255
        %v2283 = vadd.f32 %v2198, %v2259
        %v2284 = vadd.f32 %v2199, %v2247
        %v2285 = vadd.f32 %v2200, %v2251
        %v2286 = vadd.f32 %v2201, %v2255
        %v2287 = vadd.f32 %v2202, %v2259
        %v2288 = vadd.f32 %v2203, %v2247
        %v2289 = vadd.f32 %v2204, %v2251
        %v2290 = vadd.f32 %v2205, %v2255
        %v2291 = vadd.f32 %v2206, %v2259
        %v2292 = vadd.f32 %v2207, %v2247
        %v2293 = vadd.f32 %v2208, %v2251
        %v2294 = vadd.f32 %v2209, %v2255
        %v2295 = vadd.f32 %v2210, %v2259
        %v2296 = vadd.f32 %v2211, %v2247
        %v2297 = vadd.f32 %v2212, %v2251
        %v2298 = vadd.f32 %v2213, %v2255
        %v2299 = vadd.f32 %v2214, %v2259
        %v2300 = vadd.f32 %v2215, %v2247
        %v2301 = vadd.f32 %v2216, %v2251
        %v2302 = vadd.f32 %v2217, %v2255
        %v2303 = vadd.f32 %v2218, %v2259
        %v2304 = vadd.f32 %v2219, %v2247
        %v2305 = vadd.f32 %v2220, %v2251
        %v2306 = vadd.f32 %v2221, %v2255
        %v2307 = vadd.f32 %v2222, %v2259
        %v2308 = vadd.f32 %v2223, %v2247
        %v2309 = vadd.f32 %v2224, %v2251
        %v2310 = vadd.f32 %v2225, %v2255
        %v2311 = vadd.f32 %v2226, %v2259
        %v2312 = vadd.f32 %v2227, %v2247
        %v2313 = vadd.f32 %v2228, %v2251
        %v2314 = vadd.f32 %v2229, %v2255
        %v2315 = vadd.f32 %v2230, %v2259
        %v2316 = vadd.f32 %v2231, %v2247
        %v2317 = vadd.f32 %v2232, %v2251
        %v2318 = vadd.f32 %v2233, %v2255
        %v2319 = vadd.f32 %v2234, %v2259
        %v2320 = vadd.f32 %v2235, %v2247
        %v2321 = vadd.f32 %v2236, %v2251
        %v2322 = vadd.f32 %v2237, %v2255
        %v2323 = vadd.f32 %v2238, %v2259
        %v2324 = vadd.f32 %v2239, %v2247
        %v2325 = vadd.f32 %v2240, %v2251
        %v2326 = vadd.f32 %v2241, %v2255
        %v2327 = vadd.f32 %v2242, %v2259
        %v2328 = vpack.c.bf16 %v2268, %v2264
        %v2329 = vpack.c.bf16 %v2269, %v2265
        %v2330 = vpack.c.bf16 %v2270, %v2266
        %v2331 = vpack.c.bf16 %v2271, %v2267
        %v2332 = vpack.c.bf16 %v2276, %v2272
        %v2333 = vpack.c.bf16 %v2277, %v2273
        %v2334 = vpack.c.bf16 %v2278, %v2274
        %v2335 = vpack.c.bf16 %v2279, %v2275
        %v2336 = vpack.c.bf16 %v2284, %v2280
        %v2337 = vpack.c.bf16 %v2285, %v2281
        %v2338 = vpack.c.bf16 %v2286, %v2282
        %v2339 = vpack.c.bf16 %v2287, %v2283
        %v2340 = vpack.c.bf16 %v2292, %v2288
        %v2341 = vpack.c.bf16 %v2293, %v2289
        %v2342 = vpack.c.bf16 %v2294, %v2290
        %v2343 = vpack.c.bf16 %v2295, %v2291
        %v2344 = vpack.c.bf16 %v2300, %v2296
        %v2345 = vpack.c.bf16 %v2301, %v2297
        %v2346 = vpack.c.bf16 %v2302, %v2298
        %v2347 = vpack.c.bf16 %v2303, %v2299
        %v2348 = vpack.c.bf16 %v2308, %v2304
        %v2349 = vpack.c.bf16 %v2309, %v2305
        %v2350 = vpack.c.bf16 %v2310, %v2306
        %v2351 = vpack.c.bf16 %v2311, %v2307
        %v2352 = vpack.c.bf16 %v2316, %v2312
        %v2353 = vpack.c.bf16 %v2317, %v2313
        %v2354 = vpack.c.bf16 %v2318, %v2314
        %v2355 = vpack.c.bf16 %v2319, %v2315
        %v2356 = vpack.c.bf16 %v2324, %v2320
        %v2357 = vpack.c.bf16 %v2325, %v2321
        %v2358 = vpack.c.bf16 %v2326, %v2322
        %v2359 = vpack.c.bf16 %v2327, %v2323
        %v2360 = vld [vmem:[%s316] sm:$0xff]
        %v2361 = vld [vmem:[%s316 + $0x8] sm:$0xff]
        %v2362 = vld [vmem:[%s316 + $0x10] sm:$0xff]
        %v2363 = vld [vmem:[%s316 + $0x18] sm:$0xff]
        %v2364 = vld [vmem:[%s316 + $0x20] sm:$0xff]
        %v2365 = vld [vmem:[%s316 + $0x28] sm:$0xff]
        %v2366 = vld [vmem:[%s316 + $0x30] sm:$0xff]
        %v2367 = vld [vmem:[%s316 + $0x38] sm:$0xff]
        %v2368 = vld [vmem:[%s316 + $0x40] sm:$0xff]
        %v2369 = vld [vmem:[%s316 + $0x48] sm:$0xff]
        %v2370 = vld [vmem:[%s316 + $0x50] sm:$0xff]
        %v2371 = vld [vmem:[%s316 + $0x58] sm:$0xff]
        %v2372 = vld [vmem:[%s316 + $0x60] sm:$0xff]
        %v2373 = vld [vmem:[%s316 + $0x68] sm:$0xff]
        %v2374 = vld [vmem:[%s316 + $0x70] sm:$0xff]
        %v2375 = vld [vmem:[%s316 + $0x78] sm:$0xff]
        %v2376 = vld [vmem:[%s316 + $0x80] sm:$0xff]
        %v2377 = vld [vmem:[%s316 + $0x88] sm:$0xff]
        %v2378 = vld [vmem:[%s316 + $0x90] sm:$0xff]
        %v2379 = vld [vmem:[%s316 + $0x98] sm:$0xff]
        %v2380 = vld [vmem:[%s316 + $0xa0] sm:$0xff]
        %v2381 = vld [vmem:[%s316 + $0xa8] sm:$0xff]
        %v2382 = vld [vmem:[%s316 + $0xb0] sm:$0xff]
        %v2383 = vld [vmem:[%s316 + $0xb8] sm:$0xff]
        %v2384 = vld [vmem:[%s316 + $0xc0] sm:$0xff]
        %v2385 = vld [vmem:[%s316 + $0xc8] sm:$0xff]
        %v2386 = vld [vmem:[%s316 + $0xd0] sm:$0xff]
        %v2387 = vld [vmem:[%s316 + $0xd8] sm:$0xff]
        %v2388 = vld [vmem:[%s316 + $0xe0] sm:$0xff]
        %v2389 = vld [vmem:[%s316 + $0xe8] sm:$0xff]
        %v2390 = vld [vmem:[%s316 + $0xf0] sm:$0xff]
        %v2391 = vld [vmem:[%s316 + $0xf8] sm:$0xff]
        %v2392 = vld [vmem:[%s316 + $0x100] sm:$0xff]
        %v2393 = vld [vmem:[%s316 + $0x108] sm:$0xff]
        %v2394 = vld [vmem:[%s316 + $0x110] sm:$0xff]
        %v2395 = vld [vmem:[%s316 + $0x118] sm:$0xff]
        %v2396 = vld [vmem:[%s316 + $0x120] sm:$0xff]
        %v2397 = vld [vmem:[%s316 + $0x128] sm:$0xff]
        %v2398 = vld [vmem:[%s316 + $0x130] sm:$0xff]
        %v2399 = vld [vmem:[%s316 + $0x138] sm:$0xff]
        %v2400 = vld [vmem:[%s316 + $0x140] sm:$0xff]
        %v2401 = vld [vmem:[%s316 + $0x148] sm:$0xff]
        %v2402 = vld [vmem:[%s316 + $0x150] sm:$0xff]
        %v2403 = vld [vmem:[%s316 + $0x158] sm:$0xff]
        %v2404 = vld [vmem:[%s316 + $0x160] sm:$0xff]
        %v2405 = vld [vmem:[%s316 + $0x168] sm:$0xff]
        %v2406 = vld [vmem:[%s316 + $0x170] sm:$0xff]
        %v2407 = vld [vmem:[%s316 + $0x178] sm:$0xff]
        %v2408 = vld [vmem:[%s316 + $0x180] sm:$0xff]
        %v2409 = vld [vmem:[%s316 + $0x188] sm:$0xff]
        %v2410 = vld [vmem:[%s316 + $0x190] sm:$0xff]
        %v2411 = vld [vmem:[%s316 + $0x198] sm:$0xff]
        %v2412 = vld [vmem:[%s316 + $0x1a0] sm:$0xff]
        %v2413 = vld [vmem:[%s316 + $0x1a8] sm:$0xff]
        %v2414 = vld [vmem:[%s316 + $0x1b0] sm:$0xff]
        %v2415 = vld [vmem:[%s316 + $0x1b8] sm:$0xff]
        %v2416 = vld [vmem:[%s316 + $0x1c0] sm:$0xff]
        %v2417 = vld [vmem:[%s316 + $0x1c8] sm:$0xff]
        %v2418 = vld [vmem:[%s316 + $0x1d0] sm:$0xff]
        %v2419 = vld [vmem:[%s316 + $0x1d8] sm:$0xff]
        %v2420 = vld [vmem:[%s316 + $0x1e0] sm:$0xff]
        %v2421 = vld [vmem:[%s316 + $0x1e8] sm:$0xff]
        %v2422 = vld [vmem:[%s316 + $0x1f0] sm:$0xff]
        %v2423 = vld [vmem:[%s316 + $0x1f8] sm:$0xff]
        %v2424 = vld [vmem:[%s316 + $0x200] sm:$0xff]
        %v2425 = vld [vmem:[%s316 + $0x208] sm:$0xff]
        %v2426 = vld [vmem:[%s316 + $0x210] sm:$0xff]
        %v2427 = vld [vmem:[%s316 + $0x218] sm:$0xff]
        %v2428 = vld [vmem:[%s316 + $0x220] sm:$0xff]
        %v2429 = vld [vmem:[%s316 + $0x228] sm:$0xff]
        %v2430 = vld [vmem:[%s316 + $0x230] sm:$0xff]
        %v2431 = vld [vmem:[%s316 + $0x238] sm:$0xff]
        %v2432 = vld [vmem:[%s316 + $0x240] sm:$0xff]
        %v2433 = vld [vmem:[%s316 + $0x248] sm:$0xff]
        %v2434 = vld [vmem:[%s316 + $0x250] sm:$0xff]
        %v2435 = vld [vmem:[%s316 + $0x258] sm:$0xff]
        %v2436 = vld [vmem:[%s316 + $0x260] sm:$0xff]
        %v2437 = vld [vmem:[%s316 + $0x268] sm:$0xff]
        %v2438 = vld [vmem:[%s316 + $0x270] sm:$0xff]
        %v2439 = vld [vmem:[%s316 + $0x278] sm:$0xff]
        %v2440 = vld [vmem:[%s316 + $0x280] sm:$0xff]
        %v2441 = vld [vmem:[%s316 + $0x288] sm:$0xff]
        %v2442 = vld [vmem:[%s316 + $0x290] sm:$0xff]
        %v2443 = vld [vmem:[%s316 + $0x298] sm:$0xff]
        %v2444 = vld [vmem:[%s316 + $0x2a0] sm:$0xff]
        %v2445 = vld [vmem:[%s316 + $0x2a8] sm:$0xff]
        %v2446 = vld [vmem:[%s316 + $0x2b0] sm:$0xff]
        %v2447 = vld [vmem:[%s316 + $0x2b8] sm:$0xff]
        %v2448 = vld [vmem:[%s316 + $0x2c0] sm:$0xff]
        %v2449 = vld [vmem:[%s316 + $0x2c8] sm:$0xff]
        %v2450 = vld [vmem:[%s316 + $0x2d0] sm:$0xff]
        %v2451 = vld [vmem:[%s316 + $0x2d8] sm:$0xff]
        %v2452 = vld [vmem:[%s316 + $0x2e0] sm:$0xff]
        %v2453 = vld [vmem:[%s316 + $0x2e8] sm:$0xff]
        %v2454 = vld [vmem:[%s316 + $0x2f0] sm:$0xff]
        %v2455 = vld [vmem:[%s316 + $0x2f8] sm:$0xff]
        %v2456 = vld [vmem:[%s316 + $0x300] sm:$0xff]
        %v2457 = vld [vmem:[%s316 + $0x308] sm:$0xff]
        %v2458 = vld [vmem:[%s316 + $0x310] sm:$0xff]
        %v2459 = vld [vmem:[%s316 + $0x318] sm:$0xff]
        %v2460 = vld [vmem:[%s316 + $0x320] sm:$0xff]
        %v2461 = vld [vmem:[%s316 + $0x328] sm:$0xff]
        %v2462 = vld [vmem:[%s316 + $0x330] sm:$0xff]
        %v2463 = vld [vmem:[%s316 + $0x338] sm:$0xff]
        %v2464 = vld [vmem:[%s316 + $0x340] sm:$0xff]
        %v2465 = vld [vmem:[%s316 + $0x348] sm:$0xff]
        %v2466 = vld [vmem:[%s316 + $0x350] sm:$0xff]
        %v2467 = vld [vmem:[%s316 + $0x358] sm:$0xff]
        %v2468 = vld [vmem:[%s316 + $0x360] sm:$0xff]
        %v2469 = vld [vmem:[%s316 + $0x368] sm:$0xff]
        %v2470 = vld [vmem:[%s316 + $0x370] sm:$0xff]
        %v2471 = vld [vmem:[%s316 + $0x378] sm:$0xff]
        %v2472 = vld [vmem:[%s316 + $0x380] sm:$0xff]
        %v2473 = vld [vmem:[%s316 + $0x388] sm:$0xff]
        %v2474 = vld [vmem:[%s316 + $0x390] sm:$0xff]
        %v2475 = vld [vmem:[%s316 + $0x398] sm:$0xff]
        %v2476 = vld [vmem:[%s316 + $0x3a0] sm:$0xff]
        %v2477 = vld [vmem:[%s316 + $0x3a8] sm:$0xff]
        %v2478 = vld [vmem:[%s316 + $0x3b0] sm:$0xff]
        %v2479 = vld [vmem:[%s316 + $0x3b8] sm:$0xff]
        %v2480 = vld [vmem:[%s316 + $0x3c0] sm:$0xff]
        %v2481 = vld [vmem:[%s316 + $0x3c8] sm:$0xff]
        %v2482 = vld [vmem:[%s316 + $0x3d0] sm:$0xff]
        %v2483 = vld [vmem:[%s316 + $0x3d8] sm:$0xff]
        %v2484 = vld [vmem:[%s316 + $0x3e0] sm:$0xff]
        %v2485 = vld [vmem:[%s316 + $0x3e8] sm:$0xff]
        %v2486 = vld [vmem:[%s316 + $0x3f0] sm:$0xff]
        %v2487 = vld [vmem:[%s316 + $0x3f8] sm:$0xff]
        %v2489 = vlaneseq
        %v2490 = vshrl.u32 %v2489, 7
        %v2491 = vsub.s32 0, %v2490
        %v2492 = vrot.slane %v435, %v2491
        %v2493 = vlaneseq
        %v2494 = vshrl.u32 %v2493, 7
        %v2495 = vsub.s32 1, %v2494
        %v2496 = vrot.slane %v435, %v2495
        %v2497 = vlaneseq
        %v2498 = vshrl.u32 %v2497, 7
        %v2499 = vsub.s32 2, %v2498
        %v2500 = vrot.slane %v435, %v2499
        %v2501 = vlaneseq
        %v2502 = vshrl.u32 %v2501, 7
        %v2503 = vsub.s32 3, %v2502
        %v2504 = vrot.slane %v435, %v2503
        %v2637 = vunpack.c.l.b16 %v2360
        %v2638 = vunpack.c.h.b16 %v2360
        %v2639 = vunpack.c.l.b16 %v2361
        %v2640 = vunpack.c.h.b16 %v2361
        %v2641 = vunpack.c.l.b16 %v2362
        %v2642 = vunpack.c.h.b16 %v2362
        %v2643 = vunpack.c.l.b16 %v2363
        %v2644 = vunpack.c.h.b16 %v2363
        %v2645 = vunpack.c.l.b16 %v2364
        %v2646 = vunpack.c.h.b16 %v2364
        %v2647 = vunpack.c.l.b16 %v2365
        %v2648 = vunpack.c.h.b16 %v2365
        %v2649 = vunpack.c.l.b16 %v2366
        %v2650 = vunpack.c.h.b16 %v2366
        %v2651 = vunpack.c.l.b16 %v2367
        %v2652 = vunpack.c.h.b16 %v2367
        %v2653 = vunpack.c.l.b16 %v2368
        %v2654 = vunpack.c.h.b16 %v2368
        %v2655 = vunpack.c.l.b16 %v2369
        %v2656 = vunpack.c.h.b16 %v2369
        %v2657 = vunpack.c.l.b16 %v2370
        %v2658 = vunpack.c.h.b16 %v2370
        %v2659 = vunpack.c.l.b16 %v2371
        %v2660 = vunpack.c.h.b16 %v2371
        %v2661 = vunpack.c.l.b16 %v2372
        %v2662 = vunpack.c.h.b16 %v2372
        %v2663 = vunpack.c.l.b16 %v2373
        %v2664 = vunpack.c.h.b16 %v2373
        %v2665 = vunpack.c.l.b16 %v2374
        %v2666 = vunpack.c.h.b16 %v2374
        %v2667 = vunpack.c.l.b16 %v2375
        %v2668 = vunpack.c.h.b16 %v2375
        %v2669 = vunpack.c.l.b16 %v2376
        %v2670 = vunpack.c.h.b16 %v2376
        %v2671 = vunpack.c.l.b16 %v2377
        %v2672 = vunpack.c.h.b16 %v2377
        %v2673 = vunpack.c.l.b16 %v2378
        %v2674 = vunpack.c.h.b16 %v2378
        %v2675 = vunpack.c.l.b16 %v2379
        %v2676 = vunpack.c.h.b16 %v2379
        %v2677 = vunpack.c.l.b16 %v2380
        %v2678 = vunpack.c.h.b16 %v2380
        %v2679 = vunpack.c.l.b16 %v2381
        %v2680 = vunpack.c.h.b16 %v2381
        %v2681 = vunpack.c.l.b16 %v2382
        %v2682 = vunpack.c.h.b16 %v2382
        %v2683 = vunpack.c.l.b16 %v2383
        %v2684 = vunpack.c.h.b16 %v2383
        %v2685 = vunpack.c.l.b16 %v2384
        %v2686 = vunpack.c.h.b16 %v2384
        %v2687 = vunpack.c.l.b16 %v2385
        %v2688 = vunpack.c.h.b16 %v2385
        %v2689 = vunpack.c.l.b16 %v2386
        %v2690 = vunpack.c.h.b16 %v2386
        %v2691 = vunpack.c.l.b16 %v2387
        %v2692 = vunpack.c.h.b16 %v2387
        %v2693 = vunpack.c.l.b16 %v2388
        %v2694 = vunpack.c.h.b16 %v2388
        %v2695 = vunpack.c.l.b16 %v2389
        %v2696 = vunpack.c.h.b16 %v2389
        %v2697 = vunpack.c.l.b16 %v2390
        %v2698 = vunpack.c.h.b16 %v2390
        %v2699 = vunpack.c.l.b16 %v2391
        %v2700 = vunpack.c.h.b16 %v2391
        %v2701 = vunpack.c.l.b16 %v2392
        %v2702 = vunpack.c.h.b16 %v2392
        %v2703 = vunpack.c.l.b16 %v2393
        %v2704 = vunpack.c.h.b16 %v2393
        %v2705 = vunpack.c.l.b16 %v2394
        %v2706 = vunpack.c.h.b16 %v2394
        %v2707 = vunpack.c.l.b16 %v2395
        %v2708 = vunpack.c.h.b16 %v2395
        %v2709 = vunpack.c.l.b16 %v2396
        %v2710 = vunpack.c.h.b16 %v2396
        %v2711 = vunpack.c.l.b16 %v2397
        %v2712 = vunpack.c.h.b16 %v2397
        %v2713 = vunpack.c.l.b16 %v2398
        %v2714 = vunpack.c.h.b16 %v2398
        %v2715 = vunpack.c.l.b16 %v2399
        %v2716 = vunpack.c.h.b16 %v2399
        %v2717 = vunpack.c.l.b16 %v2400
        %v2718 = vunpack.c.h.b16 %v2400
        %v2719 = vunpack.c.l.b16 %v2401
        %v2720 = vunpack.c.h.b16 %v2401
        %v2721 = vunpack.c.l.b16 %v2402
        %v2722 = vunpack.c.h.b16 %v2402
        %v2723 = vunpack.c.l.b16 %v2403
        %v2724 = vunpack.c.h.b16 %v2403
        %v2725 = vunpack.c.l.b16 %v2404
        %v2726 = vunpack.c.h.b16 %v2404
        %v2727 = vunpack.c.l.b16 %v2405
        %v2728 = vunpack.c.h.b16 %v2405
        %v2729 = vunpack.c.l.b16 %v2406
        %v2730 = vunpack.c.h.b16 %v2406
        %v2731 = vunpack.c.l.b16 %v2407
        %v2732 = vunpack.c.h.b16 %v2407
        %v2733 = vunpack.c.l.b16 %v2408
        %v2734 = vunpack.c.h.b16 %v2408
        %v2735 = vunpack.c.l.b16 %v2409
        %v2736 = vunpack.c.h.b16 %v2409
        %v2737 = vunpack.c.l.b16 %v2410
        %v2738 = vunpack.c.h.b16 %v2410
        %v2739 = vunpack.c.l.b16 %v2411
        %v2740 = vunpack.c.h.b16 %v2411
        %v2741 = vunpack.c.l.b16 %v2412
        %v2742 = vunpack.c.h.b16 %v2412
        %v2743 = vunpack.c.l.b16 %v2413
        %v2744 = vunpack.c.h.b16 %v2413
        %v2745 = vunpack.c.l.b16 %v2414
        %v2746 = vunpack.c.h.b16 %v2414
        %v2747 = vunpack.c.l.b16 %v2415
        %v2748 = vunpack.c.h.b16 %v2415
        %v2749 = vunpack.c.l.b16 %v2416
        %v2750 = vunpack.c.h.b16 %v2416
        %v2751 = vunpack.c.l.b16 %v2417
        %v2752 = vunpack.c.h.b16 %v2417
        %v2753 = vunpack.c.l.b16 %v2418
        %v2754 = vunpack.c.h.b16 %v2418
        %v2755 = vunpack.c.l.b16 %v2419
        %v2756 = vunpack.c.h.b16 %v2419
        %v2757 = vunpack.c.l.b16 %v2420
        %v2758 = vunpack.c.h.b16 %v2420
        %v2759 = vunpack.c.l.b16 %v2421
        %v2760 = vunpack.c.h.b16 %v2421
        %v2761 = vunpack.c.l.b16 %v2422
        %v2762 = vunpack.c.h.b16 %v2422
        %v2763 = vunpack.c.l.b16 %v2423
        %v2764 = vunpack.c.h.b16 %v2423
        %v2765 = vunpack.c.l.b16 %v2424
        %v2766 = vunpack.c.h.b16 %v2424
        %v2767 = vunpack.c.l.b16 %v2425
        %v2768 = vunpack.c.h.b16 %v2425
        %v2769 = vunpack.c.l.b16 %v2426
        %v2770 = vunpack.c.h.b16 %v2426
        %v2771 = vunpack.c.l.b16 %v2427
        %v2772 = vunpack.c.h.b16 %v2427
        %v2773 = vunpack.c.l.b16 %v2428
        %v2774 = vunpack.c.h.b16 %v2428
        %v2775 = vunpack.c.l.b16 %v2429
        %v2776 = vunpack.c.h.b16 %v2429
        %v2777 = vunpack.c.l.b16 %v2430
        %v2778 = vunpack.c.h.b16 %v2430
        %v2779 = vunpack.c.l.b16 %v2431
        %v2780 = vunpack.c.h.b16 %v2431
        %v2781 = vunpack.c.l.b16 %v2432
        %v2782 = vunpack.c.h.b16 %v2432
        %v2783 = vunpack.c.l.b16 %v2433
        %v2784 = vunpack.c.h.b16 %v2433
        %v2785 = vunpack.c.l.b16 %v2434
        %v2786 = vunpack.c.h.b16 %v2434
        %v2787 = vunpack.c.l.b16 %v2435
        %v2788 = vunpack.c.h.b16 %v2435
        %v2789 = vunpack.c.l.b16 %v2436
        %v2790 = vunpack.c.h.b16 %v2436
        %v2791 = vunpack.c.l.b16 %v2437
        %v2792 = vunpack.c.h.b16 %v2437
        %v2793 = vunpack.c.l.b16 %v2438
        %v2794 = vunpack.c.h.b16 %v2438
        %v2795 = vunpack.c.l.b16 %v2439
        %v2796 = vunpack.c.h.b16 %v2439
        %v2797 = vunpack.c.l.b16 %v2440
        %v2798 = vunpack.c.h.b16 %v2440
        %v2799 = vunpack.c.l.b16 %v2441
        %v2800 = vunpack.c.h.b16 %v2441
        %v2801 = vunpack.c.l.b16 %v2442
        %v2802 = vunpack.c.h.b16 %v2442
        %v2803 = vunpack.c.l.b16 %v2443
        %v2804 = vunpack.c.h.b16 %v2443
        %v2805 = vunpack.c.l.b16 %v2444
        %v2806 = vunpack.c.h.b16 %v2444
        %v2807 = vunpack.c.l.b16 %v2445
        %v2808 = vunpack.c.h.b16 %v2445
        %v2809 = vunpack.c.l.b16 %v2446
        %v2810 = vunpack.c.h.b16 %v2446
        %v2811 = vunpack.c.l.b16 %v2447
        %v2812 = vunpack.c.h.b16 %v2447
        %v2813 = vunpack.c.l.b16 %v2448
        %v2814 = vunpack.c.h.b16 %v2448
        %v2815 = vunpack.c.l.b16 %v2449
        %v2816 = vunpack.c.h.b16 %v2449
        %v2817 = vunpack.c.l.b16 %v2450
        %v2818 = vunpack.c.h.b16 %v2450
        %v2819 = vunpack.c.l.b16 %v2451
        %v2820 = vunpack.c.h.b16 %v2451
        %v2821 = vunpack.c.l.b16 %v2452
        %v2822 = vunpack.c.h.b16 %v2452
        %v2823 = vunpack.c.l.b16 %v2453
        %v2824 = vunpack.c.h.b16 %v2453
        %v2825 = vunpack.c.l.b16 %v2454
        %v2826 = vunpack.c.h.b16 %v2454
        %v2827 = vunpack.c.l.b16 %v2455
        %v2828 = vunpack.c.h.b16 %v2455
        %v2829 = vunpack.c.l.b16 %v2456
        %v2830 = vunpack.c.h.b16 %v2456
        %v2831 = vunpack.c.l.b16 %v2457
        %v2832 = vunpack.c.h.b16 %v2457
        %v2833 = vunpack.c.l.b16 %v2458
        %v2834 = vunpack.c.h.b16 %v2458
        %v2835 = vunpack.c.l.b16 %v2459
        %v2836 = vunpack.c.h.b16 %v2459
        %v2837 = vunpack.c.l.b16 %v2460
        %v2838 = vunpack.c.h.b16 %v2460
        %v2839 = vunpack.c.l.b16 %v2461
        %v2840 = vunpack.c.h.b16 %v2461
        %v2841 = vunpack.c.l.b16 %v2462
        %v2842 = vunpack.c.h.b16 %v2462
        %v2843 = vunpack.c.l.b16 %v2463
        %v2844 = vunpack.c.h.b16 %v2463
        %v2845 = vunpack.c.l.b16 %v2464
        %v2846 = vunpack.c.h.b16 %v2464
        %v2847 = vunpack.c.l.b16 %v2465
        %v2848 = vunpack.c.h.b16 %v2465
        %v2849 = vunpack.c.l.b16 %v2466
        %v2850 = vunpack.c.h.b16 %v2466
        %v2851 = vunpack.c.l.b16 %v2467
        %v2852 = vunpack.c.h.b16 %v2467
        %v2853 = vunpack.c.l.b16 %v2468
        %v2854 = vunpack.c.h.b16 %v2468
        %v2855 = vunpack.c.l.b16 %v2469
        %v2856 = vunpack.c.h.b16 %v2469
        %v2857 = vunpack.c.l.b16 %v2470
        %v2858 = vunpack.c.h.b16 %v2470
        %v2859 = vunpack.c.l.b16 %v2471
        %v2860 = vunpack.c.h.b16 %v2471
        %v2861 = vunpack.c.l.b16 %v2472
        %v2862 = vunpack.c.h.b16 %v2472
        %v2863 = vunpack.c.l.b16 %v2473
        %v2864 = vunpack.c.h.b16 %v2473
        %v2865 = vunpack.c.l.b16 %v2474
        %v2866 = vunpack.c.h.b16 %v2474
        %v2867 = vunpack.c.l.b16 %v2475
        %v2868 = vunpack.c.h.b16 %v2475
        %v2869 = vunpack.c.l.b16 %v2476
        %v2870 = vunpack.c.h.b16 %v2476
        %v2871 = vunpack.c.l.b16 %v2477
        %v2872 = vunpack.c.h.b16 %v2477
        %v2873 = vunpack.c.l.b16 %v2478
        %v2874 = vunpack.c.h.b16 %v2478
        %v2875 = vunpack.c.l.b16 %v2479
        %v2876 = vunpack.c.h.b16 %v2479
        %v2877 = vunpack.c.l.b16 %v2480
        %v2878 = vunpack.c.h.b16 %v2480
        %v2879 = vunpack.c.l.b16 %v2481
        %v2880 = vunpack.c.h.b16 %v2481
        %v2881 = vunpack.c.l.b16 %v2482
        %v2882 = vunpack.c.h.b16 %v2482
        %v2883 = vunpack.c.l.b16 %v2483
        %v2884 = vunpack.c.h.b16 %v2483
        %v2885 = vunpack.c.l.b16 %v2484
        %v2886 = vunpack.c.h.b16 %v2484
        %v2887 = vunpack.c.l.b16 %v2485
        %v2888 = vunpack.c.h.b16 %v2485
        %v2889 = vunpack.c.l.b16 %v2486
        %v2890 = vunpack.c.h.b16 %v2486
        %v2891 = vunpack.c.l.b16 %v2487
        %v2892 = vunpack.c.h.b16 %v2487
        %v2893 = vpack.c.b16 %v2641, %v2637
        %v2894 = vpack.c.b16 %v2642, %v2638
        %v2895 = vpack.c.b16 %v2643, %v2639
        %v2896 = vpack.c.b16 %v2644, %v2640
        %v2897 = vpack.c.b16 %v2649, %v2645
        %v2898 = vpack.c.b16 %v2650, %v2646
        %v2899 = vpack.c.b16 %v2651, %v2647
        %v2900 = vpack.c.b16 %v2652, %v2648
        %v2901 = vpack.c.b16 %v2657, %v2653
        %v2902 = vpack.c.b16 %v2658, %v2654
        %v2903 = vpack.c.b16 %v2659, %v2655
        %v2904 = vpack.c.b16 %v2660, %v2656
        %v2905 = vpack.c.b16 %v2665, %v2661
        %v2906 = vpack.c.b16 %v2666, %v2662
        %v2907 = vpack.c.b16 %v2667, %v2663
        %v2908 = vpack.c.b16 %v2668, %v2664
        %v2909 = vpack.c.b16 %v2673, %v2669
        %v2910 = vpack.c.b16 %v2674, %v2670
        %v2911 = vpack.c.b16 %v2675, %v2671
        %v2912 = vpack.c.b16 %v2676, %v2672
        %v2913 = vpack.c.b16 %v2681, %v2677
        %v2914 = vpack.c.b16 %v2682, %v2678
        %v2915 = vpack.c.b16 %v2683, %v2679
        %v2916 = vpack.c.b16 %v2684, %v2680
        %v2917 = vpack.c.b16 %v2689, %v2685
        %v2918 = vpack.c.b16 %v2690, %v2686
        %v2919 = vpack.c.b16 %v2691, %v2687
        %v2920 = vpack.c.b16 %v2692, %v2688
        %v2921 = vpack.c.b16 %v2697, %v2693
        %v2922 = vpack.c.b16 %v2698, %v2694
        %v2923 = vpack.c.b16 %v2699, %v2695
        %v2924 = vpack.c.b16 %v2700, %v2696
        %v2925 = vpack.c.b16 %v2705, %v2701
        %v2926 = vpack.c.b16 %v2706, %v2702
        %v2927 = vpack.c.b16 %v2707, %v2703
        %v2928 = vpack.c.b16 %v2708, %v2704
        %v2929 = vpack.c.b16 %v2713, %v2709
        %v2930 = vpack.c.b16 %v2714, %v2710
        %v2931 = vpack.c.b16 %v2715, %v2711
        %v2932 = vpack.c.b16 %v2716, %v2712
        %v2933 = vpack.c.b16 %v2721, %v2717
        %v2934 = vpack.c.b16 %v2722, %v2718
        %v2935 = vpack.c.b16 %v2723, %v2719
        %v2936 = vpack.c.b16 %v2724, %v2720
        %v2937 = vpack.c.b16 %v2729, %v2725
        %v2938 = vpack.c.b16 %v2730, %v2726
        %v2939 = vpack.c.b16 %v2731, %v2727
        %v2940 = vpack.c.b16 %v2732, %v2728
        %v2941 = vpack.c.b16 %v2737, %v2733
        %v2942 = vpack.c.b16 %v2738, %v2734
        %v2943 = vpack.c.b16 %v2739, %v2735
        %v2944 = vpack.c.b16 %v2740, %v2736
        %v2945 = vpack.c.b16 %v2745, %v2741
        %v2946 = vpack.c.b16 %v2746, %v2742
        %v2947 = vpack.c.b16 %v2747, %v2743
        %v2948 = vpack.c.b16 %v2748, %v2744
        %v2949 = vpack.c.b16 %v2753, %v2749
        %v2950 = vpack.c.b16 %v2754, %v2750
        %v2951 = vpack.c.b16 %v2755, %v2751
        %v2952 = vpack.c.b16 %v2756, %v2752
        %v2953 = vpack.c.b16 %v2761, %v2757
        %v2954 = vpack.c.b16 %v2762, %v2758
        %v2955 = vpack.c.b16 %v2763, %v2759
        %v2956 = vpack.c.b16 %v2764, %v2760
        %v2957 = vpack.c.b16 %v2769, %v2765
        %v2958 = vpack.c.b16 %v2770, %v2766
        %v2959 = vpack.c.b16 %v2771, %v2767
        %v2960 = vpack.c.b16 %v2772, %v2768
        %v2961 = vpack.c.b16 %v2777, %v2773
        %v2962 = vpack.c.b16 %v2778, %v2774
        %v2963 = vpack.c.b16 %v2779, %v2775
        %v2964 = vpack.c.b16 %v2780, %v2776
        %v2965 = vpack.c.b16 %v2785, %v2781
        %v2966 = vpack.c.b16 %v2786, %v2782
        %v2967 = vpack.c.b16 %v2787, %v2783
        %v2968 = vpack.c.b16 %v2788, %v2784
        %v2969 = vpack.c.b16 %v2793, %v2789
        %v2970 = vpack.c.b16 %v2794, %v2790
        %v2971 = vpack.c.b16 %v2795, %v2791
        %v2972 = vpack.c.b16 %v2796, %v2792
        %v2973 = vpack.c.b16 %v2801, %v2797
        %v2974 = vpack.c.b16 %v2802, %v2798
        %v2975 = vpack.c.b16 %v2803, %v2799
        %v2976 = vpack.c.b16 %v2804, %v2800
        %v2977 = vpack.c.b16 %v2809, %v2805
        %v2978 = vpack.c.b16 %v2810, %v2806
        %v2979 = vpack.c.b16 %v2811, %v2807
        %v2980 = vpack.c.b16 %v2812, %v2808
        %v2981 = vpack.c.b16 %v2817, %v2813
        %v2982 = vpack.c.b16 %v2818, %v2814
        %v2983 = vpack.c.b16 %v2819, %v2815
        %v2984 = vpack.c.b16 %v2820, %v2816
        %v2985 = vpack.c.b16 %v2825, %v2821
        %v2986 = vpack.c.b16 %v2826, %v2822
        %v2987 = vpack.c.b16 %v2827, %v2823
        %v2988 = vpack.c.b16 %v2828, %v2824
        %v2989 = vpack.c.b16 %v2833, %v2829
        %v2990 = vpack.c.b16 %v2834, %v2830
        %v2991 = vpack.c.b16 %v2835, %v2831
        %v2992 = vpack.c.b16 %v2836, %v2832
        %v2993 = vpack.c.b16 %v2841, %v2837
        %v2994 = vpack.c.b16 %v2842, %v2838
        %v2995 = vpack.c.b16 %v2843, %v2839
        %v2996 = vpack.c.b16 %v2844, %v2840
        %v2997 = vpack.c.b16 %v2849, %v2845
        %v2998 = vpack.c.b16 %v2850, %v2846
        %v2999 = vpack.c.b16 %v2851, %v2847
        %v3000 = vpack.c.b16 %v2852, %v2848
        %v3001 = vpack.c.b16 %v2857, %v2853
        %v3002 = vpack.c.b16 %v2858, %v2854
        %v3003 = vpack.c.b16 %v2859, %v2855
        %v3004 = vpack.c.b16 %v2860, %v2856
        %v3005 = vpack.c.b16 %v2865, %v2861
        %v3006 = vpack.c.b16 %v2866, %v2862
        %v3007 = vpack.c.b16 %v2867, %v2863
        %v3008 = vpack.c.b16 %v2868, %v2864
        %v3009 = vpack.c.b16 %v2873, %v2869
        %v3010 = vpack.c.b16 %v2874, %v2870
        %v3011 = vpack.c.b16 %v2875, %v2871
        %v3012 = vpack.c.b16 %v2876, %v2872
        %v3013 = vpack.c.b16 %v2881, %v2877
        %v3014 = vpack.c.b16 %v2882, %v2878
        %v3015 = vpack.c.b16 %v2883, %v2879
        %v3016 = vpack.c.b16 %v2884, %v2880
        %v3017 = vpack.c.b16 %v2889, %v2885
        %v3018 = vpack.c.b16 %v2890, %v2886
        %v3019 = vpack.c.b16 %v2891, %v2887
        %v3020 = vpack.c.b16 %v2892, %v2888
        %3149 = vmatprep.subr.bf16.mxu0 %v2894
        %3150 = vmatpush1.bf16.msra.mxu0 %v2893
        %3151 = vmatprep.subr.bf16.mxu0 %v2898
        %3152 = vmatpush1.bf16.msra.mxu0 %v2897
        %3153 = vmatprep.subr.bf16.mxu0 %v2902
        %3154 = vmatpush1.bf16.msra.mxu0 %v2901
        %3155 = vmatprep.subr.bf16.mxu0 %v2906
        %3156 = vmatpush1.bf16.msra.mxu0 %v2905
        %3157 = vmatprep.subr.bf16.mxu0 %v2910
        %3158 = vmatpush1.bf16.msra.mxu0 %v2909
        %3159 = vmatprep.subr.bf16.mxu0 %v2914
        %3160 = vmatpush1.bf16.msra.mxu0 %v2913
        %3161 = vmatprep.subr.bf16.mxu0 %v2918
        %3162 = vmatpush1.bf16.msra.mxu0 %v2917
        %3163 = vmatprep.subr.bf16.mxu0 %v2922
        %3164 = vmatpush1.bf16.msra.mxu0 %v2921
        %3165 = vmatprep.subr.bf16.mxu0 %v2926
        %3166 = vmatpush1.bf16.msra.mxu0 %v2925
        %3167 = vmatprep.subr.bf16.mxu0 %v2930
        %3168 = vmatpush1.bf16.msra.mxu0 %v2929
        %3169 = vmatprep.subr.bf16.mxu0 %v2934
        %3170 = vmatpush1.bf16.msra.mxu0 %v2933
        %3171 = vmatprep.subr.bf16.mxu0 %v2938
        %3172 = vmatpush1.bf16.msra.mxu0 %v2937
        %3173 = vmatprep.subr.bf16.mxu0 %v2942
        %3174 = vmatpush1.bf16.msra.mxu0 %v2941
        %3175 = vmatprep.subr.bf16.mxu0 %v2946
        %3176 = vmatpush1.bf16.msra.mxu0 %v2945
        %3177 = vmatprep.subr.bf16.mxu0 %v2950
        %3178 = vmatpush1.bf16.msra.mxu0 %v2949
        %3179 = vmatprep.subr.bf16.mxu0 %v2954
        %3180 = vmatpush1.bf16.msra.mxu0 %v2953
        %3181 = vmatprep.mubr.bf16.mxu0 %v2329
        %3182 = vmatmul.mubr.bf16.gmra.mrb[0].mxu0 %v2328
        %v3183 = vpop.f32.mrb[0].mxu0
        %v3184 = vadd.f32 %v2492, %v3183
        %v3185 = vpop.f32.mrb[0].mxu0
        %v3186 = vadd.f32 %v2496, %v3185
        %v3187 = vpop.f32.mrb[0].mxu0
        %v3188 = vadd.f32 %v2492, %v3187
        %v3189 = vpop.f32.mrb[0].mxu0
        %v3190 = vadd.f32 %v2496, %v3189
        %3191 = vmatprep.mubr.bf16.mxu0 %v2333
        %3192 = vmatmul.mubr.bf16.gmra.mrb[0].mxu0 %v2332
        %v3193 = vpop.f32.mrb[0].mxu0
        %v3194 = vadd.f32 %v2492, %v3193
        %v3195 = vpop.f32.mrb[0].mxu0
        %v3196 = vadd.f32 %v2496, %v3195
        %v3197 = vpop.f32.mrb[0].mxu0
        %v3198 = vadd.f32 %v2492, %v3197
        %v3199 = vpop.f32.mrb[0].mxu0
        %v3200 = vadd.f32 %v2496, %v3199
        %3201 = vmatprep.mubr.bf16.mxu0 %v2337
        %3202 = vmatmul.mubr.bf16.gmra.mrb[0].mxu0 %v2336
        %v3203 = vpop.f32.mrb[0].mxu0
        %v3204 = vadd.f32 %v2492, %v3203
        %v3205 = vpop.f32.mrb[0].mxu0
        %v3206 = vadd.f32 %v2496, %v3205
        %v3207 = vpop.f32.mrb[0].mxu0
        %v3208 = vadd.f32 %v2492, %v3207
        %v3209 = vpop.f32.mrb[0].mxu0
        %v3210 = vadd.f32 %v2496, %v3209
        %3211 = vmatprep.mubr.bf16.mxu0 %v2341
        %3212 = vmatmul.mubr.bf16.gmra.mrb[0].mxu0 %v2340
        %v3213 = vpop.f32.mrb[0].mxu0
        %v3214 = vadd.f32 %v2492, %v3213
        %v3215 = vpop.f32.mrb[0].mxu0
        %v3216 = vadd.f32 %v2496, %v3215
        %v3217 = vpop.f32.mrb[0].mxu0
        %v3218 = vadd.f32 %v2492, %v3217
        %v3219 = vpop.f32.mrb[0].mxu0
        %v3220 = vadd.f32 %v2496, %v3219
        %3221 = vmatprep.mubr.bf16.mxu0 %v2345
        %3222 = vmatmul.mubr.bf16.gmra.mrb[0].mxu0 %v2344
        %v3223 = vpop.f32.mrb[0].mxu0
        %v3224 = vadd.f32 %v2492, %v3223
        %v3225 = vpop.f32.mrb[0].mxu0
        %v3226 = vadd.f32 %v2496, %v3225
        %v3227 = vpop.f32.mrb[0].mxu0
        %v3228 = vadd.f32 %v2492, %v3227
        %v3229 = vpop.f32.mrb[0].mxu0
        %v3230 = vadd.f32 %v2496, %v3229
        %3231 = vmatprep.mubr.bf16.mxu0 %v2349
        %3232 = vmatmul.mubr.bf16.gmra.mrb[0].mxu0 %v2348
        %v3233 = vpop.f32.mrb[0].mxu0
        %v3234 = vadd.f32 %v2492, %v3233
        %v3235 = vpop.f32.mrb[0].mxu0
        %v3236 = vadd.f32 %v2496, %v3235
        %v3237 = vpop.f32.mrb[0].mxu0
        %v3238 = vadd.f32 %v2492, %v3237
        %v3239 = vpop.f32.mrb[0].mxu0
        %v3240 = vadd.f32 %v2496, %v3239
        %3241 = vmatprep.mubr.bf16.mxu0 %v2353
        %3242 = vmatmul.mubr.bf16.gmra.mrb[0].mxu0 %v2352
        %v3243 = vpop.f32.mrb[0].mxu0
        %v3244 = vadd.f32 %v2492, %v3243
        %v3245 = vpop.f32.mrb[0].mxu0
        %v3246 = vadd.f32 %v2496, %v3245
        %v3247 = vpop.f32.mrb[0].mxu0
        %v3248 = vadd.f32 %v2492, %v3247
        %v3249 = vpop.f32.mrb[0].mxu0
        %v3250 = vadd.f32 %v2496, %v3249
        %3251 = vmatprep.mubr.bf16.mxu0 %v2357
        %3252 = vmatmul.mubr.bf16.gmra.mrb[0].mxu0 %v2356
        %v3253 = vpop.f32.mrb[0].mxu0
        %v3254 = vadd.f32 %v2492, %v3253
        %v3255 = vpop.f32.mrb[0].mxu0
        %v3256 = vadd.f32 %v2496, %v3255
        %v3257 = vpop.f32.mrb[0].mxu0
        %v3258 = vadd.f32 %v2492, %v3257
        %v3259 = vpop.f32.mrb[0].mxu0
        %v3260 = vadd.f32 %v2496, %v3259
        %3261 = vdwg.mxu0
        %3262 = vmatprep.subr.bf16.mxu0 %v2958
        %3263 = vmatpush1.bf16.msra.mxu0 %v2957
        %3264 = vmatprep.subr.bf16.mxu0 %v2962
        %3265 = vmatpush1.bf16.msra.mxu0 %v2961
        %3266 = vmatprep.subr.bf16.mxu0 %v2966
        %3267 = vmatpush1.bf16.msra.mxu0 %v2965
        %3268 = vmatprep.subr.bf16.mxu0 %v2970
        %3269 = vmatpush1.bf16.msra.mxu0 %v2969
        %3270 = vmatprep.subr.bf16.mxu0 %v2974
        %3271 = vmatpush1.bf16.msra.mxu0 %v2973
        %3272 = vmatprep.subr.bf16.mxu0 %v2978
        %3273 = vmatpush1.bf16.msra.mxu0 %v2977
        %3274 = vmatprep.subr.bf16.mxu0 %v2982
        %3275 = vmatpush1.bf16.msra.mxu0 %v2981
        %3276 = vmatprep.subr.bf16.mxu0 %v2986
        %3277 = vmatpush1.bf16.msra.mxu0 %v2985
        %3278 = vmatprep.subr.bf16.mxu0 %v2990
        %3279 = vmatpush1.bf16.msra.mxu0 %v2989
        %3280 = vmatprep.subr.bf16.mxu0 %v2994
        %3281 = vmatpush1.bf16.msra.mxu0 %v2993
        %3282 = vmatprep.subr.bf16.mxu0 %v2998
        %3283 = vmatpush1.bf16.msra.mxu0 %v2997
        %3284 = vmatprep.subr.bf16.mxu0 %v3002
        %3285 = vmatpush1.bf16.msra.mxu0 %v3001
        %3286 = vmatprep.subr.bf16.mxu0 %v3006
        %3287 = vmatpush1.bf16.msra.mxu0 %v3005
        %3288 = vmatprep.subr.bf16.mxu0 %v3010
        %3289 = vmatpush1.bf16.msra.mxu0 %v3009
        %3290 = vmatprep.subr.bf16.mxu0 %v3014
        %3291 = vmatpush1.bf16.msra.mxu0 %v3013
        %3292 = vmatprep.subr.bf16.mxu0 %v3018
        %3293 = vmatpush1.bf16.msra.mxu0 %v3017
        %3294 = vmatprep.mubr.bf16.mxu0 %v2331
        %3295 = vmatmul.mubr.bf16.gmra.mrb[0].mxu0 %v2330
        %v3296 = vpop.f32.mrb[0].mxu0
        %v3297 = vadd.f32 %v3184, %v3296
        %v3298 = vpop.f32.mrb[0].mxu0
        %v3299 = vadd.f32 %v3186, %v3298
        %v3300 = vpop.f32.mrb[0].mxu0
        %v3301 = vadd.f32 %v3188, %v3300
        %v3302 = vpop.f32.mrb[0].mxu0
        %v3303 = vadd.f32 %v3190, %v3302
        %3304 = vmatprep.mubr.bf16.mxu0 %v2335
        %3305 = vmatmul.mubr.bf16.gmra.mrb[0].mxu0 %v2334
        %v3306 = vpop.f32.mrb[0].mxu0
        %v3307 = vadd.f32 %v3194, %v3306
        %v3308 = vpop.f32.mrb[0].mxu0
        %v3309 = vadd.f32 %v3196, %v3308
        %v3310 = vpop.f32.mrb[0].mxu0
        %v3311 = vadd.f32 %v3198, %v3310
        %v3312 = vpop.f32.mrb[0].mxu0
        %v3313 = vadd.f32 %v3200, %v3312
        %3314 = vmatprep.mubr.bf16.mxu0 %v2339
        %3315 = vmatmul.mubr.bf16.gmra.mrb[0].mxu0 %v2338
        %v3316 = vpop.f32.mrb[0].mxu0
        %v3317 = vadd.f32 %v3204, %v3316
        %v3318 = vpop.f32.mrb[0].mxu0
        %v3319 = vadd.f32 %v3206, %v3318
        %v3320 = vpop.f32.mrb[0].mxu0
        %v3321 = vadd.f32 %v3208, %v3320
        %v3322 = vpop.f32.mrb[0].mxu0
        %v3323 = vadd.f32 %v3210, %v3322
        %3324 = vmatprep.mubr.bf16.mxu0 %v2343
        %3325 = vmatmul.mubr.bf16.gmra.mrb[0].mxu0 %v2342
        %v3326 = vpop.f32.mrb[0].mxu0
        %v3327 = vadd.f32 %v3214, %v3326
        %v3328 = vpop.f32.mrb[0].mxu0
        %v3329 = vadd.f32 %v3216, %v3328
        %v3330 = vpop.f32.mrb[0].mxu0
        %v3331 = vadd.f32 %v3218, %v3330
        %v3332 = vpop.f32.mrb[0].mxu0
        %v3333 = vadd.f32 %v3220, %v3332
        %3334 = vmatprep.mubr.bf16.mxu0 %v2347
        %3335 = vmatmul.mubr.bf16.gmra.mrb[0].mxu0 %v2346
        %v3336 = vpop.f32.mrb[0].mxu0
        %v3337 = vadd.f32 %v3224, %v3336
        %v3338 = vpop.f32.mrb[0].mxu0
        %v3339 = vadd.f32 %v3226, %v3338
        %v3340 = vpop.f32.mrb[0].mxu0
        %v3341 = vadd.f32 %v3228, %v3340
        %v3342 = vpop.f32.mrb[0].mxu0
        %v3343 = vadd.f32 %v3230, %v3342
        %3344 = vmatprep.mubr.bf16.mxu0 %v2351
        %3345 = vmatmul.mubr.bf16.gmra.mrb[0].mxu0 %v2350
        %v3346 = vpop.f32.mrb[0].mxu0
        %v3347 = vadd.f32 %v3234, %v3346
        %v3348 = vpop.f32.mrb[0].mxu0
        %v3349 = vadd.f32 %v3236, %v3348
        %v3350 = vpop.f32.mrb[0].mxu0
        %v3351 = vadd.f32 %v3238, %v3350
        %v3352 = vpop.f32.mrb[0].mxu0
        %v3353 = vadd.f32 %v3240, %v3352
        %3354 = vmatprep.mubr.bf16.mxu0 %v2355
        %3355 = vmatmul.mubr.bf16.gmra.mrb[0].mxu0 %v2354
        %v3356 = vpop.f32.mrb[0].mxu0
        %v3357 = vadd.f32 %v3244, %v3356
        %v3358 = vpop.f32.mrb[0].mxu0
        %v3359 = vadd.f32 %v3246, %v3358
        %v3360 = vpop.f32.mrb[0].mxu0
        %v3361 = vadd.f32 %v3248, %v3360
        %v3362 = vpop.f32.mrb[0].mxu0
        %v3363 = vadd.f32 %v3250, %v3362
        %3364 = vmatprep.mubr.bf16.mxu0 %v2359
        %3365 = vmatmul.mubr.bf16.gmra.mrb[0].mxu0 %v2358
        %v3366 = vpop.f32.mrb[0].mxu0
        %v3367 = vadd.f32 %v3254, %v3366
        %v3368 = vpop.f32.mrb[0].mxu0
        %v3369 = vadd.f32 %v3256, %v3368
        %v3370 = vpop.f32.mrb[0].mxu0
        %v3371 = vadd.f32 %v3258, %v3370
        %v3372 = vpop.f32.mrb[0].mxu0
        %v3373 = vadd.f32 %v3260, %v3372
        %3374 = vdwg.mxu0
        %3375 = vmatprep.subr.bf16.mxu0 %v2896
        %3376 = vmatpush1.bf16.msra.mxu0 %v2895
        %3377 = vmatprep.subr.bf16.mxu0 %v2900
        %3378 = vmatpush1.bf16.msra.mxu0 %v2899
        %3379 = vmatprep.subr.bf16.mxu0 %v2904
        %3380 = vmatpush1.bf16.msra.mxu0 %v2903
        %3381 = vmatprep.subr.bf16.mxu0 %v2908
        %3382 = vmatpush1.bf16.msra.mxu0 %v2907
        %3383 = vmatprep.subr.bf16.mxu0 %v2912
        %3384 = vmatpush1.bf16.msra.mxu0 %v2911
        %3385 = vmatprep.subr.bf16.mxu0 %v2916
        %3386 = vmatpush1.bf16.msra.mxu0 %v2915
        %3387 = vmatprep.subr.bf16.mxu0 %v2920
        %3388 = vmatpush1.bf16.msra.mxu0 %v2919
        %3389 = vmatprep.subr.bf16.mxu0 %v2924
        %3390 = vmatpush1.bf16.msra.mxu0 %v2923
        %3391 = vmatprep.subr.bf16.mxu0 %v2928
        %3392 = vmatpush1.bf16.msra.mxu0 %v2927
        %3393 = vmatprep.subr.bf16.mxu0 %v2932
        %3394 = vmatpush1.bf16.msra.mxu0 %v2931
        %3395 = vmatprep.subr.bf16.mxu0 %v2936
        %3396 = vmatpush1.bf16.msra.mxu0 %v2935
        %3397 = vmatprep.subr.bf16.mxu0 %v2940
        %3398 = vmatpush1.bf16.msra.mxu0 %v2939
        %3399 = vmatprep.subr.bf16.mxu0 %v2944
        %3400 = vmatpush1.bf16.msra.mxu0 %v2943
        %3401 = vmatprep.subr.bf16.mxu0 %v2948
        %3402 = vmatpush1.bf16.msra.mxu0 %v2947
        %3403 = vmatprep.subr.bf16.mxu0 %v2952
        %3404 = vmatpush1.bf16.msra.mxu0 %v2951
        %3405 = vmatprep.subr.bf16.mxu0 %v2956
        %3406 = vmatpush1.bf16.msra.mxu0 %v2955
        %3407 = vmatprep.mubr.bf16.mxu0 %v2329
        %3408 = vmatmul.mubr.bf16.gmra.mrb[0].mxu0 %v2328
        %v3409 = vpop.f32.mrb[0].mxu0
        %v3410 = vadd.f32 %v2500, %v3409
        %v3411 = vpop.f32.mrb[0].mxu0
        %v3412 = vadd.f32 %v2504, %v3411
        %v3413 = vpop.f32.mrb[0].mxu0
        %v3414 = vadd.f32 %v2500, %v3413
        %v3415 = vpop.f32.mrb[0].mxu0
        %v3416 = vadd.f32 %v2504, %v3415
        %3417 = vmatprep.mubr.bf16.mxu0 %v2333
        %3418 = vmatmul.mubr.bf16.gmra.mrb[0].mxu0 %v2332
        %v3419 = vpop.f32.mrb[0].mxu0
        %v3420 = vadd.f32 %v2500, %v3419
        %v3421 = vpop.f32.mrb[0].mxu0
        %v3422 = vadd.f32 %v2504, %v3421
        %v3423 = vpop.f32.mrb[0].mxu0
        %v3424 = vadd.f32 %v2500, %v3423
        %v3425 = vpop.f32.mrb[0].mxu0
        %v3426 = vadd.f32 %v2504, %v3425
        %3427 = vmatprep.mubr.bf16.mxu0 %v2337
        %3428 = vmatmul.mubr.bf16.gmra.mrb[0].mxu0 %v2336
        %v3429 = vpop.f32.mrb[0].mxu0
        %v3430 = vadd.f32 %v2500, %v3429
        %v3431 = vpop.f32.mrb[0].mxu0
        %v3432 = vadd.f32 %v2504, %v3431
        %v3433 = vpop.f32.mrb[0].mxu0
        %v3434 = vadd.f32 %v2500, %v3433
        %v3435 = vpop.f32.mrb[0].mxu0
        %v3436 = vadd.f32 %v2504, %v3435
        %3437 = vmatprep.mubr.bf16.mxu0 %v2341
        %3438 = vmatmul.mubr.bf16.gmra.mrb[0].mxu0 %v2340
        %v3439 = vpop.f32.mrb[0].mxu0
        %v3440 = vadd.f32 %v2500, %v3439
        %v3441 = vpop.f32.mrb[0].mxu0
        %v3442 = vadd.f32 %v2504, %v3441
        %v3443 = vpop.f32.mrb[0].mxu0
        %v3444 = vadd.f32 %v2500, %v3443
        %v3445 = vpop.f32.mrb[0].mxu0
        %v3446 = vadd.f32 %v2504, %v3445
        %3447 = vmatprep.mubr.bf16.mxu0 %v2345
        %3448 = vmatmul.mubr.bf16.gmra.mrb[0].mxu0 %v2344
        %v3449 = vpop.f32.mrb[0].mxu0
        %v3450 = vadd.f32 %v2500, %v3449
        %v3451 = vpop.f32.mrb[0].mxu0
        %v3452 = vadd.f32 %v2504, %v3451
        %v3453 = vpop.f32.mrb[0].mxu0
        %v3454 = vadd.f32 %v2500, %v3453
        %v3455 = vpop.f32.mrb[0].mxu0
        %v3456 = vadd.f32 %v2504, %v3455
        %3457 = vmatprep.mubr.bf16.mxu0 %v2349
        %3458 = vmatmul.mubr.bf16.gmra.mrb[0].mxu0 %v2348
        %v3459 = vpop.f32.mrb[0].mxu0
        %v3460 = vadd.f32 %v2500, %v3459
        %v3461 = vpop.f32.mrb[0].mxu0
        %v3462 = vadd.f32 %v2504, %v3461
        %v3463 = vpop.f32.mrb[0].mxu0
        %v3464 = vadd.f32 %v2500, %v3463
        %v3465 = vpop.f32.mrb[0].mxu0
        %v3466 = vadd.f32 %v2504, %v3465
        %3467 = vmatprep.mubr.bf16.mxu0 %v2353
        %3468 = vmatmul.mubr.bf16.gmra.mrb[0].mxu0 %v2352
        %v3469 = vpop.f32.mrb[0].mxu0
        %v3470 = vadd.f32 %v2500, %v3469
        %v3471 = vpop.f32.mrb[0].mxu0
        %v3472 = vadd.f32 %v2504, %v3471
        %v3473 = vpop.f32.mrb[0].mxu0
        %v3474 = vadd.f32 %v2500, %v3473
        %v3475 = vpop.f32.mrb[0].mxu0
        %v3476 = vadd.f32 %v2504, %v3475
        %3477 = vmatprep.mubr.bf16.mxu0 %v2357
        %3478 = vmatmul.mubr.bf16.gmra.mrb[0].mxu0 %v2356
        %v3479 = vpop.f32.mrb[0].mxu0
        %v3480 = vadd.f32 %v2500, %v3479
        %v3481 = vpop.f32.mrb[0].mxu0
        %v3482 = vadd.f32 %v2504, %v3481
        %v3483 = vpop.f32.mrb[0].mxu0
        %v3484 = vadd.f32 %v2500, %v3483
        %v3485 = vpop.f32.mrb[0].mxu0
        %v3486 = vadd.f32 %v2504, %v3485
        %3487 = vdwg.mxu0
        %3488 = vmatprep.subr.bf16.mxu0 %v2960
        %3489 = vmatpush1.bf16.msra.mxu0 %v2959
        %3490 = vmatprep.subr.bf16.mxu0 %v2964
        %3491 = vmatpush1.bf16.msra.mxu0 %v2963
        %3492 = vmatprep.subr.bf16.mxu0 %v2968
        %3493 = vmatpush1.bf16.msra.mxu0 %v2967
        %3494 = vmatprep.subr.bf16.mxu0 %v2972
        %3495 = vmatpush1.bf16.msra.mxu0 %v2971
        %3496 = vmatprep.subr.bf16.mxu0 %v2976
        %3497 = vmatpush1.bf16.msra.mxu0 %v2975
        %3498 = vmatprep.subr.bf16.mxu0 %v2980
        %3499 = vmatpush1.bf16.msra.mxu0 %v2979
        %3500 = vmatprep.subr.bf16.mxu0 %v2984
        %3501 = vmatpush1.bf16.msra.mxu0 %v2983
        %3502 = vmatprep.subr.bf16.mxu0 %v2988
        %3503 = vmatpush1.bf16.msra.mxu0 %v2987
        %3504 = vmatprep.subr.bf16.mxu0 %v2992
        %3505 = vmatpush1.bf16.msra.mxu0 %v2991
        %3506 = vmatprep.subr.bf16.mxu0 %v2996
        %3507 = vmatpush1.bf16.msra.mxu0 %v2995
        %3508 = vmatprep.subr.bf16.mxu0 %v3000
        %3509 = vmatpush1.bf16.msra.mxu0 %v2999
        %3510 = vmatprep.subr.bf16.mxu0 %v3004
        %3511 = vmatpush1.bf16.msra.mxu0 %v3003
        %3512 = vmatprep.subr.bf16.mxu0 %v3008
        %3513 = vmatpush1.bf16.msra.mxu0 %v3007
        %3514 = vmatprep.subr.bf16.mxu0 %v3012
        %3515 = vmatpush1.bf16.msra.mxu0 %v3011
        %3516 = vmatprep.subr.bf16.mxu0 %v3016
        %3517 = vmatpush1.bf16.msra.mxu0 %v3015
        %3518 = vmatprep.subr.bf16.mxu0 %v3020
        %3519 = vmatpush1.bf16.msra.mxu0 %v3019
        %3520 = vmatprep.mubr.bf16.mxu0 %v2331
        %3521 = vmatmul.mubr.bf16.gmra.mrb[0].mxu0 %v2330
        %v3522 = vpop.f32.mrb[0].mxu0
        %v3523 = vadd.f32 %v3410, %v3522
        %v3524 = vpop.f32.mrb[0].mxu0
        %v3525 = vadd.f32 %v3412, %v3524
        %v3526 = vpop.f32.mrb[0].mxu0
        %v3527 = vadd.f32 %v3414, %v3526
        %v3528 = vpop.f32.mrb[0].mxu0
        %v3529 = vadd.f32 %v3416, %v3528
        %3530 = vmatprep.mubr.bf16.mxu0 %v2335
        %3531 = vmatmul.mubr.bf16.gmra.mrb[0].mxu0 %v2334
        %v3532 = vpop.f32.mrb[0].mxu0
        %v3533 = vadd.f32 %v3420, %v3532
        %v3534 = vpop.f32.mrb[0].mxu0
        %v3535 = vadd.f32 %v3422, %v3534
        %v3536 = vpop.f32.mrb[0].mxu0
        %v3537 = vadd.f32 %v3424, %v3536
        %v3538 = vpop.f32.mrb[0].mxu0
        %v3539 = vadd.f32 %v3426, %v3538
        %3540 = vmatprep.mubr.bf16.mxu0 %v2339
        %3541 = vmatmul.mubr.bf16.gmra.mrb[0].mxu0 %v2338
        %v3542 = vpop.f32.mrb[0].mxu0
        %v3543 = vadd.f32 %v3430, %v3542
        %v3544 = vpop.f32.mrb[0].mxu0
        %v3545 = vadd.f32 %v3432, %v3544
        %v3546 = vpop.f32.mrb[0].mxu0
        %v3547 = vadd.f32 %v3434, %v3546
        %v3548 = vpop.f32.mrb[0].mxu0
        %v3549 = vadd.f32 %v3436, %v3548
        %3550 = vmatprep.mubr.bf16.mxu0 %v2343
        %3551 = vmatmul.mubr.bf16.gmra.mrb[0].mxu0 %v2342
        %v3552 = vpop.f32.mrb[0].mxu0
        %v3553 = vadd.f32 %v3440, %v3552
        %v3554 = vpop.f32.mrb[0].mxu0
        %v3555 = vadd.f32 %v3442, %v3554
        %v3556 = vpop.f32.mrb[0].mxu0
        %v3557 = vadd.f32 %v3444, %v3556
        %v3558 = vpop.f32.mrb[0].mxu0
        %v3559 = vadd.f32 %v3446, %v3558
        %3560 = vmatprep.mubr.bf16.mxu0 %v2347
        %3561 = vmatmul.mubr.bf16.gmra.mrb[0].mxu0 %v2346
        %v3562 = vpop.f32.mrb[0].mxu0
        %v3563 = vadd.f32 %v3450, %v3562
        %v3564 = vpop.f32.mrb[0].mxu0
        %v3565 = vadd.f32 %v3452, %v3564
        %v3566 = vpop.f32.mrb[0].mxu0
        %v3567 = vadd.f32 %v3454, %v3566
        %v3568 = vpop.f32.mrb[0].mxu0
        %v3569 = vadd.f32 %v3456, %v3568
        %3570 = vmatprep.mubr.bf16.mxu0 %v2351
        %3571 = vmatmul.mubr.bf16.gmra.mrb[0].mxu0 %v2350
        %v3572 = vpop.f32.mrb[0].mxu0
        %v3573 = vadd.f32 %v3460, %v3572
        %v3574 = vpop.f32.mrb[0].mxu0
        %v3575 = vadd.f32 %v3462, %v3574
        %v3576 = vpop.f32.mrb[0].mxu0
        %v3577 = vadd.f32 %v3464, %v3576
        %v3578 = vpop.f32.mrb[0].mxu0
        %v3579 = vadd.f32 %v3466, %v3578
        %3580 = vmatprep.mubr.bf16.mxu0 %v2355
        %3581 = vmatmul.mubr.bf16.gmra.mrb[0].mxu0 %v2354
        %v3582 = vpop.f32.mrb[0].mxu0
        %v3583 = vadd.f32 %v3470, %v3582
        %v3584 = vpop.f32.mrb[0].mxu0
        %v3585 = vadd.f32 %v3472, %v3584
        %v3586 = vpop.f32.mrb[0].mxu0
        %v3587 = vadd.f32 %v3474, %v3586
        %v3588 = vpop.f32.mrb[0].mxu0
        %v3589 = vadd.f32 %v3476, %v3588
        %3590 = vmatprep.mubr.bf16.mxu0 %v2359
        %3591 = vmatmul.mubr.bf16.gmra.mrb[0].mxu0 %v2358
        %v3592 = vpop.f32.mrb[0].mxu0
        %v3593 = vadd.f32 %v3480, %v3592
        %v3594 = vpop.f32.mrb[0].mxu0
        %v3595 = vadd.f32 %v3482, %v3594
        %v3596 = vpop.f32.mrb[0].mxu0
        %v3597 = vadd.f32 %v3484, %v3596
        %v3598 = vpop.f32.mrb[0].mxu0
        %v3599 = vadd.f32 %v3486, %v3598
        %3600 = vdwg.mxu0
        %v3601 = vmax.f32 %v3297, 0.0
        %v3602 = vmax.f32 %v3299, 0.0
        %v3603 = vmax.f32 %v3523, 0.0
        %v3604 = vmax.f32 %v3525, 0.0
        %v3605 = vmax.f32 %v3301, 0.0
        %v3606 = vmax.f32 %v3303, 0.0
        %v3607 = vmax.f32 %v3527, 0.0
        %v3608 = vmax.f32 %v3529, 0.0
        %v3609 = vmax.f32 %v3307, 0.0
        %v3610 = vmax.f32 %v3309, 0.0
        %v3611 = vmax.f32 %v3533, 0.0
        %v3612 = vmax.f32 %v3535, 0.0
        %v3613 = vmax.f32 %v3311, 0.0
        %v3614 = vmax.f32 %v3313, 0.0
        %v3615 = vmax.f32 %v3537, 0.0
        %v3616 = vmax.f32 %v3539, 0.0
        %v3617 = vmax.f32 %v3317, 0.0
        %v3618 = vmax.f32 %v3319, 0.0
        %v3619 = vmax.f32 %v3543, 0.0
        %v3620 = vmax.f32 %v3545, 0.0
        %v3621 = vmax.f32 %v3321, 0.0
        %v3622 = vmax.f32 %v3323, 0.0
        %v3623 = vmax.f32 %v3547, 0.0
        %v3624 = vmax.f32 %v3549, 0.0
        %v3625 = vmax.f32 %v3327, 0.0
        %v3626 = vmax.f32 %v3329, 0.0
        %v3627 = vmax.f32 %v3553, 0.0
        %v3628 = vmax.f32 %v3555, 0.0
        %v3629 = vmax.f32 %v3331, 0.0
        %v3630 = vmax.f32 %v3333, 0.0
        %v3631 = vmax.f32 %v3557, 0.0
        %v3632 = vmax.f32 %v3559, 0.0
        %v3633 = vmax.f32 %v3337, 0.0
        %v3634 = vmax.f32 %v3339, 0.0
        %v3635 = vmax.f32 %v3563, 0.0
        %v3636 = vmax.f32 %v3565, 0.0
        %v3637 = vmax.f32 %v3341, 0.0
        %v3638 = vmax.f32 %v3343, 0.0
        %v3639 = vmax.f32 %v3567, 0.0
        %v3640 = vmax.f32 %v3569, 0.0
        %v3641 = vmax.f32 %v3347, 0.0
        %v3642 = vmax.f32 %v3349, 0.0
        %v3643 = vmax.f32 %v3573, 0.0
        %v3644 = vmax.f32 %v3575, 0.0
        %v3645 = vmax.f32 %v3351, 0.0
        %v3646 = vmax.f32 %v3353, 0.0
        %v3647 = vmax.f32 %v3577, 0.0
        %v3648 = vmax.f32 %v3579, 0.0
        %v3649 = vmax.f32 %v3357, 0.0
        %v3650 = vmax.f32 %v3359, 0.0
        %v3651 = vmax.f32 %v3583, 0.0
        %v3652 = vmax.f32 %v3585, 0.0
        %v3653 = vmax.f32 %v3361, 0.0
        %v3654 = vmax.f32 %v3363, 0.0
        %v3655 = vmax.f32 %v3587, 0.0
        %v3656 = vmax.f32 %v3589, 0.0
        %v3657 = vmax.f32 %v3367, 0.0
        %v3658 = vmax.f32 %v3369, 0.0
        %v3659 = vmax.f32 %v3593, 0.0
        %v3660 = vmax.f32 %v3595, 0.0
        %v3661 = vmax.f32 %v3371, 0.0
        %v3662 = vmax.f32 %v3373, 0.0
        %v3663 = vmax.f32 %v3597, 0.0
        %v3664 = vmax.f32 %v3599, 0.0
        %v3665 = vpack.c.bf16 %v3605, %v3601
        %v3666 = vpack.c.bf16 %v3606, %v3602
        %v3667 = vpack.c.bf16 %v3607, %v3603
        %v3668 = vpack.c.bf16 %v3608, %v3604
        %v3669 = vpack.c.bf16 %v3613, %v3609
        %v3670 = vpack.c.bf16 %v3614, %v3610
        %v3671 = vpack.c.bf16 %v3615, %v3611
        %v3672 = vpack.c.bf16 %v3616, %v3612
        %v3673 = vpack.c.bf16 %v3621, %v3617
        %v3674 = vpack.c.bf16 %v3622, %v3618
        %v3675 = vpack.c.bf16 %v3623, %v3619
        %v3676 = vpack.c.bf16 %v3624, %v3620
        %v3677 = vpack.c.bf16 %v3629, %v3625
        %v3678 = vpack.c.bf16 %v3630, %v3626
        %v3679 = vpack.c.bf16 %v3631, %v3627
        %v3680 = vpack.c.bf16 %v3632, %v3628
        %v3681 = vpack.c.bf16 %v3637, %v3633
        %v3682 = vpack.c.bf16 %v3638, %v3634
        %v3683 = vpack.c.bf16 %v3639, %v3635
        %v3684 = vpack.c.bf16 %v3640, %v3636
        %v3685 = vpack.c.bf16 %v3645, %v3641
        %v3686 = vpack.c.bf16 %v3646, %v3642
        %v3687 = vpack.c.bf16 %v3647, %v3643
        %v3688 = vpack.c.bf16 %v3648, %v3644
        %v3689 = vpack.c.bf16 %v3653, %v3649
        %v3690 = vpack.c.bf16 %v3654, %v3650
        %v3691 = vpack.c.bf16 %v3655, %v3651
        %v3692 = vpack.c.bf16 %v3656, %v3652
        %v3693 = vpack.c.bf16 %v3661, %v3657
        %v3694 = vpack.c.bf16 %v3662, %v3658
        %v3695 = vpack.c.bf16 %v3663, %v3659
        %v3696 = vpack.c.bf16 %v3664, %v3660
        %v3697 = vld [vmem:[%s325] sm:$0xf]
        %v3698 = vld [vmem:[%s325 + $0x4] sm:$0xf]
        %v3699 = vld [vmem:[%s325 + $0x8] sm:$0xf]
        %v3700 = vld [vmem:[%s325 + $0xc] sm:$0xf]
        %v3701 = vld [vmem:[%s325 + $0x10] sm:$0xf]
        %v3702 = vld [vmem:[%s325 + $0x14] sm:$0xf]
        %v3703 = vld [vmem:[%s325 + $0x18] sm:$0xf]
        %v3704 = vld [vmem:[%s325 + $0x1c] sm:$0xf]
        %v3705 = vld [vmem:[%s325 + $0x20] sm:$0xf]
        %v3706 = vld [vmem:[%s325 + $0x24] sm:$0xf]
        %v3707 = vld [vmem:[%s325 + $0x28] sm:$0xf]
        %v3708 = vld [vmem:[%s325 + $0x2c] sm:$0xf]
        %v3709 = vld [vmem:[%s325 + $0x30] sm:$0xf]
        %v3710 = vld [vmem:[%s325 + $0x34] sm:$0xf]
        %v3711 = vld [vmem:[%s325 + $0x38] sm:$0xf]
        %v3712 = vld [vmem:[%s325 + $0x3c] sm:$0xf]
        %v3713 = vld [vmem:[%s325 + $0x40] sm:$0xf]
        %v3714 = vld [vmem:[%s325 + $0x44] sm:$0xf]
        %v3715 = vld [vmem:[%s325 + $0x48] sm:$0xf]
        %v3716 = vld [vmem:[%s325 + $0x4c] sm:$0xf]
        %v3717 = vld [vmem:[%s325 + $0x50] sm:$0xf]
        %v3718 = vld [vmem:[%s325 + $0x54] sm:$0xf]
        %v3719 = vld [vmem:[%s325 + $0x58] sm:$0xf]
        %v3720 = vld [vmem:[%s325 + $0x5c] sm:$0xf]
        %v3721 = vld [vmem:[%s325 + $0x60] sm:$0xf]
        %v3722 = vld [vmem:[%s325 + $0x64] sm:$0xf]
        %v3723 = vld [vmem:[%s325 + $0x68] sm:$0xf]
        %v3724 = vld [vmem:[%s325 + $0x6c] sm:$0xf]
        %v3725 = vld [vmem:[%s325 + $0x70] sm:$0xf]
        %v3726 = vld [vmem:[%s325 + $0x74] sm:$0xf]
        %v3727 = vld [vmem:[%s325 + $0x78] sm:$0xf]
        %v3728 = vld [vmem:[%s325 + $0x7c] sm:$0xf]
        %v3729 = vld [vmem:[%s325 + $0x80] sm:$0xf]
        %v3730 = vld [vmem:[%s325 + $0x84] sm:$0xf]
        %v3731 = vld [vmem:[%s325 + $0x88] sm:$0xf]
        %v3732 = vld [vmem:[%s325 + $0x8c] sm:$0xf]
        %v3733 = vld [vmem:[%s325 + $0x90] sm:$0xf]
        %v3734 = vld [vmem:[%s325 + $0x94] sm:$0xf]
        %v3735 = vld [vmem:[%s325 + $0x98] sm:$0xf]
        %v3736 = vld [vmem:[%s325 + $0x9c] sm:$0xf]
        %v3737 = vld [vmem:[%s325 + $0xa0] sm:$0xf]
        %v3738 = vld [vmem:[%s325 + $0xa4] sm:$0xf]
        %v3739 = vld [vmem:[%s325 + $0xa8] sm:$0xf]
        %v3740 = vld [vmem:[%s325 + $0xac] sm:$0xf]
        %v3741 = vld [vmem:[%s325 + $0xb0] sm:$0xf]
        %v3742 = vld [vmem:[%s325 + $0xb4] sm:$0xf]
        %v3743 = vld [vmem:[%s325 + $0xb8] sm:$0xf]
        %v3744 = vld [vmem:[%s325 + $0xbc] sm:$0xf]
        %v3745 = vld [vmem:[%s325 + $0xc0] sm:$0xf]
        %v3746 = vld [vmem:[%s325 + $0xc4] sm:$0xf]
        %v3747 = vld [vmem:[%s325 + $0xc8] sm:$0xf]
        %v3748 = vld [vmem:[%s325 + $0xcc] sm:$0xf]
        %v3749 = vld [vmem:[%s325 + $0xd0] sm:$0xf]
        %v3750 = vld [vmem:[%s325 + $0xd4] sm:$0xf]
        %v3751 = vld [vmem:[%s325 + $0xd8] sm:$0xf]
        %v3752 = vld [vmem:[%s325 + $0xdc] sm:$0xf]
        %v3753 = vld [vmem:[%s325 + $0xe0] sm:$0xf]
        %v3754 = vld [vmem:[%s325 + $0xe4] sm:$0xf]
        %v3755 = vld [vmem:[%s325 + $0xe8] sm:$0xf]
        %v3756 = vld [vmem:[%s325 + $0xec] sm:$0xf]
        %v3757 = vld [vmem:[%s325 + $0xf0] sm:$0xf]
        %v3758 = vld [vmem:[%s325 + $0xf4] sm:$0xf]
        %v3759 = vld [vmem:[%s325 + $0xf8] sm:$0xf]
        %v3760 = vld [vmem:[%s325 + $0xfc] sm:$0xf]
        %v3762 = vlaneseq
        %v3763 = vshrl.u32 %v3762, 7
        %v3764 = vsub.s32 0, %v3763
        %v3765 = vrot.slane %v436, %v3764
        %v3831 = vunpack.c.l.b16 %v3697
        %v3832 = vunpack.c.l.b16 %v3698
        %v3833 = vunpack.c.l.b16 %v3699
        %v3834 = vunpack.c.l.b16 %v3700
        %v3835 = vunpack.c.l.b16 %v3701
        %v3836 = vunpack.c.l.b16 %v3702
        %v3837 = vunpack.c.l.b16 %v3703
        %v3838 = vunpack.c.l.b16 %v3704
        %v3839 = vunpack.c.l.b16 %v3705
        %v3840 = vunpack.c.l.b16 %v3706
        %v3841 = vunpack.c.l.b16 %v3707
        %v3842 = vunpack.c.l.b16 %v3708
        %v3843 = vunpack.c.l.b16 %v3709
        %v3844 = vunpack.c.l.b16 %v3710
        %v3845 = vunpack.c.l.b16 %v3711
        %v3846 = vunpack.c.l.b16 %v3712
        %v3847 = vunpack.c.l.b16 %v3713
        %v3848 = vunpack.c.l.b16 %v3714
        %v3849 = vunpack.c.l.b16 %v3715
        %v3850 = vunpack.c.l.b16 %v3716
        %v3851 = vunpack.c.l.b16 %v3717
        %v3852 = vunpack.c.l.b16 %v3718
        %v3853 = vunpack.c.l.b16 %v3719
        %v3854 = vunpack.c.l.b16 %v3720
        %v3855 = vunpack.c.l.b16 %v3721
        %v3856 = vunpack.c.l.b16 %v3722
        %v3857 = vunpack.c.l.b16 %v3723
        %v3858 = vunpack.c.l.b16 %v3724
        %v3859 = vunpack.c.l.b16 %v3725
        %v3860 = vunpack.c.l.b16 %v3726
        %v3861 = vunpack.c.l.b16 %v3727
        %v3862 = vunpack.c.l.b16 %v3728
        %v3863 = vunpack.c.l.b16 %v3729
        %v3864 = vunpack.c.l.b16 %v3730
        %v3865 = vunpack.c.l.b16 %v3731
        %v3866 = vunpack.c.l.b16 %v3732
        %v3867 = vunpack.c.l.b16 %v3733
        %v3868 = vunpack.c.l.b16 %v3734
        %v3869 = vunpack.c.l.b16 %v3735
        %v3870 = vunpack.c.l.b16 %v3736
        %v3871 = vunpack.c.l.b16 %v3737
        %v3872 = vunpack.c.l.b16 %v3738
        %v3873 = vunpack.c.l.b16 %v3739
        %v3874 = vunpack.c.l.b16 %v3740
        %v3875 = vunpack.c.l.b16 %v3741
        %v3876 = vunpack.c.l.b16 %v3742
        %v3877 = vunpack.c.l.b16 %v3743
        %v3878 = vunpack.c.l.b16 %v3744
        %v3879 = vunpack.c.l.b16 %v3745
        %v3880 = vunpack.c.l.b16 %v3746
        %v3881 = vunpack.c.l.b16 %v3747
        %v3882 = vunpack.c.l.b16 %v3748
        %v3883 = vunpack.c.l.b16 %v3749
        %v3884 = vunpack.c.l.b16 %v3750
        %v3885 = vunpack.c.l.b16 %v3751
        %v3886 = vunpack.c.l.b16 %v3752
        %v3887 = vunpack.c.l.b16 %v3753
        %v3888 = vunpack.c.l.b16 %v3754
        %v3889 = vunpack.c.l.b16 %v3755
        %v3890 = vunpack.c.l.b16 %v3756
        %v3891 = vunpack.c.l.b16 %v3757
        %v3892 = vunpack.c.l.b16 %v3758
        %v3893 = vunpack.c.l.b16 %v3759
        %v3894 = vunpack.c.l.b16 %v3760
        %v3895 = vpack.c.b16 %v3832, %v3831
        %v3896 = vpack.c.b16 %v3834, %v3833
        %v3897 = vpack.c.b16 %v3836, %v3835
        %v3898 = vpack.c.b16 %v3838, %v3837
        %v3899 = vpack.c.b16 %v3840, %v3839
        %v3900 = vpack.c.b16 %v3842, %v3841
        %v3901 = vpack.c.b16 %v3844, %v3843
        %v3902 = vpack.c.b16 %v3846, %v3845
        %v3903 = vpack.c.b16 %v3848, %v3847
        %v3904 = vpack.c.b16 %v3850, %v3849
        %v3905 = vpack.c.b16 %v3852, %v3851
        %v3906 = vpack.c.b16 %v3854, %v3853
        %v3907 = vpack.c.b16 %v3856, %v3855
        %v3908 = vpack.c.b16 %v3858, %v3857
        %v3909 = vpack.c.b16 %v3860, %v3859
        %v3910 = vpack.c.b16 %v3862, %v3861
        %v3911 = vpack.c.b16 %v3864, %v3863
        %v3912 = vpack.c.b16 %v3866, %v3865
        %v3913 = vpack.c.b16 %v3868, %v3867
        %v3914 = vpack.c.b16 %v3870, %v3869
        %v3915 = vpack.c.b16 %v3872, %v3871
        %v3916 = vpack.c.b16 %v3874, %v3873
        %v3917 = vpack.c.b16 %v3876, %v3875
        %v3918 = vpack.c.b16 %v3878, %v3877
        %v3919 = vpack.c.b16 %v3880, %v3879
        %v3920 = vpack.c.b16 %v3882, %v3881
        %v3921 = vpack.c.b16 %v3884, %v3883
        %v3922 = vpack.c.b16 %v3886, %v3885
        %v3923 = vpack.c.b16 %v3888, %v3887
        %v3924 = vpack.c.b16 %v3890, %v3889
        %v3925 = vpack.c.b16 %v3892, %v3891
        %v3926 = vpack.c.b16 %v3894, %v3893
        %3959 = vmatprep.subr.bf16.mxu0 0
        %3960 = vmatpush1.bf16.msra.mxu0 %v3895
        %3961 = vmatprep.subr.bf16.mxu0 0
        %3962 = vmatpush1.bf16.msra.mxu0 %v3896
        %3963 = vmatprep.subr.bf16.mxu0 0
        %3964 = vmatpush1.bf16.msra.mxu0 %v3897
        %3965 = vmatprep.subr.bf16.mxu0 0
        %3966 = vmatpush1.bf16.msra.mxu0 %v3898
        %3967 = vmatprep.subr.bf16.mxu0 0
        %3968 = vmatpush1.bf16.msra.mxu0 %v3899
        %3969 = vmatprep.subr.bf16.mxu0 0
        %3970 = vmatpush1.bf16.msra.mxu0 %v3900
        %3971 = vmatprep.subr.bf16.mxu0 0
        %3972 = vmatpush1.bf16.msra.mxu0 %v3901
        %3973 = vmatprep.subr.bf16.mxu0 0
        %3974 = vmatpush1.bf16.msra.mxu0 %v3902
        %3975 = vmatprep.subr.bf16.mxu0 0
        %3976 = vmatpush1.bf16.msra.mxu0 %v3903
        %3977 = vmatprep.subr.bf16.mxu0 0
        %3978 = vmatpush1.bf16.msra.mxu0 %v3904
        %3979 = vmatprep.subr.bf16.mxu0 0
        %3980 = vmatpush1.bf16.msra.mxu0 %v3905
        %3981 = vmatprep.subr.bf16.mxu0 0
        %3982 = vmatpush1.bf16.msra.mxu0 %v3906
        %3983 = vmatprep.subr.bf16.mxu0 0
        %3984 = vmatpush1.bf16.msra.mxu0 %v3907
        %3985 = vmatprep.subr.bf16.mxu0 0
        %3986 = vmatpush1.bf16.msra.mxu0 %v3908
        %3987 = vmatprep.subr.bf16.mxu0 0
        %3988 = vmatpush1.bf16.msra.mxu0 %v3909
        %3989 = vmatprep.subr.bf16.mxu0 0
        %3990 = vmatpush1.bf16.msra.mxu0 %v3910
        %3991 = vmatprep.mubr.bf16.mxu0 %v3666
        %3992 = vmatmul.mubr.bf16.gmra.mrb[0].mxu0 %v3665
        %v3993 = vpop.f32.mrb[0].mxu0
        %v3994 = vadd.f32 %v3765, %v3993
        %v3995 = vpop.f32.mrb[0].mxu0
        %v3996 = vpop.f32.mrb[0].mxu0
        %v3997 = vadd.f32 %v3765, %v3996
        %v3998 = vpop.f32.mrb[0].mxu0
        %3999 = vmatprep.mubr.bf16.mxu0 %v3670
        %4000 = vmatmul.mubr.bf16.gmra.mrb[0].mxu0 %v3669
        %v4001 = vpop.f32.mrb[0].mxu0
        %v4002 = vadd.f32 %v3765, %v4001
        %v4003 = vpop.f32.mrb[0].mxu0
        %v4004 = vpop.f32.mrb[0].mxu0
        %v4005 = vadd.f32 %v3765, %v4004
        %v4006 = vpop.f32.mrb[0].mxu0
        %4007 = vmatprep.mubr.bf16.mxu0 %v3674
        %4008 = vmatmul.mubr.bf16.gmra.mrb[0].mxu0 %v3673
        %v4009 = vpop.f32.mrb[0].mxu0
        %v4010 = vadd.f32 %v3765, %v4009
        %v4011 = vpop.f32.mrb[0].mxu0
        %v4012 = vpop.f32.mrb[0].mxu0
        %v4013 = vadd.f32 %v3765, %v4012
        %v4014 = vpop.f32.mrb[0].mxu0
        %4015 = vmatprep.mubr.bf16.mxu0 %v3678
        %4016 = vmatmul.mubr.bf16.gmra.mrb[0].mxu0 %v3677
        %v4017 = vpop.f32.mrb[0].mxu0
        %v4018 = vadd.f32 %v3765, %v4017
        %v4019 = vpop.f32.mrb[0].mxu0
        %v4020 = vpop.f32.mrb[0].mxu0
        %v4021 = vadd.f32 %v3765, %v4020
        %v4022 = vpop.f32.mrb[0].mxu0
        %4023 = vmatprep.mubr.bf16.mxu0 %v3682
        %4024 = vmatmul.mubr.bf16.gmra.mrb[0].mxu0 %v3681
        %v4025 = vpop.f32.mrb[0].mxu0
        %v4026 = vadd.f32 %v3765, %v4025
        %v4027 = vpop.f32.mrb[0].mxu0
        %v4028 = vpop.f32.mrb[0].mxu0
        %v4029 = vadd.f32 %v3765, %v4028
        %v4030 = vpop.f32.mrb[0].mxu0
        %4031 = vmatprep.mubr.bf16.mxu0 %v3686
        %4032 = vmatmul.mubr.bf16.gmra.mrb[0].mxu0 %v3685
        %v4033 = vpop.f32.mrb[0].mxu0
        %v4034 = vadd.f32 %v3765, %v4033
        %v4035 = vpop.f32.mrb[0].mxu0
        %v4036 = vpop.f32.mrb[0].mxu0
        %v4037 = vadd.f32 %v3765, %v4036
        %v4038 = vpop.f32.mrb[0].mxu0
        %4039 = vmatprep.mubr.bf16.mxu0 %v3690
        %4040 = vmatmul.mubr.bf16.gmra.mrb[0].mxu0 %v3689
        %v4041 = vpop.f32.mrb[0].mxu0
        %v4042 = vadd.f32 %v3765, %v4041
        %v4043 = vpop.f32.mrb[0].mxu0
        %v4044 = vpop.f32.mrb[0].mxu0
        %v4045 = vadd.f32 %v3765, %v4044
        %v4046 = vpop.f32.mrb[0].mxu0
        %4047 = vmatprep.mubr.bf16.mxu0 %v3694
        %4048 = vmatmul.mubr.bf16.gmra.mrb[0].mxu0 %v3693
        %v4049 = vpop.f32.mrb[0].mxu0
        %v4050 = vadd.f32 %v3765, %v4049
        %v4051 = vpop.f32.mrb[0].mxu0
        %v4052 = vpop.f32.mrb[0].mxu0
        %v4053 = vadd.f32 %v3765, %v4052
        %v4054 = vpop.f32.mrb[0].mxu0
        %4055 = vdwg.mxu0
        %4056 = vmatprep.subr.bf16.mxu0 0
        %4057 = vmatpush1.bf16.msra.mxu0 %v3911
        %4058 = vmatprep.subr.bf16.mxu0 0
        %4059 = vmatpush1.bf16.msra.mxu0 %v3912
        %4060 = vmatprep.subr.bf16.mxu0 0
        %4061 = vmatpush1.bf16.msra.mxu0 %v3913
        %4062 = vmatprep.subr.bf16.mxu0 0
        %4063 = vmatpush1.bf16.msra.mxu0 %v3914
        %4064 = vmatprep.subr.bf16.mxu0 0
        %4065 = vmatpush1.bf16.msra.mxu0 %v3915
        %4066 = vmatprep.subr.bf16.mxu0 0
        %4067 = vmatpush1.bf16.msra.mxu0 %v3916
        %4068 = vmatprep.subr.bf16.mxu0 0
        %4069 = vmatpush1.bf16.msra.mxu0 %v3917
        %4070 = vmatprep.subr.bf16.mxu0 0
        %4071 = vmatpush1.bf16.msra.mxu0 %v3918
        %4072 = vmatprep.subr.bf16.mxu0 0
        %4073 = vmatpush1.bf16.msra.mxu0 %v3919
        %4074 = vmatprep.subr.bf16.mxu0 0
        %4075 = vmatpush1.bf16.msra.mxu0 %v3920
        %4076 = vmatprep.subr.bf16.mxu0 0
        %4077 = vmatpush1.bf16.msra.mxu0 %v3921
        %4078 = vmatprep.subr.bf16.mxu0 0
        %4079 = vmatpush1.bf16.msra.mxu0 %v3922
        %4080 = vmatprep.subr.bf16.mxu0 0
        %4081 = vmatpush1.bf16.msra.mxu0 %v3923
        %4082 = vmatprep.subr.bf16.mxu0 0
        %4083 = vmatpush1.bf16.msra.mxu0 %v3924
        %4084 = vmatprep.subr.bf16.mxu0 0
        %4085 = vmatpush1.bf16.msra.mxu0 %v3925
        %4086 = vmatprep.subr.bf16.mxu0 0
        %4087 = vmatpush1.bf16.msra.mxu0 %v3926
        %4088 = vmatprep.mubr.bf16.mxu0 %v3668
        %4089 = vmatmul.mubr.bf16.gmra.mrb[0].mxu0 %v3667
        %v4090 = vpop.f32.mrb[0].mxu0
        %v4091 = vadd.f32 %v3994, %v4090
        %v4092 = vpop.f32.mrb[0].mxu0
        %v4093 = vpop.f32.mrb[0].mxu0
        %v4094 = vadd.f32 %v3997, %v4093
        %v4095 = vpop.f32.mrb[0].mxu0
        %4096 = vmatprep.mubr.bf16.mxu0 %v3672
        %4097 = vmatmul.mubr.bf16.gmra.mrb[0].mxu0 %v3671
        %v4098 = vpop.f32.mrb[0].mxu0
        %v4099 = vadd.f32 %v4002, %v4098
        %v4100 = vpop.f32.mrb[0].mxu0
        %v4101 = vpop.f32.mrb[0].mxu0
        %v4102 = vadd.f32 %v4005, %v4101
        %v4103 = vpop.f32.mrb[0].mxu0
        %4104 = vmatprep.mubr.bf16.mxu0 %v3676
        %4105 = vmatmul.mubr.bf16.gmra.mrb[0].mxu0 %v3675
        %v4106 = vpop.f32.mrb[0].mxu0
        %v4107 = vadd.f32 %v4010, %v4106
        %v4108 = vpop.f32.mrb[0].mxu0
        %v4109 = vpop.f32.mrb[0].mxu0
        %v4110 = vadd.f32 %v4013, %v4109
        %v4111 = vpop.f32.mrb[0].mxu0
        %4112 = vmatprep.mubr.bf16.mxu0 %v3680
        %4113 = vmatmul.mubr.bf16.gmra.mrb[0].mxu0 %v3679
        %v4114 = vpop.f32.mrb[0].mxu0
        %v4115 = vadd.f32 %v4018, %v4114
        %v4116 = vpop.f32.mrb[0].mxu0
        %v4117 = vpop.f32.mrb[0].mxu0
        %v4118 = vadd.f32 %v4021, %v4117
        %v4119 = vpop.f32.mrb[0].mxu0
        %4120 = vmatprep.mubr.bf16.mxu0 %v3684
        %4121 = vmatmul.mubr.bf16.gmra.mrb[0].mxu0 %v3683
        %v4122 = vpop.f32.mrb[0].mxu0
        %v4123 = vadd.f32 %v4026, %v4122
        %v4124 = vpop.f32.mrb[0].mxu0
        %v4125 = vpop.f32.mrb[0].mxu0
        %v4126 = vadd.f32 %v4029, %v4125
        %v4127 = vpop.f32.mrb[0].mxu0
        %4128 = vmatprep.mubr.bf16.mxu0 %v3688
        %4129 = vmatmul.mubr.bf16.gmra.mrb[0].mxu0 %v3687
        %v4130 = vpop.f32.mrb[0].mxu0
        %v4131 = vadd.f32 %v4034, %v4130
        %v4132 = vpop.f32.mrb[0].mxu0
        %v4133 = vpop.f32.mrb[0].mxu0
        %v4134 = vadd.f32 %v4037, %v4133
        %v4135 = vpop.f32.mrb[0].mxu0
        %4136 = vmatprep.mubr.bf16.mxu0 %v3692
        %4137 = vmatmul.mubr.bf16.gmra.mrb[0].mxu0 %v3691
        %v4138 = vpop.f32.mrb[0].mxu0
        %v4139 = vadd.f32 %v4042, %v4138
        %v4140 = vpop.f32.mrb[0].mxu0
        %v4141 = vpop.f32.mrb[0].mxu0
        %v4142 = vadd.f32 %v4045, %v4141
        %v4143 = vpop.f32.mrb[0].mxu0
        %4144 = vmatprep.mubr.bf16.mxu0 %v3696
        %4145 = vmatmul.mubr.bf16.gmra.mrb[0].mxu0 %v3695
        %v4146 = vpop.f32.mrb[0].mxu0
        %v4147 = vadd.f32 %v4050, %v4146
        %v4148 = vpop.f32.mrb[0].mxu0
        %v4149 = vpop.f32.mrb[0].mxu0
        %v4150 = vadd.f32 %v4053, %v4149
        %v4151 = vpop.f32.mrb[0].mxu0
        %4152 = vdwg.mxu0
        %4153 = vst [vmem:[%s365] sm:$0xff] %v4091
        %4154 = vst [vmem:[%s365 + $0x8] sm:$0xff] %v4094
        %4155 = vst [vmem:[%s365 + $0x10] sm:$0xff] %v4099
        %4156 = vst [vmem:[%s365 + $0x18] sm:$0xff] %v4102
        %4157 = vst [vmem:[%s365 + $0x20] sm:$0xff] %v4107
        %4158 = vst [vmem:[%s365 + $0x28] sm:$0xff] %v4110
        %4159 = vst [vmem:[%s365 + $0x30] sm:$0xff] %v4115
        %4160 = vst [vmem:[%s365 + $0x38] sm:$0xff] %v4118
        %4161 = vst [vmem:[%s365 + $0x40] sm:$0xff] %v4123
        %4162 = vst [vmem:[%s365 + $0x48] sm:$0xff] %v4126
        %4163 = vst [vmem:[%s365 + $0x50] sm:$0xff] %v4131
        %4164 = vst [vmem:[%s365 + $0x58] sm:$0xff] %v4134
        %4165 = vst [vmem:[%s365 + $0x60] sm:$0xff] %v4139
        %4166 = vst [vmem:[%s365 + $0x68] sm:$0xff] %v4142
        %4167 = vst [vmem:[%s365 + $0x70] sm:$0xff] %v4147
        %4168 = vst [vmem:[%s365 + $0x78] sm:$0xff] %v4150
        %s4169 = sand.u32 %s156, 1
        %s4170 = sand.u32 %s156, 1
        %s4171 = smul.addr %s4170, 128
        %s4172 = scalar_lea.vmem [#allocation10], %s4171
        // Predicated region
        $region61: #{fan_encoder_feature_embed.1} parent=39 // pred_check
          %p4173 = pneg %p166
        $region62: #{fan_encoder_feature_embed.1} parent=39 // pred_check_branch
          %4175 = sbr.rel (%p4173) target = $region64
        $region63: #{fan_encoder_feature_embed.1} parent=39 // pred_region
          %s4176 = smul.addr %s23, 8
          %s4177 = scalar_lea.vmem %s5, %s4176
          // Predicated region
          $region65: #{fan_encoder_feature_embed.1} parent=63 // pred_check
            _
          $region66: #{fan_encoder_feature_embed.1} parent=63 // pred_check_branch
            %4179 = sbr.rel (0) target = $region68
          $region67: #{fan_encoder_feature_embed.1} parent=63 // pred_region
            // Predicated region
            $region69: #{fan_encoder_feature_embed.1} parent=67 // pred_check
              _
            $region70: #{fan_encoder_feature_embed.1} parent=67 // pred_check_branch
              %4181 = sbr.rel (0) target = $region72
            $region71: #{fan_encoder_feature_embed.1} parent=67 // pred_region
              // Predicated region
              $region84: #{fan_encoder_feature_embed.1} parent=71 // pred_check
                _
              $region85: #{fan_encoder_feature_embed.1} parent=71 // pred_check_branch
                %4226 = sbr.rel (0) target = $region87
              $region86: #{fan_encoder_feature_embed.1} parent=71 // pred_region
                loop: start=0, step=1, limit=1
                $region88: #{fan_encoder_feature_embed.1} parent=86 // loop_pre_header
                  _
                $region89: #{fan_encoder_feature_embed.1} parent=86 // loop_header
                  %s4228 = sphi 0, %s4232
                  %p4229 = scmp.ge.s32.totalorder %s4228, 1
                  %s4233 = sphi %s4172, %s4172
                  %s4234 = sphi %s4177, %s4177
                $region90: #{fan_encoder_feature_embed.1} parent=86 // loop_header_branch
                  %4231 = sbr.rel (%p4229) target = $region94
                $region91: #{fan_encoder_feature_embed.1} parent=86 // loop_body
                  %v4235 = vld [vmem:[%s4233] sm:$0xff]
                  %4236 = vst [vmem:[%s4234] sm:$0xff] %v4235
                  %v4237 = vld [vmem:[%s4233 + $0x8] sm:$0xff]
                  %4238 = vst [vmem:[%s4234 + $0x18] sm:$0xff] %v4237
                  %v4239 = vld [vmem:[%s4233 + $0x10] sm:$0xff]
                  %4240 = vst [vmem:[%s4234 + $0x30] sm:$0xff] %v4239
                  %v4241 = vld [vmem:[%s4233 + $0x18] sm:$0xff]
                  %4242 = vst [vmem:[%s4234 + $0x48] sm:$0xff] %v4241
                  %v4243 = vld [vmem:[%s4233 + $0x20] sm:$0xff]
                  %4244 = vst [vmem:[%s4234 + $0x60] sm:$0xff] %v4243
                  %v4245 = vld [vmem:[%s4233 + $0x28] sm:$0xff]
                  %4246 = vst [vmem:[%s4234 + $0x78] sm:$0xff] %v4245
                  %v4247 = vld [vmem:[%s4233 + $0x30] sm:$0xff]
                  %4248 = vst [vmem:[%s4234 + $0x90] sm:$0xff] %v4247
                  %v4249 = vld [vmem:[%s4233 + $0x38] sm:$0xff]
                  %4250 = vst [vmem:[%s4234 + $0xa8] sm:$0xff] %v4249
                  %v4251 = vld [vmem:[%s4233 + $0x40] sm:$0xff]
                  %4252 = vst [vmem:[%s4234 + $0xc0] sm:$0xff] %v4251
                  %v4253 = vld [vmem:[%s4233 + $0x48] sm:$0xff]
                  %4254 = vst [vmem:[%s4234 + $0xd8] sm:$0xff] %v4253
                  %v4255 = vld [vmem:[%s4233 + $0x50] sm:$0xff]
                  %4256 = vst [vmem:[%s4234 + $0xf0] sm:$0xff] %v4255
                  %v4257 = vld [vmem:[%s4233 + $0x58] sm:$0xff]
                  %4258 = vst [vmem:[%s4234 + $0x108] sm:$0xff] %v4257
                  %v4259 = vld [vmem:[%s4233 + $0x60] sm:$0xff]
                  %4260 = vst [vmem:[%s4234 + $0x120] sm:$0xff] %v4259
                  %v4261 = vld [vmem:[%s4233 + $0x68] sm:$0xff]
                  %4262 = vst [vmem:[%s4234 + $0x138] sm:$0xff] %v4261
                  %v4263 = vld [vmem:[%s4233 + $0x70] sm:$0xff]
                  %4264 = vst [vmem:[%s4234 + $0x150] sm:$0xff] %v4263
                  %v4265 = vld [vmem:[%s4233 + $0x78] sm:$0xff]
                  %4266 = vst [vmem:[%s4234 + $0x168] sm:$0xff] %v4265
                $region92: #{fan_encoder_feature_embed.1} parent=86 // loop_footer
                  %s4232 = sadd.s32 1, %s4228
                $region93: #{fan_encoder_feature_embed.1} parent=86 // loop_footer_branch
                  %4227 = sbr.rel target = $region89
                $region94: #{fan_encoder_feature_embed.1} parent=86 // loop_exit
                  _
              $region87: #{fan_encoder_feature_embed.1} parent=71 // pred_fallthru
                _
              // Predicated region
              $region95: #{fan_encoder_feature_embed.1} parent=71 // pred_check
                _
              $region96: #{fan_encoder_feature_embed.1} parent=71 // pred_check_branch
                %4268 = sbr.rel target = $region98
              $region97: #{fan_encoder_feature_embed.1} parent=71 // pred_region
                _
              $region98: #{fan_encoder_feature_embed.1} parent=71 // pred_fallthru
                _
            $region72: #{fan_encoder_feature_embed.1} parent=67 // pred_fallthru
              _
            // Predicated region
            $region73: #{fan_encoder_feature_embed.1} parent=67 // pred_check
              _
            $region74: #{fan_encoder_feature_embed.1} parent=67 // pred_check_branch
              %4183 = sbr.rel target = $region76
            $region75: #{fan_encoder_feature_embed.1} parent=67 // pred_region
              loop: start=0, step=1, limit=1
              $region77: #{fan_encoder_feature_embed.1} parent=75 // loop_pre_header
                _
              $region78: #{fan_encoder_feature_embed.1} parent=75 // loop_header
                %s4186 = sphi 0, %s4190
                %p4187 = scmp.ge.s32.totalorder %s4186, 1
                %s4191 = sphi %s4172, %s4172
                %s4192 = sphi %s4177, %s4177
              $region79: #{fan_encoder_feature_embed.1} parent=75 // loop_header_branch
                %4189 = sbr.rel (%p4187) target = $region83
              $region80: #{fan_encoder_feature_embed.1} parent=75 // loop_body
                %v4193 = vld [vmem:[%s4191] sm:$0xff]
                %4194 = vst [vmem:[%s4192] sm:$0xff] %v4193
                %v4195 = vld [vmem:[%s4191 + $0x8] sm:$0xff]
                %4196 = vst [vmem:[%s4192 + $0x18] sm:$0xff] %v4195
                %v4197 = vld [vmem:[%s4191 + $0x10] sm:$0xff]
                %4198 = vst [vmem:[%s4192 + $0x30] sm:$0xff] %v4197
                %v4199 = vld [vmem:[%s4191 + $0x18] sm:$0xff]
                %4200 = vst [vmem:[%s4192 + $0x48] sm:$0xff] %v4199
                %v4201 = vld [vmem:[%s4191 + $0x20] sm:$0xff]
                %4202 = vst [vmem:[%s4192 + $0x60] sm:$0xff] %v4201
                %v4203 = vld [vmem:[%s4191 + $0x28] sm:$0xff]
                %4204 = vst [vmem:[%s4192 + $0x78] sm:$0xff] %v4203
                %v4205 = vld [vmem:[%s4191 + $0x30] sm:$0xff]
                %4206 = vst [vmem:[%s4192 + $0x90] sm:$0xff] %v4205
                %v4207 = vld [vmem:[%s4191 + $0x38] sm:$0xff]
                %4208 = vst [vmem:[%s4192 + $0xa8] sm:$0xff] %v4207
                %v4209 = vld [vmem:[%s4191 + $0x40] sm:$0xff]
                %4210 = vst [vmem:[%s4192 + $0xc0] sm:$0xff] %v4209
                %v4211 = vld [vmem:[%s4191 + $0x48] sm:$0xff]
                %4212 = vst [vmem:[%s4192 + $0xd8] sm:$0xff] %v4211
                %v4213 = vld [vmem:[%s4191 + $0x50] sm:$0xff]
                %4214 = vst [vmem:[%s4192 + $0xf0] sm:$0xff] %v4213
                %v4215 = vld [vmem:[%s4191 + $0x58] sm:$0xff]
                %4216 = vst [vmem:[%s4192 + $0x108] sm:$0xff] %v4215
                %v4217 = vld [vmem:[%s4191 + $0x60] sm:$0xff]
                %4218 = vst [vmem:[%s4192 + $0x120] sm:$0xff] %v4217
                %v4219 = vld [vmem:[%s4191 + $0x68] sm:$0xff]
                %4220 = vst [vmem:[%s4192 + $0x138] sm:$0xff] %v4219
                %v4221 = vld [vmem:[%s4191 + $0x70] sm:$0xff]
                %4222 = vst [vmem:[%s4192 + $0x150] sm:$0xff] %v4221
                %v4223 = vld [vmem:[%s4191 + $0x78] sm:$0xff]
                %4224 = vst [vmem:[%s4192 + $0x168] sm:$0xff] %v4223
              $region81: #{fan_encoder_feature_embed.1} parent=75 // loop_footer
                %s4190 = sadd.s32 1, %s4186
              $region82: #{fan_encoder_feature_embed.1} parent=75 // loop_footer_branch
                %4185 = sbr.rel target = $region78
              $region83: #{fan_encoder_feature_embed.1} parent=75 // loop_exit
                _
            $region76: #{fan_encoder_feature_embed.1} parent=67 // pred_fallthru
              _
          $region68: #{fan_encoder_feature_embed.1} parent=63 // pred_fallthru
            _
          %4269 = vnop
        $region64: #{fan_encoder_feature_embed.1} parent=39 // pred_fallthru
          _
      $region40: #{fan_encoder_feature_embed.1} parent=5 // pred_fallthru
        _
      %p4270 = scmp.le.s32.totalorder 2, %s18
      // Predicated region
      $region99: #{fan_encoder_feature_embed.1} parent=5 // pred_check
        %p4271 = pneg %p4270
      $region100: #{fan_encoder_feature_embed.1} parent=5 // pred_check_branch
        %4273 = sbr.rel (%p4271) target = $region102
      $region101: #{fan_encoder_feature_embed.1} parent=5 // pred_region
        %s4274 = ssub.s32 %s18, 2
        // Predicated region
        $region103: #{fan_encoder_feature_embed.1} parent=101 // pred_check
          %p4275 = pneg %p172
        $region104: #{fan_encoder_feature_embed.1} parent=101 // pred_check_branch
          %4277 = sbr.rel (%p4275) target = $region106
        $region105: #{fan_encoder_feature_embed.1} parent=101 // pred_region
          %s4278 = sand.u32 %s157, 1
          %s4279 = sand.u32 %s157, 1
          %s4280 = smul.addr %s4279, 128
          %s4281 = scalar_lea.vmem [#allocation10], %s4280
        $region106: #{fan_encoder_feature_embed.1} parent=101 // pred_fallthru
          _
      $region102: #{fan_encoder_feature_embed.1} parent=5 // pred_fallthru
        _
    $region6: #{fan_encoder_feature_embed.1} parent=1 // loop_footer
      %s22 = sadd.s32 1, %s18
    $region7: #{fan_encoder_feature_embed.1} parent=1 // loop_footer_branch
      %17 = sbr.rel target = $region3
    $region8: #{fan_encoder_feature_embed.1} parent=1 // loop_exit
      _
    %4282 = vsyncpa [#allocation3], 1
    %s4283 = scalar_lea.sflag [#allocation3], 1
    %4284 = vsyncpa %s4283, 1
    %4285 = vsyncpa [#allocation5], 1
    %s4286 = scalar_lea.sflag [#allocation5], 1
    %4287 = vsyncpa %s4286, 1
    %4288 = vsyncpa [#allocation8], 1
    %s4289 = scalar_lea.sflag [#allocation8], 1
    %4290 = vsyncpa %s4289, 1

</llo_original>
